<compile_context>
chip_gen: v7x
topology: tpu7x:2x2x1
jax: 0.10.0
libtpu: 0.0.40
codegen_flags: <defaults>
</compile_context>

<pallas_src>
import functools
import math

import jax
import jax.numpy as jnp
from jax.experimental import pallas as pl
from jax.experimental.pallas import tpu as pltpu

# -------- scaled-down bert-base-uncased config --------
VOCAB = 128
HIDDEN = 32
N_LAYERS = 2
N_HEADS = 4
HEAD_DIM = HIDDEN // N_HEADS
INTERMEDIATE = 64
MAX_POS = 16
TYPE_VOCAB = 2
NUM_CLASSES = 2
LOGIT_PAD = 128          # lane-dense classifier output width (padded)
LN_EPS = 1e-12
MASK_BIAS = -10000.0     # HF extended-attention-mask additive value


# ----------------------------- fused Pallas kernel -----------------------------

def _layer_norm(h, g, b):
    mu = jnp.mean(h, axis=-1, keepdims=True)
    var = jnp.mean((h - mu) ** 2, axis=-1, keepdims=True)
    return (h - mu) * jax.lax.rsqrt(var + LN_EPS) * g + b


def _gelu(x):
    # TODO(synk): HF BERT uses exact erf-GELU; tanh approximation used here.
    return 0.5 * x * (1.0 + jnp.tanh(
        0.7978845608028654 * (x + 0.044715 * x * x * x)))


def _fused_forward_kernel(
    x_ref, mask_ref,
    emb_g_ref, emb_b_ref,
    qw_ref, qb_ref, kw_ref, kb_ref, vw_ref, vb_ref,
    ow_ref, ob_ref,
    iw_ref, ib_ref, fw_ref, fb_ref,
    ln1_g_ref, ln1_b_ref, ln2_g_ref, ln2_b_ref,
    pool_w_ref, pool_b_ref, fc_w_ref, fc_b_ref,
    out_ref, *, batch, seq):
    """Whole BERT classifier forward (post-embedding) on VMEM-resident data."""
    f32 = jnp.float32
    bf16 = jnp.bfloat16
    scale = 1.0 / math.sqrt(HEAD_DIM)
    n = batch * seq

    # --- embedding LayerNorm ---
    x = _layer_norm(x_ref[...], emb_g_ref[...], emb_b_ref[...])      # (B*S, H) f32
    mask = mask_ref[...]                                             # (H*B, 1, S) f32

    # --- encoder layers (static unroll: tiny trip counts L=2, heads=4; weights are
    #     selected via leading-axis ref indexing so no lane slicing is generated) ---
    for l in range(N_LAYERS):
        x_bf = x.astype(bf16)

        # Per-head projections: (B*S, H) @ (H, D) with head selected on a leading axis.
        q_blocks, k_blocks, v_blocks = [], [], []
        for h in range(N_HEADS):
            q_h = jnp.dot(x_bf, qw_ref[l, h], preferred_element_type=f32) + qb_ref[l, h]
            k_h = jnp.dot(x_bf, kw_ref[l, h], preferred_element_type=f32) + kb_ref[l, h]
            v_h = jnp.dot(x_bf, vw_ref[l, h], preferred_element_type=f32) + vb_ref[l, h]
            q_blocks.append(q_h.reshape(batch, seq, HEAD_DIM))
            k_blocks.append(k_h.reshape(batch, seq, HEAD_DIM))
            v_blocks.append(v_h.reshape(batch, seq, HEAD_DIM))
        # Leading-axis concat only (no cross-lane movement): (H*B, S, D)
        q = jnp.concatenate(q_blocks, axis=0)
        k = jnp.concatenate(k_blocks, axis=0)
        v = jnp.concatenate(v_blocks, axis=0)

        # All (head, batch) score blocks at once; single softmax per layer.
        s = jnp.einsum('nqd,nkd->nqk', q.astype(bf16), k.astype(bf16),
                       preferred_element_type=f32) * scale + mask    # (H*B, S, S)
        mx = jnp.max(s, axis=-1, keepdims=True)
        e = jnp.exp(s - mx)
        p = e / jnp.sum(e, axis=-1, keepdims=True)
        ctx = jnp.einsum('nqk,nkd->nqd', p.astype(bf16), v.astype(bf16),
                         preferred_element_type=f32)                 # (H*B, S, D)

        # Output projection as per-head partial sums (no head concatenation).
        attn = jnp.zeros((n, HIDDEN), f32)
        for h in range(N_HEADS):
            ctx_h = ctx[h * batch:(h + 1) * batch].reshape(n, HEAD_DIM)
            attn = attn + jnp.dot(ctx_h.astype(bf16), ow_ref[l, h],
                                  preferred_element_type=f32)
        attn = attn + ob_ref[l]
        x = _layer_norm(attn + x, ln1_g_ref[l], ln1_b_ref[l])

        # Feed-forward + residual + LN.
        inter = jnp.dot(x.astype(bf16), iw_ref[l], preferred_element_type=f32) + ib_ref[l]
        inter = _gelu(inter)
        ffn = jnp.dot(inter.astype(bf16), fw_ref[l], preferred_element_type=f32) + fb_ref[l]
        x = _layer_norm(ffn + x, ln2_g_ref[l], ln2_b_ref[l])

    # --- pooler + classifier on all rows (CLS rows selected in the wrapper) ---
    # TODO(synk): dropout (p=0.1 embeddings/attn, p=0.3 classifier) treated as identity (eval mode).
    pooled = jnp.tanh(jnp.dot(x.astype(bf16), pool_w_ref[...],
                              preferred_element_type=f32) + pool_b_ref[...])
    out_ref[...] = (jnp.dot(pooled.astype(bf16), fc_w_ref[...],
                            preferred_element_type=f32) + fc_b_ref[...])


# ----------------------------- parameters -----------------------------

def init_params(key):
    def nrm(k, shape):
        return 0.02 * jax.random.normal(k, shape, dtype=jnp.float32)

    n_needed = 6 + N_LAYERS * 6
    keys = iter(jax.random.split(key, n_needed))

    params = {
        "word_emb": nrm(next(keys), (VOCAB, HIDDEN)),
        "pos_emb": nrm(next(keys), (MAX_POS, HIDDEN)),
        "type_emb": nrm(next(keys), (TYPE_VOCAB, HIDDEN)),
        "emb_ln_g": jnp.ones((HIDDEN,), jnp.float32),
        "emb_ln_b": jnp.zeros((HIDDEN,), jnp.float32),
        "pooler_w": nrm(next(keys), (HIDDEN, HIDDEN)),
        "pooler_b": jnp.zeros((HIDDEN,), jnp.float32),
        "fc_w": nrm(next(keys), (HIDDEN, NUM_CLASSES)),
        "fc_b": jnp.zeros((NUM_CLASSES,), jnp.float32),
        "layers": [],
    }
    for _ in range(N_LAYERS):
        layer = {
            "q_w": nrm(next(keys), (HIDDEN, HIDDEN)), "q_b": jnp.zeros((HIDDEN,), jnp.float32),
            "k_w": nrm(next(keys), (HIDDEN, HIDDEN)), "k_b": jnp.zeros((HIDDEN,), jnp.float32),
            "v_w": nrm(next(keys), (HIDDEN, HIDDEN)), "v_b": jnp.zeros((HIDDEN,), jnp.float32),
            "o_w": nrm(next(keys), (HIDDEN, HIDDEN)), "o_b": jnp.zeros((HIDDEN,), jnp.float32),
            "i_w": nrm(next(keys), (HIDDEN, INTERMEDIATE)), "i_b": jnp.zeros((INTERMEDIATE,), jnp.float32),
            "f_w": nrm(next(keys), (INTERMEDIATE, HIDDEN)), "f_b": jnp.zeros((HIDDEN,), jnp.float32),
            "ln1_g": jnp.ones((HIDDEN,), jnp.float32), "ln1_b": jnp.zeros((HIDDEN,), jnp.float32),
            "ln2_g": jnp.ones((HIDDEN,), jnp.float32), "ln2_b": jnp.zeros((HIDDEN,), jnp.float32),
        }
        params["layers"].append(layer)
    return params


# ----------------------------- forward pass -----------------------------

def bert_classifier_forward(params, input_ids, attention_mask):
    B, S = input_ids.shape
    L, H, D = N_LAYERS, N_HEADS, HEAD_DIM
    bf16 = jnp.bfloat16

    # --- embeddings (gathers are glue in plain JAX) ---
    # TODO(synk): token_type_ids hard-coded to type 0 (matches reference default usage).
    x = (params["word_emb"][input_ids]
         + params["pos_emb"][jnp.arange(S)][None, :, :]
         + params["type_emb"][0][None, None, :])                     # (B, S, H)
    x = x.reshape(B * S, HIDDEN).astype(jnp.float32)

    # HF extended attention mask, expanded per (head, batch) so the kernel does no work.
    mask_bias = (1.0 - attention_mask.astype(jnp.float32)) * MASK_BIAS        # (B, S)
    mask_bias = jnp.broadcast_to(mask_bias[None, :, None, :], (H, B, 1, S))
    mask_bias = mask_bias.reshape(H * B, 1, S)

    # --- pack per-layer weights; heads live on LEADING axes; matmul weights in bf16 ---
    lps = params["layers"]
    qw = jnp.stack([lp["q_w"].reshape(HIDDEN, H, D).transpose(1, 0, 2) for lp in lps]).astype(bf16)  # (L,H,HIDDEN,D)
    kw = jnp.stack([lp["k_w"].reshape(HIDDEN, H, D).transpose(1, 0, 2) for lp in lps]).astype(bf16)
    vw = jnp.stack([lp["v_w"].reshape(HIDDEN, H, D).transpose(1, 0, 2) for lp in lps]).astype(bf16)
    qb = jnp.stack([lp["q_b"].reshape(H, 1, D) for lp in lps])                                       # (L,H,1,D)
    kb = jnp.stack([lp["k_b"].reshape(H, 1, D) for lp in lps])
    vb = jnp.stack([lp["v_b"].reshape(H, 1, D) for lp in lps])
    ow = jnp.stack([lp["o_w"].reshape(H, D, HIDDEN) for lp in lps]).astype(bf16)                     # (L,H,D,HIDDEN)
    ob = jnp.stack([lp["o_b"].reshape(1, HIDDEN) for lp in lps])                                     # (L,1,HIDDEN)
    iw = jnp.stack([lp["i_w"] for lp in lps]).astype(bf16)                                           # (L,HIDDEN,INT)
    ib = jnp.stack([lp["i_b"].reshape(1, INTERMEDIATE) for lp in lps])
    fw = jnp.stack([lp["f_w"] for lp in lps]).astype(bf16)                                           # (L,INT,HIDDEN)
    fb = jnp.stack([lp["f_b"].reshape(1, HIDDEN) for lp in lps])
    ln1_g = jnp.stack([lp["ln1_g"].reshape(1, HIDDEN) for lp in lps])
    ln1_b = jnp.stack([lp["ln1_b"].reshape(1, HIDDEN) for lp in lps])
    ln2_g = jnp.stack([lp["ln2_g"].reshape(1, HIDDEN) for lp in lps])
    ln2_b = jnp.stack([lp["ln2_b"].reshape(1, HIDDEN) for lp in lps])

    pool_w = params["pooler_w"].astype(bf16)
    pool_b = params["pooler_b"].reshape(1, HIDDEN)

    # Lane-dense classifier: zero-pad output columns to 128; slice back in the wrapper.
    fc_w_pad = jnp.zeros((HIDDEN, LOGIT_PAD), jnp.float32)
    fc_w_pad = fc_w_pad.at[:, :NUM_CLASSES].set(params["fc_w"]).astype(bf16)
    fc_b_pad = jnp.zeros((1, LOGIT_PAD), jnp.float32)
    fc_b_pad = fc_b_pad.at[:, :NUM_CLASSES].set(params["fc_b"][None, :])

    args = (x, mask_bias,
            params["emb_ln_g"].reshape(1, HIDDEN), params["emb_ln_b"].reshape(1, HIDDEN),
            qw, qb, kw, kb, vw, vb, ow, ob, iw, ib, fw, fb,
            ln1_g, ln1_b, ln2_g, ln2_b,
            pool_w, pool_b, fc_w_pad, fc_b_pad)

    vmem_spec = pl.BlockSpec(memory_space=pltpu.MemorySpace.VMEM)
    kernel = functools.partial(_fused_forward_kernel, batch=B, seq=S)
    logits_all = pl.pallas_call(
        kernel,
        out_shape=jax.ShapeDtypeStruct((B * S, LOGIT_PAD), jnp.float32),
        in_specs=[vmem_spec for _ in args],
        out_specs=vmem_spec,
        compiler_params=pltpu.CompilerParams(vmem_limit_bytes=32 * 1024 * 1024),
    )(*args)

    # Select the [CLS] row per batch and the real classifier columns (cheap XLA glue).
    return logits_all.reshape(B, S, LOGIT_PAD)[:, 0, :NUM_CLASSES]


# ----------------------------- main -----------------------------

if __name__ == "__main__":
    key = jax.random.PRNGKey(0)
    pkey, ikey = jax.random.split(key)
    params = init_params(pkey)

    B, S = 2, 8
    input_ids = jax.random.randint(ikey, (B, S), 0, VOCAB, dtype=jnp.int32)
    attention_mask = jnp.ones((B, S), dtype=jnp.int32)

    logits = jax.jit(bert_classifier_forward)(params, input_ids, attention_mask)
    jax.block_until_ready(logits)

    assert logits.shape == (B, NUM_CLASSES), logits.shape
    assert logits.dtype == jnp.float32
    print("KERNEL_OK")
</pallas_src>

<mosaic_0001>
module attributes {stable_mosaic.version = 11 : i64} {
  func.func @_fused_forward_kernel(%arg0: memref<16x32xf32, #tpu.memory_space<vmem>>, %arg1: memref<8x1x8xf32, #tpu.memory_space<vmem>>, %arg2: memref<1x32xf32, #tpu.memory_space<vmem>>, %arg3: memref<1x32xf32, #tpu.memory_space<vmem>>, %arg4: memref<2x4x32x8xbf16, #tpu.memory_space<vmem>>, %arg5: memref<2x4x1x8xf32, #tpu.memory_space<vmem>>, %arg6: memref<2x4x32x8xbf16, #tpu.memory_space<vmem>>, %arg7: memref<2x4x1x8xf32, #tpu.memory_space<vmem>>, %arg8: memref<2x4x32x8xbf16, #tpu.memory_space<vmem>>, %arg9: memref<2x4x1x8xf32, #tpu.memory_space<vmem>>, %arg10: memref<2x4x8x32xbf16, #tpu.memory_space<vmem>>, %arg11: memref<2x1x32xf32, #tpu.memory_space<vmem>>, %arg12: memref<2x32x64xbf16, #tpu.memory_space<vmem>>, %arg13: memref<2x1x64xf32, #tpu.memory_space<vmem>>, %arg14: memref<2x64x32xbf16, #tpu.memory_space<vmem>>, %arg15: memref<2x1x32xf32, #tpu.memory_space<vmem>>, %arg16: memref<2x1x32xf32, #tpu.memory_space<vmem>>, %arg17: memref<2x1x32xf32, #tpu.memory_space<vmem>>, %arg18: memref<2x1x32xf32, #tpu.memory_space<vmem>>, %arg19: memref<2x1x32xf32, #tpu.memory_space<vmem>>, %arg20: memref<32x32xbf16, #tpu.memory_space<vmem>>, %arg21: memref<1x32xf32, #tpu.memory_space<vmem>>, %arg22: memref<32x128xbf16, #tpu.memory_space<vmem>>, %arg23: memref<1x128xf32, #tpu.memory_space<vmem>>, %arg24: memref<16x128xf32, #tpu.memory_space<vmem>>) attributes {dimension_semantics = [], scalar_prefetch = 0 : i64, scratch_operands = 0 : i64, tpu.core_type = #tpu.core_type<tc>} {
    %c0 = arith.constant 0 : index
    %c0_0 = arith.constant 0 : index
    %0 = vector.load %arg0[%c0, %c0_0] : memref<16x32xf32, #tpu.memory_space<vmem>>, vector<16x32xf32>
    %c0_1 = arith.constant 0 : index
    %c0_2 = arith.constant 0 : index
    %1 = vector.load %arg2[%c0_1, %c0_2] : memref<1x32xf32, #tpu.memory_space<vmem>>, vector<1x32xf32>
    %c0_3 = arith.constant 0 : index
    %c0_4 = arith.constant 0 : index
    %2 = vector.load %arg3[%c0_3, %c0_4] : memref<1x32xf32, #tpu.memory_space<vmem>>, vector<1x32xf32>
    %cst = arith.constant dense<0.000000e+00> : vector<16xf32>
    %3 = vector.multi_reduction <add>, %0, %cst [1] : vector<16x32xf32> to vector<16xf32>
    %4 = vector.shape_cast %3 : vector<16xf32> to vector<16x1xf32>
    %cst_5 = arith.constant 3.200000e+01 : f32
    %5 = vector.broadcast %cst_5 : f32 to vector<16x1xf32>
    %6 = arith.divf %4, %5 : vector<16x1xf32>
    %7 = vector.broadcast %6 : vector<16x1xf32> to vector<16x32xf32>
    %8 = arith.subf %0, %7 : vector<16x32xf32>
    %9 = arith.mulf %8, %8 : vector<16x32xf32>
    %cst_6 = arith.constant dense<0.000000e+00> : vector<16xf32>
    %10 = vector.multi_reduction <add>, %9, %cst_6 [1] : vector<16x32xf32> to vector<16xf32>
    %11 = vector.shape_cast %10 : vector<16xf32> to vector<16x1xf32>
    %cst_7 = arith.constant 3.200000e+01 : f32
    %12 = vector.broadcast %cst_7 : f32 to vector<16x1xf32>
    %13 = arith.divf %11, %12 : vector<16x1xf32>
    %14 = vector.broadcast %6 : vector<16x1xf32> to vector<16x32xf32>
    %15 = arith.subf %0, %14 : vector<16x32xf32>
    %cst_8 = arith.constant 9.99999996E-13 : f32
    %16 = vector.broadcast %cst_8 : f32 to vector<16x1xf32>
    %17 = arith.addf %13, %16 : vector<16x1xf32>
    %18 = math.rsqrt %17 : vector<16x1xf32>
    %19 = vector.broadcast %18 : vector<16x1xf32> to vector<16x32xf32>
    %20 = arith.mulf %15, %19 : vector<16x32xf32>
    %21 = vector.broadcast %1 : vector<1x32xf32> to vector<16x32xf32>
    %22 = arith.mulf %20, %21 : vector<16x32xf32>
    %23 = vector.broadcast %2 : vector<1x32xf32> to vector<16x32xf32>
    %24 = arith.addf %22, %23 : vector<16x32xf32>
    %c0_9 = arith.constant 0 : index
    %c0_10 = arith.constant 0 : index
    %c0_11 = arith.constant 0 : index
    %25 = vector.load %arg1[%c0_9, %c0_10, %c0_11] : memref<8x1x8xf32, #tpu.memory_space<vmem>>, vector<8x1x8xf32>
    %26 = arith.truncf %24 : vector<16x32xf32> to vector<16x32xbf16>
    %c0_12 = arith.constant 0 : index
    %c0_13 = arith.constant 0 : index
    %c0_14 = arith.constant 0 : index
    %c0_15 = arith.constant 0 : index
    %27 = vector.load %arg4[%c0_12, %c0_13, %c0_14, %c0_15] : memref<2x4x32x8xbf16, #tpu.memory_space<vmem>>, vector<1x1x32x8xbf16>
    %28 = vector.shape_cast %27 : vector<1x1x32x8xbf16> to vector<32x8xbf16>
    %cst_16 = arith.constant dense<0.000000e+00> : vector<16x8xf32>
    %29 = tpu.matmul %26, %28, %cst_16 {dimension_numbers = #tpu.dot_dimension_numbers<[1], [0], [0], [1], [0, 0, 1, 1], [], []>} : vector<16x32xbf16>, vector<32x8xbf16>, vector<16x8xf32> -> vector<16x8xf32>
    %c0_17 = arith.constant 0 : index
    %c0_18 = arith.constant 0 : index
    %c0_19 = arith.constant 0 : index
    %c0_20 = arith.constant 0 : index
    %30 = vector.load %arg5[%c0_17, %c0_18, %c0_19, %c0_20] : memref<2x4x1x8xf32, #tpu.memory_space<vmem>>, vector<1x1x1x8xf32>
    %31 = vector.shape_cast %30 : vector<1x1x1x8xf32> to vector<1x8xf32>
    %32 = vector.broadcast %31 : vector<1x8xf32> to vector<16x8xf32>
    %33 = arith.addf %29, %32 : vector<16x8xf32>
    %c0_21 = arith.constant 0 : index
    %c0_22 = arith.constant 0 : index
    %c0_23 = arith.constant 0 : index
    %c0_24 = arith.constant 0 : index
    %34 = vector.load %arg6[%c0_21, %c0_22, %c0_23, %c0_24] : memref<2x4x32x8xbf16, #tpu.memory_space<vmem>>, vector<1x1x32x8xbf16>
    %35 = vector.shape_cast %34 : vector<1x1x32x8xbf16> to vector<32x8xbf16>
    %cst_25 = arith.constant dense<0.000000e+00> : vector<16x8xf32>
    %36 = tpu.matmul %26, %35, %cst_25 {dimension_numbers = #tpu.dot_dimension_numbers<[1], [0], [0], [1], [0, 0, 1, 1], [], []>} : vector<16x32xbf16>, vector<32x8xbf16>, vector<16x8xf32> -> vector<16x8xf32>
    %c0_26 = arith.constant 0 : index
    %c0_27 = arith.constant 0 : index
    %c0_28 = arith.constant 0 : index
    %c0_29 = arith.constant 0 : index
    %37 = vector.load %arg7[%c0_26, %c0_27, %c0_28, %c0_29] : memref<2x4x1x8xf32, #tpu.memory_space<vmem>>, vector<1x1x1x8xf32>
    %38 = vector.shape_cast %37 : vector<1x1x1x8xf32> to vector<1x8xf32>
    %39 = vector.broadcast %38 : vector<1x8xf32> to vector<16x8xf32>
    %40 = arith.addf %36, %39 : vector<16x8xf32>
    %c0_30 = arith.constant 0 : index
    %c0_31 = arith.constant 0 : index
    %c0_32 = arith.constant 0 : index
    %c0_33 = arith.constant 0 : index
    %41 = vector.load %arg8[%c0_30, %c0_31, %c0_32, %c0_33] : memref<2x4x32x8xbf16, #tpu.memory_space<vmem>>, vector<1x1x32x8xbf16>
    %42 = vector.shape_cast %41 : vector<1x1x32x8xbf16> to vector<32x8xbf16>
    %cst_34 = arith.constant dense<0.000000e+00> : vector<16x8xf32>
    %43 = tpu.matmul %26, %42, %cst_34 {dimension_numbers = #tpu.dot_dimension_numbers<[1], [0], [0], [1], [0, 0, 1, 1], [], []>} : vector<16x32xbf16>, vector<32x8xbf16>, vector<16x8xf32> -> vector<16x8xf32>
    %c0_35 = arith.constant 0 : index
    %c0_36 = arith.constant 0 : index
    %c0_37 = arith.constant 0 : index
    %c0_38 = arith.constant 0 : index
    %44 = vector.load %arg9[%c0_35, %c0_36, %c0_37, %c0_38] : memref<2x4x1x8xf32, #tpu.memory_space<vmem>>, vector<1x1x1x8xf32>
    %45 = vector.shape_cast %44 : vector<1x1x1x8xf32> to vector<1x8xf32>
    %46 = vector.broadcast %45 : vector<1x8xf32> to vector<16x8xf32>
    %47 = arith.addf %43, %46 : vector<16x8xf32>
    %48 = vector.shape_cast %33 : vector<16x8xf32> to vector<2x8x8xf32>
    %49 = vector.shape_cast %40 : vector<16x8xf32> to vector<2x8x8xf32>
    %50 = vector.shape_cast %47 : vector<16x8xf32> to vector<2x8x8xf32>
    %c0_39 = arith.constant 0 : index
    %c1 = arith.constant 1 : index
    %c0_40 = arith.constant 0 : index
    %c0_41 = arith.constant 0 : index
    %51 = vector.load %arg4[%c0_39, %c1, %c0_40, %c0_41] : memref<2x4x32x8xbf16, #tpu.memory_space<vmem>>, vector<1x1x32x8xbf16>
    %52 = vector.shape_cast %51 : vector<1x1x32x8xbf16> to vector<32x8xbf16>
    %cst_42 = arith.constant dense<0.000000e+00> : vector<16x8xf32>
    %53 = tpu.matmul %26, %52, %cst_42 {dimension_numbers = #tpu.dot_dimension_numbers<[1], [0], [0], [1], [0, 0, 1, 1], [], []>} : vector<16x32xbf16>, vector<32x8xbf16>, vector<16x8xf32> -> vector<16x8xf32>
    %c0_43 = arith.constant 0 : index
    %c1_44 = arith.constant 1 : index
    %c0_45 = arith.constant 0 : index
    %c0_46 = arith.constant 0 : index
    %54 = vector.load %arg5[%c0_43, %c1_44, %c0_45, %c0_46] : memref<2x4x1x8xf32, #tpu.memory_space<vmem>>, vector<1x1x1x8xf32>
    %55 = vector.shape_cast %54 : vector<1x1x1x8xf32> to vector<1x8xf32>
    %56 = vector.broadcast %55 : vector<1x8xf32> to vector<16x8xf32>
    %57 = arith.addf %53, %56 : vector<16x8xf32>
    %c0_47 = arith.constant 0 : index
    %c1_48 = arith.constant 1 : index
    %c0_49 = arith.constant 0 : index
    %c0_50 = arith.constant 0 : index
    %58 = vector.load %arg6[%c0_47, %c1_48, %c0_49, %c0_50] : memref<2x4x32x8xbf16, #tpu.memory_space<vmem>>, vector<1x1x32x8xbf16>
    %59 = vector.shape_cast %58 : vector<1x1x32x8xbf16> to vector<32x8xbf16>
    %cst_51 = arith.constant dense<0.000000e+00> : vector<16x8xf32>
    %60 = tpu.matmul %26, %59, %cst_51 {dimension_numbers = #tpu.dot_dimension_numbers<[1], [0], [0], [1], [0, 0, 1, 1], [], []>} : vector<16x32xbf16>, vector<32x8xbf16>, vector<16x8xf32> -> vector<16x8xf32>
    %c0_52 = arith.constant 0 : index
    %c1_53 = arith.constant 1 : index
    %c0_54 = arith.constant 0 : index
    %c0_55 = arith.constant 0 : index
    %61 = vector.load %arg7[%c0_52, %c1_53, %c0_54, %c0_55] : memref<2x4x1x8xf32, #tpu.memory_space<vmem>>, vector<1x1x1x8xf32>
    %62 = vector.shape_cast %61 : vector<1x1x1x8xf32> to vector<1x8xf32>
    %63 = vector.broadcast %62 : vector<1x8xf32> to vector<16x8xf32>
    %64 = arith.addf %60, %63 : vector<16x8xf32>
    %c0_56 = arith.constant 0 : index
    %c1_57 = arith.constant 1 : index
    %c0_58 = arith.constant 0 : index
    %c0_59 = arith.constant 0 : index
    %65 = vector.load %arg8[%c0_56, %c1_57, %c0_58, %c0_59] : memref<2x4x32x8xbf16, #tpu.memory_space<vmem>>, vector<1x1x32x8xbf16>
    %66 = vector.shape_cast %65 : vector<1x1x32x8xbf16> to vector<32x8xbf16>
    %cst_60 = arith.constant dense<0.000000e+00> : vector<16x8xf32>
    %67 = tpu.matmul %26, %66, %cst_60 {dimension_numbers = #tpu.dot_dimension_numbers<[1], [0], [0], [1], [0, 0, 1, 1], [], []>} : vector<16x32xbf16>, vector<32x8xbf16>, vector<16x8xf32> -> vector<16x8xf32>
    %c0_61 = arith.constant 0 : index
    %c1_62 = arith.constant 1 : index
    %c0_63 = arith.constant 0 : index
    %c0_64 = arith.constant 0 : index
    %68 = vector.load %arg9[%c0_61, %c1_62, %c0_63, %c0_64] : memref<2x4x1x8xf32, #tpu.memory_space<vmem>>, vector<1x1x1x8xf32>
    %69 = vector.shape_cast %68 : vector<1x1x1x8xf32> to vector<1x8xf32>
    %70 = vector.broadcast %69 : vector<1x8xf32> to vector<16x8xf32>
    %71 = arith.addf %67, %70 : vector<16x8xf32>
    %72 = vector.shape_cast %57 : vector<16x8xf32> to vector<2x8x8xf32>
    %73 = vector.shape_cast %64 : vector<16x8xf32> to vector<2x8x8xf32>
    %74 = vector.shape_cast %71 : vector<16x8xf32> to vector<2x8x8xf32>
    %c0_65 = arith.constant 0 : index
    %c2 = arith.constant 2 : index
    %c0_66 = arith.constant 0 : index
    %c0_67 = arith.constant 0 : index
    %75 = vector.load %arg4[%c0_65, %c2, %c0_66, %c0_67] : memref<2x4x32x8xbf16, #tpu.memory_space<vmem>>, vector<1x1x32x8xbf16>
    %76 = vector.shape_cast %75 : vector<1x1x32x8xbf16> to vector<32x8xbf16>
    %cst_68 = arith.constant dense<0.000000e+00> : vector<16x8xf32>
    %77 = tpu.matmul %26, %76, %cst_68 {dimension_numbers = #tpu.dot_dimension_numbers<[1], [0], [0], [1], [0, 0, 1, 1], [], []>} : vector<16x32xbf16>, vector<32x8xbf16>, vector<16x8xf32> -> vector<16x8xf32>
    %c0_69 = arith.constant 0 : index
    %c2_70 = arith.constant 2 : index
    %c0_71 = arith.constant 0 : index
    %c0_72 = arith.constant 0 : index
    %78 = vector.load %arg5[%c0_69, %c2_70, %c0_71, %c0_72] : memref<2x4x1x8xf32, #tpu.memory_space<vmem>>, vector<1x1x1x8xf32>
    %79 = vector.shape_cast %78 : vector<1x1x1x8xf32> to vector<1x8xf32>
    %80 = vector.broadcast %79 : vector<1x8xf32> to vector<16x8xf32>
    %81 = arith.addf %77, %80 : vector<16x8xf32>
    %c0_73 = arith.constant 0 : index
    %c2_74 = arith.constant 2 : index
    %c0_75 = arith.constant 0 : index
    %c0_76 = arith.constant 0 : index
    %82 = vector.load %arg6[%c0_73, %c2_74, %c0_75, %c0_76] : memref<2x4x32x8xbf16, #tpu.memory_space<vmem>>, vector<1x1x32x8xbf16>
    %83 = vector.shape_cast %82 : vector<1x1x32x8xbf16> to vector<32x8xbf16>
    %cst_77 = arith.constant dense<0.000000e+00> : vector<16x8xf32>
    %84 = tpu.matmul %26, %83, %cst_77 {dimension_numbers = #tpu.dot_dimension_numbers<[1], [0], [0], [1], [0, 0, 1, 1], [], []>} : vector<16x32xbf16>, vector<32x8xbf16>, vector<16x8xf32> -> vector<16x8xf32>
    %c0_78 = arith.constant 0 : index
    %c2_79 = arith.constant 2 : index
    %c0_80 = arith.constant 0 : index
    %c0_81 = arith.constant 0 : index
    %85 = vector.load %arg7[%c0_78, %c2_79, %c0_80, %c0_81] : memref<2x4x1x8xf32, #tpu.memory_space<vmem>>, vector<1x1x1x8xf32>
    %86 = vector.shape_cast %85 : vector<1x1x1x8xf32> to vector<1x8xf32>
    %87 = vector.broadcast %86 : vector<1x8xf32> to vector<16x8xf32>
    %88 = arith.addf %84, %87 : vector<16x8xf32>
    %c0_82 = arith.constant 0 : index
    %c2_83 = arith.constant 2 : index
    %c0_84 = arith.constant 0 : index
    %c0_85 = arith.constant 0 : index
    %89 = vector.load %arg8[%c0_82, %c2_83, %c0_84, %c0_85] : memref<2x4x32x8xbf16, #tpu.memory_space<vmem>>, vector<1x1x32x8xbf16>
    %90 = vector.shape_cast %89 : vector<1x1x32x8xbf16> to vector<32x8xbf16>
    %cst_86 = arith.constant dense<0.000000e+00> : vector<16x8xf32>
    %91 = tpu.matmul %26, %90, %cst_86 {dimension_numbers = #tpu.dot_dimension_numbers<[1], [0], [0], [1], [0, 0, 1, 1], [], []>} : vector<16x32xbf16>, vector<32x8xbf16>, vector<16x8xf32> -> vector<16x8xf32>
    %c0_87 = arith.constant 0 : index
    %c2_88 = arith.constant 2 : index
    %c0_89 = arith.constant 0 : index
    %c0_90 = arith.constant 0 : index
    %92 = vector.load %arg9[%c0_87, %c2_88, %c0_89, %c0_90] : memref<2x4x1x8xf32, #tpu.memory_space<vmem>>, vector<1x1x1x8xf32>
    %93 = vector.shape_cast %92 : vector<1x1x1x8xf32> to vector<1x8xf32>
    %94 = vector.broadcast %93 : vector<1x8xf32> to vector<16x8xf32>
    %95 = arith.addf %91, %94 : vector<16x8xf32>
    %96 = vector.shape_cast %81 : vector<16x8xf32> to vector<2x8x8xf32>
    %97 = vector.shape_cast %88 : vector<16x8xf32> to vector<2x8x8xf32>
    %98 = vector.shape_cast %95 : vector<16x8xf32> to vector<2x8x8xf32>
    %c0_91 = arith.constant 0 : index
    %c3 = arith.constant 3 : index
    %c0_92 = arith.constant 0 : index
    %c0_93 = arith.constant 0 : index
    %99 = vector.load %arg4[%c0_91, %c3, %c0_92, %c0_93] : memref<2x4x32x8xbf16, #tpu.memory_space<vmem>>, vector<1x1x32x8xbf16>
    %100 = vector.shape_cast %99 : vector<1x1x32x8xbf16> to vector<32x8xbf16>
    %cst_94 = arith.constant dense<0.000000e+00> : vector<16x8xf32>
    %101 = tpu.matmul %26, %100, %cst_94 {dimension_numbers = #tpu.dot_dimension_numbers<[1], [0], [0], [1], [0, 0, 1, 1], [], []>} : vector<16x32xbf16>, vector<32x8xbf16>, vector<16x8xf32> -> vector<16x8xf32>
    %c0_95 = arith.constant 0 : index
    %c3_96 = arith.constant 3 : index
    %c0_97 = arith.constant 0 : index
    %c0_98 = arith.constant 0 : index
    %102 = vector.load %arg5[%c0_95, %c3_96, %c0_97, %c0_98] : memref<2x4x1x8xf32, #tpu.memory_space<vmem>>, vector<1x1x1x8xf32>
    %103 = vector.shape_cast %102 : vector<1x1x1x8xf32> to vector<1x8xf32>
    %104 = vector.broadcast %103 : vector<1x8xf32> to vector<16x8xf32>
    %105 = arith.addf %101, %104 : vector<16x8xf32>
    %c0_99 = arith.constant 0 : index
    %c3_100 = arith.constant 3 : index
    %c0_101 = arith.constant 0 : index
    %c0_102 = arith.constant 0 : index
    %106 = vector.load %arg6[%c0_99, %c3_100, %c0_101, %c0_102] : memref<2x4x32x8xbf16, #tpu.memory_space<vmem>>, vector<1x1x32x8xbf16>
    %107 = vector.shape_cast %106 : vector<1x1x32x8xbf16> to vector<32x8xbf16>
    %cst_103 = arith.constant dense<0.000000e+00> : vector<16x8xf32>
    %108 = tpu.matmul %26, %107, %cst_103 {dimension_numbers = #tpu.dot_dimension_numbers<[1], [0], [0], [1], [0, 0, 1, 1], [], []>} : vector<16x32xbf16>, vector<32x8xbf16>, vector<16x8xf32> -> vector<16x8xf32>
    %c0_104 = arith.constant 0 : index
    %c3_105 = arith.constant 3 : index
    %c0_106 = arith.constant 0 : index
    %c0_107 = arith.constant 0 : index
    %109 = vector.load %arg7[%c0_104, %c3_105, %c0_106, %c0_107] : memref<2x4x1x8xf32, #tpu.memory_space<vmem>>, vector<1x1x1x8xf32>
    %110 = vector.shape_cast %109 : vector<1x1x1x8xf32> to vector<1x8xf32>
    %111 = vector.broadcast %110 : vector<1x8xf32> to vector<16x8xf32>
    %112 = arith.addf %108, %111 : vector<16x8xf32>
    %c0_108 = arith.constant 0 : index
    %c3_109 = arith.constant 3 : index
    %c0_110 = arith.constant 0 : index
    %c0_111 = arith.constant 0 : index
    %113 = vector.load %arg8[%c0_108, %c3_109, %c0_110, %c0_111] : memref<2x4x32x8xbf16, #tpu.memory_space<vmem>>, vector<1x1x32x8xbf16>
    %114 = vector.shape_cast %113 : vector<1x1x32x8xbf16> to vector<32x8xbf16>
    %cst_112 = arith.constant dense<0.000000e+00> : vector<16x8xf32>
    %115 = tpu.matmul %26, %114, %cst_112 {dimension_numbers = #tpu.dot_dimension_numbers<[1], [0], [0], [1], [0, 0, 1, 1], [], []>} : vector<16x32xbf16>, vector<32x8xbf16>, vector<16x8xf32> -> vector<16x8xf32>
    %c0_113 = arith.constant 0 : index
    %c3_114 = arith.constant 3 : index
    %c0_115 = arith.constant 0 : index
    %c0_116 = arith.constant 0 : index
    %116 = vector.load %arg9[%c0_113, %c3_114, %c0_115, %c0_116] : memref<2x4x1x8xf32, #tpu.memory_space<vmem>>, vector<1x1x1x8xf32>
    %117 = vector.shape_cast %116 : vector<1x1x1x8xf32> to vector<1x8xf32>
    %118 = vector.broadcast %117 : vector<1x8xf32> to vector<16x8xf32>
    %119 = arith.addf %115, %118 : vector<16x8xf32>
    %120 = vector.shape_cast %105 : vector<16x8xf32> to vector<2x8x8xf32>
    %121 = vector.shape_cast %112 : vector<16x8xf32> to vector<2x8x8xf32>
    %122 = vector.shape_cast %119 : vector<16x8xf32> to vector<2x8x8xf32>
    %123 = tpu.concatenate %48, %72, %96, %120 in 0 : vector<2x8x8xf32>, vector<2x8x8xf32>, vector<2x8x8xf32>, vector<2x8x8xf32> -> vector<8x8x8xf32>
    %124 = tpu.concatenate %49, %73, %97, %121 in 0 : vector<2x8x8xf32>, vector<2x8x8xf32>, vector<2x8x8xf32>, vector<2x8x8xf32> -> vector<8x8x8xf32>
    %125 = tpu.concatenate %50, %74, %98, %122 in 0 : vector<2x8x8xf32>, vector<2x8x8xf32>, vector<2x8x8xf32>, vector<2x8x8xf32> -> vector<8x8x8xf32>
    %126 = arith.truncf %123 : vector<8x8x8xf32> to vector<8x8x8xbf16>
    %127 = arith.truncf %124 : vector<8x8x8xf32> to vector<8x8x8xbf16>
    "tpu.trace_start"() <{level = 10 : i32, message = "nqd,nkd->nqk"}> : () -> ()
    %cst_117 = arith.constant dense<0.000000e+00> : vector<8x8x8xf32>
    %128 = tpu.matmul %126, %127, %cst_117 {dimension_numbers = #tpu.dot_dimension_numbers<[2], [2], [1], [1], [0, 0, 0, 1, 1, 1], [0], [0]>} : vector<8x8x8xbf16>, vector<8x8x8xbf16>, vector<8x8x8xf32> -> vector<8x8x8xf32>
    "tpu.trace_stop"() : () -> ()
    %cst_118 = arith.constant 0.353553385 : f32
    %129 = vector.broadcast %cst_118 : f32 to vector<8x8x8xf32>
    %130 = arith.mulf %128, %129 : vector<8x8x8xf32>
    %131 = vector.broadcast %25 : vector<8x1x8xf32> to vector<8x8x8xf32>
    %132 = arith.addf %130, %131 : vector<8x8x8xf32>
    %cst_119 = arith.constant dense<0xFF800000> : vector<8x8xf32>
    %133 = vector.multi_reduction <maximumf>, %132, %cst_119 [2] : vector<8x8x8xf32> to vector<8x8xf32>
    %134 = vector.shape_cast %133 : vector<8x8xf32> to vector<8x8x1xf32>
    %135 = vector.broadcast %134 : vector<8x8x1xf32> to vector<8x8x8xf32>
    %136 = arith.subf %132, %135 : vector<8x8x8xf32>
    %137 = math.exp %136 : vector<8x8x8xf32>
    %cst_120 = arith.constant dense<0.000000e+00> : vector<8x8xf32>
    %138 = vector.multi_reduction <add>, %137, %cst_120 [2] : vector<8x8x8xf32> to vector<8x8xf32>
    %139 = vector.shape_cast %138 : vector<8x8xf32> to vector<8x8x1xf32>
    %140 = vector.broadcast %139 : vector<8x8x1xf32> to vector<8x8x8xf32>
    %141 = arith.divf %137, %140 : vector<8x8x8xf32>
    %142 = arith.truncf %141 : vector<8x8x8xf32> to vector<8x8x8xbf16>
    %143 = arith.truncf %125 : vector<8x8x8xf32> to vector<8x8x8xbf16>
    "tpu.trace_start"() <{level = 10 : i32, message = "nqk,nkd->nqd"}> : () -> ()
    %cst_121 = arith.constant dense<0.000000e+00> : vector<8x8x8xf32>
    %144 = tpu.matmul %142, %143, %cst_121 {dimension_numbers = #tpu.dot_dimension_numbers<[2], [1], [1], [2], [0, 0, 0, 1, 1, 2], [0], [0]>} : vector<8x8x8xbf16>, vector<8x8x8xbf16>, vector<8x8x8xf32> -> vector<8x8x8xf32>
    %cst_122 = arith.constant 0.000000e+00 : f32
    "tpu.trace_stop"() : () -> ()
    %145 = vector.broadcast %cst_122 : f32 to vector<16x32xf32>
    %146 = vector.extract_strided_slice %144 {offsets = [0, 0, 0], sizes = [2, 8, 8], strides = [1, 1, 1]} : vector<8x8x8xf32> to vector<2x8x8xf32>
    %147 = vector.shape_cast %146 : vector<2x8x8xf32> to vector<16x8xf32>
    %148 = arith.truncf %147 : vector<16x8xf32> to vector<16x8xbf16>
    %c0_123 = arith.constant 0 : index
    %c0_124 = arith.constant 0 : index
    %c0_125 = arith.constant 0 : index
    %c0_126 = arith.constant 0 : index
    %149 = vector.load %arg10[%c0_123, %c0_124, %c0_125, %c0_126] : memref<2x4x8x32xbf16, #tpu.memory_space<vmem>>, vector<1x1x8x32xbf16>
    %150 = vector.shape_cast %149 : vector<1x1x8x32xbf16> to vector<8x32xbf16>
    %cst_127 = arith.constant dense<0.000000e+00> : vector<16x32xf32>
    %151 = tpu.matmul %148, %150, %cst_127 {dimension_numbers = #tpu.dot_dimension_numbers<[1], [0], [0], [1], [0, 0, 1, 1], [], []>} : vector<16x8xbf16>, vector<8x32xbf16>, vector<16x32xf32> -> vector<16x32xf32>
    %152 = arith.addf %145, %151 : vector<16x32xf32>
    %153 = vector.extract_strided_slice %144 {offsets = [2, 0, 0], sizes = [2, 8, 8], strides = [1, 1, 1]} : vector<8x8x8xf32> to vector<2x8x8xf32>
    %154 = vector.shape_cast %153 : vector<2x8x8xf32> to vector<16x8xf32>
    %155 = arith.truncf %154 : vector<16x8xf32> to vector<16x8xbf16>
    %c0_128 = arith.constant 0 : index
    %c1_129 = arith.constant 1 : index
    %c0_130 = arith.constant 0 : index
    %c0_131 = arith.constant 0 : index
    %156 = vector.load %arg10[%c0_128, %c1_129, %c0_130, %c0_131] : memref<2x4x8x32xbf16, #tpu.memory_space<vmem>>, vector<1x1x8x32xbf16>
    %157 = vector.shape_cast %156 : vector<1x1x8x32xbf16> to vector<8x32xbf16>
    %cst_132 = arith.constant dense<0.000000e+00> : vector<16x32xf32>
    %158 = tpu.matmul %155, %157, %cst_132 {dimension_numbers = #tpu.dot_dimension_numbers<[1], [0], [0], [1], [0, 0, 1, 1], [], []>} : vector<16x8xbf16>, vector<8x32xbf16>, vector<16x32xf32> -> vector<16x32xf32>
    %159 = arith.addf %152, %158 : vector<16x32xf32>
    %160 = vector.extract_strided_slice %144 {offsets = [4, 0, 0], sizes = [2, 8, 8], strides = [1, 1, 1]} : vector<8x8x8xf32> to vector<2x8x8xf32>
    %161 = vector.shape_cast %160 : vector<2x8x8xf32> to vector<16x8xf32>
    %162 = arith.truncf %161 : vector<16x8xf32> to vector<16x8xbf16>
    %c0_133 = arith.constant 0 : index
    %c2_134 = arith.constant 2 : index
    %c0_135 = arith.constant 0 : index
    %c0_136 = arith.constant 0 : index
    %163 = vector.load %arg10[%c0_133, %c2_134, %c0_135, %c0_136] : memref<2x4x8x32xbf16, #tpu.memory_space<vmem>>, vector<1x1x8x32xbf16>
    %164 = vector.shape_cast %163 : vector<1x1x8x32xbf16> to vector<8x32xbf16>
    %cst_137 = arith.constant dense<0.000000e+00> : vector<16x32xf32>
    %165 = tpu.matmul %162, %164, %cst_137 {dimension_numbers = #tpu.dot_dimension_numbers<[1], [0], [0], [1], [0, 0, 1, 1], [], []>} : vector<16x8xbf16>, vector<8x32xbf16>, vector<16x32xf32> -> vector<16x32xf32>
    %166 = arith.addf %159, %165 : vector<16x32xf32>
    %167 = vector.extract_strided_slice %144 {offsets = [6, 0, 0], sizes = [2, 8, 8], strides = [1, 1, 1]} : vector<8x8x8xf32> to vector<2x8x8xf32>
    %168 = vector.shape_cast %167 : vector<2x8x8xf32> to vector<16x8xf32>
    %169 = arith.truncf %168 : vector<16x8xf32> to vector<16x8xbf16>
    %c0_138 = arith.constant 0 : index
    %c3_139 = arith.constant 3 : index
    %c0_140 = arith.constant 0 : index
    %c0_141 = arith.constant 0 : index
    %170 = vector.load %arg10[%c0_138, %c3_139, %c0_140, %c0_141] : memref<2x4x8x32xbf16, #tpu.memory_space<vmem>>, vector<1x1x8x32xbf16>
    %171 = vector.shape_cast %170 : vector<1x1x8x32xbf16> to vector<8x32xbf16>
    %cst_142 = arith.constant dense<0.000000e+00> : vector<16x32xf32>
    %172 = tpu.matmul %169, %171, %cst_142 {dimension_numbers = #tpu.dot_dimension_numbers<[1], [0], [0], [1], [0, 0, 1, 1], [], []>} : vector<16x8xbf16>, vector<8x32xbf16>, vector<16x32xf32> -> vector<16x32xf32>
    %173 = arith.addf %166, %172 : vector<16x32xf32>
    %c0_143 = arith.constant 0 : index
    %c0_144 = arith.constant 0 : index
    %c0_145 = arith.constant 0 : index
    %174 = vector.load %arg11[%c0_143, %c0_144, %c0_145] : memref<2x1x32xf32, #tpu.memory_space<vmem>>, vector<1x1x32xf32>
    %175 = vector.shape_cast %174 : vector<1x1x32xf32> to vector<1x32xf32>
    %176 = vector.broadcast %175 : vector<1x32xf32> to vector<16x32xf32>
    %177 = arith.addf %173, %176 : vector<16x32xf32>
    %178 = arith.addf %177, %24 : vector<16x32xf32>
    %c0_146 = arith.constant 0 : index
    %c0_147 = arith.constant 0 : index
    %c0_148 = arith.constant 0 : index
    %179 = vector.load %arg16[%c0_146, %c0_147, %c0_148] : memref<2x1x32xf32, #tpu.memory_space<vmem>>, vector<1x1x32xf32>
    %180 = vector.shape_cast %179 : vector<1x1x32xf32> to vector<1x32xf32>
    %c0_149 = arith.constant 0 : index
    %c0_150 = arith.constant 0 : index
    %c0_151 = arith.constant 0 : index
    %181 = vector.load %arg17[%c0_149, %c0_150, %c0_151] : memref<2x1x32xf32, #tpu.memory_space<vmem>>, vector<1x1x32xf32>
    %182 = vector.shape_cast %181 : vector<1x1x32xf32> to vector<1x32xf32>
    %cst_152 = arith.constant dense<0.000000e+00> : vector<16xf32>
    %183 = vector.multi_reduction <add>, %178, %cst_152 [1] : vector<16x32xf32> to vector<16xf32>
    %184 = vector.shape_cast %183 : vector<16xf32> to vector<16x1xf32>
    %cst_153 = arith.constant 3.200000e+01 : f32
    %185 = vector.broadcast %cst_153 : f32 to vector<16x1xf32>
    %186 = arith.divf %184, %185 : vector<16x1xf32>
    %187 = vector.broadcast %186 : vector<16x1xf32> to vector<16x32xf32>
    %188 = arith.subf %178, %187 : vector<16x32xf32>
    %189 = arith.mulf %188, %188 : vector<16x32xf32>
    %cst_154 = arith.constant dense<0.000000e+00> : vector<16xf32>
    %190 = vector.multi_reduction <add>, %189, %cst_154 [1] : vector<16x32xf32> to vector<16xf32>
    %191 = vector.shape_cast %190 : vector<16xf32> to vector<16x1xf32>
    %cst_155 = arith.constant 3.200000e+01 : f32
    %192 = vector.broadcast %cst_155 : f32 to vector<16x1xf32>
    %193 = arith.divf %191, %192 : vector<16x1xf32>
    %194 = vector.broadcast %186 : vector<16x1xf32> to vector<16x32xf32>
    %195 = arith.subf %178, %194 : vector<16x32xf32>
    %cst_156 = arith.constant 9.99999996E-13 : f32
    %196 = vector.broadcast %cst_156 : f32 to vector<16x1xf32>
    %197 = arith.addf %193, %196 : vector<16x1xf32>
    %198 = math.rsqrt %197 : vector<16x1xf32>
    %199 = vector.broadcast %198 : vector<16x1xf32> to vector<16x32xf32>
    %200 = arith.mulf %195, %199 : vector<16x32xf32>
    %201 = vector.broadcast %180 : vector<1x32xf32> to vector<16x32xf32>
    %202 = arith.mulf %200, %201 : vector<16x32xf32>
    %203 = vector.broadcast %182 : vector<1x32xf32> to vector<16x32xf32>
    %204 = arith.addf %202, %203 : vector<16x32xf32>
    %205 = arith.truncf %204 : vector<16x32xf32> to vector<16x32xbf16>
    %c0_157 = arith.constant 0 : index
    %c0_158 = arith.constant 0 : index
    %c0_159 = arith.constant 0 : index
    %206 = vector.load %arg12[%c0_157, %c0_158, %c0_159] : memref<2x32x64xbf16, #tpu.memory_space<vmem>>, vector<1x32x64xbf16>
    %207 = vector.shape_cast %206 : vector<1x32x64xbf16> to vector<32x64xbf16>
    %cst_160 = arith.constant dense<0.000000e+00> : vector<16x64xf32>
    %208 = tpu.matmul %205, %207, %cst_160 {dimension_numbers = #tpu.dot_dimension_numbers<[1], [0], [0], [1], [0, 0, 1, 1], [], []>} : vector<16x32xbf16>, vector<32x64xbf16>, vector<16x64xf32> -> vector<16x64xf32>
    %c0_161 = arith.constant 0 : index
    %c0_162 = arith.constant 0 : index
    %c0_163 = arith.constant 0 : index
    %209 = vector.load %arg13[%c0_161, %c0_162, %c0_163] : memref<2x1x64xf32, #tpu.memory_space<vmem>>, vector<1x1x64xf32>
    %210 = vector.shape_cast %209 : vector<1x1x64xf32> to vector<1x64xf32>
    %211 = vector.broadcast %210 : vector<1x64xf32> to vector<16x64xf32>
    %212 = arith.addf %208, %211 : vector<16x64xf32>
    %cst_164 = arith.constant 5.000000e-01 : f32
    %213 = vector.broadcast %cst_164 : f32 to vector<16x64xf32>
    %214 = arith.mulf %213, %212 : vector<16x64xf32>
    %cst_165 = arith.constant 4.471500e-02 : f32
    %215 = vector.broadcast %cst_165 : f32 to vector<16x64xf32>
    %216 = arith.mulf %215, %212 : vector<16x64xf32>
    %217 = arith.mulf %216, %212 : vector<16x64xf32>
    %218 = arith.mulf %217, %212 : vector<16x64xf32>
    %219 = arith.addf %212, %218 : vector<16x64xf32>
    %cst_166 = arith.constant 0.797884583 : f32
    %220 = vector.broadcast %cst_166 : f32 to vector<16x64xf32>
    %221 = arith.mulf %220, %219 : vector<16x64xf32>
    %222 = math.tanh %221 : vector<16x64xf32>
    %cst_167 = arith.constant 1.000000e+00 : f32
    %223 = vector.broadcast %cst_167 : f32 to vector<16x64xf32>
    %224 = arith.addf %223, %222 : vector<16x64xf32>
    %225 = arith.mulf %214, %224 : vector<16x64xf32>
    %226 = arith.truncf %225 : vector<16x64xf32> to vector<16x64xbf16>
    %c0_168 = arith.constant 0 : index
    %c0_169 = arith.constant 0 : index
    %c0_170 = arith.constant 0 : index
    %227 = vector.load %arg14[%c0_168, %c0_169, %c0_170] : memref<2x64x32xbf16, #tpu.memory_space<vmem>>, vector<1x64x32xbf16>
    %228 = vector.shape_cast %227 : vector<1x64x32xbf16> to vector<64x32xbf16>
    %cst_171 = arith.constant dense<0.000000e+00> : vector<16x32xf32>
    %229 = tpu.matmul %226, %228, %cst_171 {dimension_numbers = #tpu.dot_dimension_numbers<[1], [0], [0], [1], [0, 0, 1, 1], [], []>} : vector<16x64xbf16>, vector<64x32xbf16>, vector<16x32xf32> -> vector<16x32xf32>
    %c0_172 = arith.constant 0 : index
    %c0_173 = arith.constant 0 : index
    %c0_174 = arith.constant 0 : index
    %230 = vector.load %arg15[%c0_172, %c0_173, %c0_174] : memref<2x1x32xf32, #tpu.memory_space<vmem>>, vector<1x1x32xf32>
    %231 = vector.shape_cast %230 : vector<1x1x32xf32> to vector<1x32xf32>
    %232 = vector.broadcast %231 : vector<1x32xf32> to vector<16x32xf32>
    %233 = arith.addf %229, %232 : vector<16x32xf32>
    %234 = arith.addf %233, %204 : vector<16x32xf32>
    %c0_175 = arith.constant 0 : index
    %c0_176 = arith.constant 0 : index
    %c0_177 = arith.constant 0 : index
    %235 = vector.load %arg18[%c0_175, %c0_176, %c0_177] : memref<2x1x32xf32, #tpu.memory_space<vmem>>, vector<1x1x32xf32>
    %236 = vector.shape_cast %235 : vector<1x1x32xf32> to vector<1x32xf32>
    %c0_178 = arith.constant 0 : index
    %c0_179 = arith.constant 0 : index
    %c0_180 = arith.constant 0 : index
    %237 = vector.load %arg19[%c0_178, %c0_179, %c0_180] : memref<2x1x32xf32, #tpu.memory_space<vmem>>, vector<1x1x32xf32>
    %238 = vector.shape_cast %237 : vector<1x1x32xf32> to vector<1x32xf32>
    %cst_181 = arith.constant dense<0.000000e+00> : vector<16xf32>
    %239 = vector.multi_reduction <add>, %234, %cst_181 [1] : vector<16x32xf32> to vector<16xf32>
    %240 = vector.shape_cast %239 : vector<16xf32> to vector<16x1xf32>
    %cst_182 = arith.constant 3.200000e+01 : f32
    %241 = vector.broadcast %cst_182 : f32 to vector<16x1xf32>
    %242 = arith.divf %240, %241 : vector<16x1xf32>
    %243 = vector.broadcast %242 : vector<16x1xf32> to vector<16x32xf32>
    %244 = arith.subf %234, %243 : vector<16x32xf32>
    %245 = arith.mulf %244, %244 : vector<16x32xf32>
    %cst_183 = arith.constant dense<0.000000e+00> : vector<16xf32>
    %246 = vector.multi_reduction <add>, %245, %cst_183 [1] : vector<16x32xf32> to vector<16xf32>
    %247 = vector.shape_cast %246 : vector<16xf32> to vector<16x1xf32>
    %cst_184 = arith.constant 3.200000e+01 : f32
    %248 = vector.broadcast %cst_184 : f32 to vector<16x1xf32>
    %249 = arith.divf %247, %248 : vector<16x1xf32>
    %250 = vector.broadcast %242 : vector<16x1xf32> to vector<16x32xf32>
    %251 = arith.subf %234, %250 : vector<16x32xf32>
    %cst_185 = arith.constant 9.99999996E-13 : f32
    %252 = vector.broadcast %cst_185 : f32 to vector<16x1xf32>
    %253 = arith.addf %249, %252 : vector<16x1xf32>
    %254 = math.rsqrt %253 : vector<16x1xf32>
    %255 = vector.broadcast %254 : vector<16x1xf32> to vector<16x32xf32>
    %256 = arith.mulf %251, %255 : vector<16x32xf32>
    %257 = vector.broadcast %236 : vector<1x32xf32> to vector<16x32xf32>
    %258 = arith.mulf %256, %257 : vector<16x32xf32>
    %259 = vector.broadcast %238 : vector<1x32xf32> to vector<16x32xf32>
    %260 = arith.addf %258, %259 : vector<16x32xf32>
    %261 = arith.truncf %260 : vector<16x32xf32> to vector<16x32xbf16>
    %c1_186 = arith.constant 1 : index
    %c0_187 = arith.constant 0 : index
    %c0_188 = arith.constant 0 : index
    %c0_189 = arith.constant 0 : index
    %262 = vector.load %arg4[%c1_186, %c0_187, %c0_188, %c0_189] : memref<2x4x32x8xbf16, #tpu.memory_space<vmem>>, vector<1x1x32x8xbf16>
    %263 = vector.shape_cast %262 : vector<1x1x32x8xbf16> to vector<32x8xbf16>
    %cst_190 = arith.constant dense<0.000000e+00> : vector<16x8xf32>
    %264 = tpu.matmul %261, %263, %cst_190 {dimension_numbers = #tpu.dot_dimension_numbers<[1], [0], [0], [1], [0, 0, 1, 1], [], []>} : vector<16x32xbf16>, vector<32x8xbf16>, vector<16x8xf32> -> vector<16x8xf32>
    %c1_191 = arith.constant 1 : index
    %c0_192 = arith.constant 0 : index
    %c0_193 = arith.constant 0 : index
    %c0_194 = arith.constant 0 : index
    %265 = vector.load %arg5[%c1_191, %c0_192, %c0_193, %c0_194] : memref<2x4x1x8xf32, #tpu.memory_space<vmem>>, vector<1x1x1x8xf32>
    %266 = vector.shape_cast %265 : vector<1x1x1x8xf32> to vector<1x8xf32>
    %267 = vector.broadcast %266 : vector<1x8xf32> to vector<16x8xf32>
    %268 = arith.addf %264, %267 : vector<16x8xf32>
    %c1_195 = arith.constant 1 : index
    %c0_196 = arith.constant 0 : index
    %c0_197 = arith.constant 0 : index
    %c0_198 = arith.constant 0 : index
    %269 = vector.load %arg6[%c1_195, %c0_196, %c0_197, %c0_198] : memref<2x4x32x8xbf16, #tpu.memory_space<vmem>>, vector<1x1x32x8xbf16>
    %270 = vector.shape_cast %269 : vector<1x1x32x8xbf16> to vector<32x8xbf16>
    %cst_199 = arith.constant dense<0.000000e+00> : vector<16x8xf32>
    %271 = tpu.matmul %261, %270, %cst_199 {dimension_numbers = #tpu.dot_dimension_numbers<[1], [0], [0], [1], [0, 0, 1, 1], [], []>} : vector<16x32xbf16>, vector<32x8xbf16>, vector<16x8xf32> -> vector<16x8xf32>
    %c1_200 = arith.constant 1 : index
    %c0_201 = arith.constant 0 : index
    %c0_202 = arith.constant 0 : index
    %c0_203 = arith.constant 0 : index
    %272 = vector.load %arg7[%c1_200, %c0_201, %c0_202, %c0_203] : memref<2x4x1x8xf32, #tpu.memory_space<vmem>>, vector<1x1x1x8xf32>
    %273 = vector.shape_cast %272 : vector<1x1x1x8xf32> to vector<1x8xf32>
    %274 = vector.broadcast %273 : vector<1x8xf32> to vector<16x8xf32>
    %275 = arith.addf %271, %274 : vector<16x8xf32>
    %c1_204 = arith.constant 1 : index
    %c0_205 = arith.constant 0 : index
    %c0_206 = arith.constant 0 : index
    %c0_207 = arith.constant 0 : index
    %276 = vector.load %arg8[%c1_204, %c0_205, %c0_206, %c0_207] : memref<2x4x32x8xbf16, #tpu.memory_space<vmem>>, vector<1x1x32x8xbf16>
    %277 = vector.shape_cast %276 : vector<1x1x32x8xbf16> to vector<32x8xbf16>
    %cst_208 = arith.constant dense<0.000000e+00> : vector<16x8xf32>
    %278 = tpu.matmul %261, %277, %cst_208 {dimension_numbers = #tpu.dot_dimension_numbers<[1], [0], [0], [1], [0, 0, 1, 1], [], []>} : vector<16x32xbf16>, vector<32x8xbf16>, vector<16x8xf32> -> vector<16x8xf32>
    %c1_209 = arith.constant 1 : index
    %c0_210 = arith.constant 0 : index
    %c0_211 = arith.constant 0 : index
    %c0_212 = arith.constant 0 : index
    %279 = vector.load %arg9[%c1_209, %c0_210, %c0_211, %c0_212] : memref<2x4x1x8xf32, #tpu.memory_space<vmem>>, vector<1x1x1x8xf32>
    %280 = vector.shape_cast %279 : vector<1x1x1x8xf32> to vector<1x8xf32>
    %281 = vector.broadcast %280 : vector<1x8xf32> to vector<16x8xf32>
    %282 = arith.addf %278, %281 : vector<16x8xf32>
    %283 = vector.shape_cast %268 : vector<16x8xf32> to vector<2x8x8xf32>
    %284 = vector.shape_cast %275 : vector<16x8xf32> to vector<2x8x8xf32>
    %285 = vector.shape_cast %282 : vector<16x8xf32> to vector<2x8x8xf32>
    %c1_213 = arith.constant 1 : index
    %c1_214 = arith.constant 1 : index
    %c0_215 = arith.constant 0 : index
    %c0_216 = arith.constant 0 : index
    %286 = vector.load %arg4[%c1_213, %c1_214, %c0_215, %c0_216] : memref<2x4x32x8xbf16, #tpu.memory_space<vmem>>, vector<1x1x32x8xbf16>
    %287 = vector.shape_cast %286 : vector<1x1x32x8xbf16> to vector<32x8xbf16>
    %cst_217 = arith.constant dense<0.000000e+00> : vector<16x8xf32>
    %288 = tpu.matmul %261, %287, %cst_217 {dimension_numbers = #tpu.dot_dimension_numbers<[1], [0], [0], [1], [0, 0, 1, 1], [], []>} : vector<16x32xbf16>, vector<32x8xbf16>, vector<16x8xf32> -> vector<16x8xf32>
    %c1_218 = arith.constant 1 : index
    %c1_219 = arith.constant 1 : index
    %c0_220 = arith.constant 0 : index
    %c0_221 = arith.constant 0 : index
    %289 = vector.load %arg5[%c1_218, %c1_219, %c0_220, %c0_221] : memref<2x4x1x8xf32, #tpu.memory_space<vmem>>, vector<1x1x1x8xf32>
    %290 = vector.shape_cast %289 : vector<1x1x1x8xf32> to vector<1x8xf32>
    %291 = vector.broadcast %290 : vector<1x8xf32> to vector<16x8xf32>
    %292 = arith.addf %288, %291 : vector<16x8xf32>
    %c1_222 = arith.constant 1 : index
    %c1_223 = arith.constant 1 : index
    %c0_224 = arith.constant 0 : index
    %c0_225 = arith.constant 0 : index
    %293 = vector.load %arg6[%c1_222, %c1_223, %c0_224, %c0_225] : memref<2x4x32x8xbf16, #tpu.memory_space<vmem>>, vector<1x1x32x8xbf16>
    %294 = vector.shape_cast %293 : vector<1x1x32x8xbf16> to vector<32x8xbf16>
    %cst_226 = arith.constant dense<0.000000e+00> : vector<16x8xf32>
    %295 = tpu.matmul %261, %294, %cst_226 {dimension_numbers = #tpu.dot_dimension_numbers<[1], [0], [0], [1], [0, 0, 1, 1], [], []>} : vector<16x32xbf16>, vector<32x8xbf16>, vector<16x8xf32> -> vector<16x8xf32>
    %c1_227 = arith.constant 1 : index
    %c1_228 = arith.constant 1 : index
    %c0_229 = arith.constant 0 : index
    %c0_230 = arith.constant 0 : index
    %296 = vector.load %arg7[%c1_227, %c1_228, %c0_229, %c0_230] : memref<2x4x1x8xf32, #tpu.memory_space<vmem>>, vector<1x1x1x8xf32>
    %297 = vector.shape_cast %296 : vector<1x1x1x8xf32> to vector<1x8xf32>
    %298 = vector.broadcast %297 : vector<1x8xf32> to vector<16x8xf32>
    %299 = arith.addf %295, %298 : vector<16x8xf32>
    %c1_231 = arith.constant 1 : index
    %c1_232 = arith.constant 1 : index
    %c0_233 = arith.constant 0 : index
    %c0_234 = arith.constant 0 : index
    %300 = vector.load %arg8[%c1_231, %c1_232, %c0_233, %c0_234] : memref<2x4x32x8xbf16, #tpu.memory_space<vmem>>, vector<1x1x32x8xbf16>
    %301 = vector.shape_cast %300 : vector<1x1x32x8xbf16> to vector<32x8xbf16>
    %cst_235 = arith.constant dense<0.000000e+00> : vector<16x8xf32>
    %302 = tpu.matmul %261, %301, %cst_235 {dimension_numbers = #tpu.dot_dimension_numbers<[1], [0], [0], [1], [0, 0, 1, 1], [], []>} : vector<16x32xbf16>, vector<32x8xbf16>, vector<16x8xf32> -> vector<16x8xf32>
    %c1_236 = arith.constant 1 : index
    %c1_237 = arith.constant 1 : index
    %c0_238 = arith.constant 0 : index
    %c0_239 = arith.constant 0 : index
    %303 = vector.load %arg9[%c1_236, %c1_237, %c0_238, %c0_239] : memref<2x4x1x8xf32, #tpu.memory_space<vmem>>, vector<1x1x1x8xf32>
    %304 = vector.shape_cast %303 : vector<1x1x1x8xf32> to vector<1x8xf32>
    %305 = vector.broadcast %304 : vector<1x8xf32> to vector<16x8xf32>
    %306 = arith.addf %302, %305 : vector<16x8xf32>
    %307 = vector.shape_cast %292 : vector<16x8xf32> to vector<2x8x8xf32>
    %308 = vector.shape_cast %299 : vector<16x8xf32> to vector<2x8x8xf32>
    %309 = vector.shape_cast %306 : vector<16x8xf32> to vector<2x8x8xf32>
    %c1_240 = arith.constant 1 : index
    %c2_241 = arith.constant 2 : index
    %c0_242 = arith.constant 0 : index
    %c0_243 = arith.constant 0 : index
    %310 = vector.load %arg4[%c1_240, %c2_241, %c0_242, %c0_243] : memref<2x4x32x8xbf16, #tpu.memory_space<vmem>>, vector<1x1x32x8xbf16>
    %311 = vector.shape_cast %310 : vector<1x1x32x8xbf16> to vector<32x8xbf16>
    %cst_244 = arith.constant dense<0.000000e+00> : vector<16x8xf32>
    %312 = tpu.matmul %261, %311, %cst_244 {dimension_numbers = #tpu.dot_dimension_numbers<[1], [0], [0], [1], [0, 0, 1, 1], [], []>} : vector<16x32xbf16>, vector<32x8xbf16>, vector<16x8xf32> -> vector<16x8xf32>
    %c1_245 = arith.constant 1 : index
    %c2_246 = arith.constant 2 : index
    %c0_247 = arith.constant 0 : index
    %c0_248 = arith.constant 0 : index
    %313 = vector.load %arg5[%c1_245, %c2_246, %c0_247, %c0_248] : memref<2x4x1x8xf32, #tpu.memory_space<vmem>>, vector<1x1x1x8xf32>
    %314 = vector.shape_cast %313 : vector<1x1x1x8xf32> to vector<1x8xf32>
    %315 = vector.broadcast %314 : vector<1x8xf32> to vector<16x8xf32>
    %316 = arith.addf %312, %315 : vector<16x8xf32>
    %c1_249 = arith.constant 1 : index
    %c2_250 = arith.constant 2 : index
    %c0_251 = arith.constant 0 : index
    %c0_252 = arith.constant 0 : index
    %317 = vector.load %arg6[%c1_249, %c2_250, %c0_251, %c0_252] : memref<2x4x32x8xbf16, #tpu.memory_space<vmem>>, vector<1x1x32x8xbf16>
    %318 = vector.shape_cast %317 : vector<1x1x32x8xbf16> to vector<32x8xbf16>
    %cst_253 = arith.constant dense<0.000000e+00> : vector<16x8xf32>
    %319 = tpu.matmul %261, %318, %cst_253 {dimension_numbers = #tpu.dot_dimension_numbers<[1], [0], [0], [1], [0, 0, 1, 1], [], []>} : vector<16x32xbf16>, vector<32x8xbf16>, vector<16x8xf32> -> vector<16x8xf32>
    %c1_254 = arith.constant 1 : index
    %c2_255 = arith.constant 2 : index
    %c0_256 = arith.constant 0 : index
    %c0_257 = arith.constant 0 : index
    %320 = vector.load %arg7[%c1_254, %c2_255, %c0_256, %c0_257] : memref<2x4x1x8xf32, #tpu.memory_space<vmem>>, vector<1x1x1x8xf32>
    %321 = vector.shape_cast %320 : vector<1x1x1x8xf32> to vector<1x8xf32>
    %322 = vector.broadcast %321 : vector<1x8xf32> to vector<16x8xf32>
    %323 = arith.addf %319, %322 : vector<16x8xf32>
    %c1_258 = arith.constant 1 : index
    %c2_259 = arith.constant 2 : index
    %c0_260 = arith.constant 0 : index
    %c0_261 = arith.constant 0 : index
    %324 = vector.load %arg8[%c1_258, %c2_259, %c0_260, %c0_261] : memref<2x4x32x8xbf16, #tpu.memory_space<vmem>>, vector<1x1x32x8xbf16>
    %325 = vector.shape_cast %324 : vector<1x1x32x8xbf16> to vector<32x8xbf16>
    %cst_262 = arith.constant dense<0.000000e+00> : vector<16x8xf32>
    %326 = tpu.matmul %261, %325, %cst_262 {dimension_numbers = #tpu.dot_dimension_numbers<[1], [0], [0], [1], [0, 0, 1, 1], [], []>} : vector<16x32xbf16>, vector<32x8xbf16>, vector<16x8xf32> -> vector<16x8xf32>
    %c1_263 = arith.constant 1 : index
    %c2_264 = arith.constant 2 : index
    %c0_265 = arith.constant 0 : index
    %c0_266 = arith.constant 0 : index
    %327 = vector.load %arg9[%c1_263, %c2_264, %c0_265, %c0_266] : memref<2x4x1x8xf32, #tpu.memory_space<vmem>>, vector<1x1x1x8xf32>
    %328 = vector.shape_cast %327 : vector<1x1x1x8xf32> to vector<1x8xf32>
    %329 = vector.broadcast %328 : vector<1x8xf32> to vector<16x8xf32>
    %330 = arith.addf %326, %329 : vector<16x8xf32>
    %331 = vector.shape_cast %316 : vector<16x8xf32> to vector<2x8x8xf32>
    %332 = vector.shape_cast %323 : vector<16x8xf32> to vector<2x8x8xf32>
    %333 = vector.shape_cast %330 : vector<16x8xf32> to vector<2x8x8xf32>
    %c1_267 = arith.constant 1 : index
    %c3_268 = arith.constant 3 : index
    %c0_269 = arith.constant 0 : index
    %c0_270 = arith.constant 0 : index
    %334 = vector.load %arg4[%c1_267, %c3_268, %c0_269, %c0_270] : memref<2x4x32x8xbf16, #tpu.memory_space<vmem>>, vector<1x1x32x8xbf16>
    %335 = vector.shape_cast %334 : vector<1x1x32x8xbf16> to vector<32x8xbf16>
    %cst_271 = arith.constant dense<0.000000e+00> : vector<16x8xf32>
    %336 = tpu.matmul %261, %335, %cst_271 {dimension_numbers = #tpu.dot_dimension_numbers<[1], [0], [0], [1], [0, 0, 1, 1], [], []>} : vector<16x32xbf16>, vector<32x8xbf16>, vector<16x8xf32> -> vector<16x8xf32>
    %c1_272 = arith.constant 1 : index
    %c3_273 = arith.constant 3 : index
    %c0_274 = arith.constant 0 : index
    %c0_275 = arith.constant 0 : index
    %337 = vector.load %arg5[%c1_272, %c3_273, %c0_274, %c0_275] : memref<2x4x1x8xf32, #tpu.memory_space<vmem>>, vector<1x1x1x8xf32>
    %338 = vector.shape_cast %337 : vector<1x1x1x8xf32> to vector<1x8xf32>
    %339 = vector.broadcast %338 : vector<1x8xf32> to vector<16x8xf32>
    %340 = arith.addf %336, %339 : vector<16x8xf32>
    %c1_276 = arith.constant 1 : index
    %c3_277 = arith.constant 3 : index
    %c0_278 = arith.constant 0 : index
    %c0_279 = arith.constant 0 : index
    %341 = vector.load %arg6[%c1_276, %c3_277, %c0_278, %c0_279] : memref<2x4x32x8xbf16, #tpu.memory_space<vmem>>, vector<1x1x32x8xbf16>
    %342 = vector.shape_cast %341 : vector<1x1x32x8xbf16> to vector<32x8xbf16>
    %cst_280 = arith.constant dense<0.000000e+00> : vector<16x8xf32>
    %343 = tpu.matmul %261, %342, %cst_280 {dimension_numbers = #tpu.dot_dimension_numbers<[1], [0], [0], [1], [0, 0, 1, 1], [], []>} : vector<16x32xbf16>, vector<32x8xbf16>, vector<16x8xf32> -> vector<16x8xf32>
    %c1_281 = arith.constant 1 : index
    %c3_282 = arith.constant 3 : index
    %c0_283 = arith.constant 0 : index
    %c0_284 = arith.constant 0 : index
    %344 = vector.load %arg7[%c1_281, %c3_282, %c0_283, %c0_284] : memref<2x4x1x8xf32, #tpu.memory_space<vmem>>, vector<1x1x1x8xf32>
    %345 = vector.shape_cast %344 : vector<1x1x1x8xf32> to vector<1x8xf32>
    %346 = vector.broadcast %345 : vector<1x8xf32> to vector<16x8xf32>
    %347 = arith.addf %343, %346 : vector<16x8xf32>
    %c1_285 = arith.constant 1 : index
    %c3_286 = arith.constant 3 : index
    %c0_287 = arith.constant 0 : index
    %c0_288 = arith.constant 0 : index
    %348 = vector.load %arg8[%c1_285, %c3_286, %c0_287, %c0_288] : memref<2x4x32x8xbf16, #tpu.memory_space<vmem>>, vector<1x1x32x8xbf16>
    %349 = vector.shape_cast %348 : vector<1x1x32x8xbf16> to vector<32x8xbf16>
    %cst_289 = arith.constant dense<0.000000e+00> : vector<16x8xf32>
    %350 = tpu.matmul %261, %349, %cst_289 {dimension_numbers = #tpu.dot_dimension_numbers<[1], [0], [0], [1], [0, 0, 1, 1], [], []>} : vector<16x32xbf16>, vector<32x8xbf16>, vector<16x8xf32> -> vector<16x8xf32>
    %c1_290 = arith.constant 1 : index
    %c3_291 = arith.constant 3 : index
    %c0_292 = arith.constant 0 : index
    %c0_293 = arith.constant 0 : index
    %351 = vector.load %arg9[%c1_290, %c3_291, %c0_292, %c0_293] : memref<2x4x1x8xf32, #tpu.memory_space<vmem>>, vector<1x1x1x8xf32>
    %352 = vector.shape_cast %351 : vector<1x1x1x8xf32> to vector<1x8xf32>
    %353 = vector.broadcast %352 : vector<1x8xf32> to vector<16x8xf32>
    %354 = arith.addf %350, %353 : vector<16x8xf32>
    %355 = vector.shape_cast %340 : vector<16x8xf32> to vector<2x8x8xf32>
    %356 = vector.shape_cast %347 : vector<16x8xf32> to vector<2x8x8xf32>
    %357 = vector.shape_cast %354 : vector<16x8xf32> to vector<2x8x8xf32>
    %358 = tpu.concatenate %283, %307, %331, %355 in 0 : vector<2x8x8xf32>, vector<2x8x8xf32>, vector<2x8x8xf32>, vector<2x8x8xf32> -> vector<8x8x8xf32>
    %359 = tpu.concatenate %284, %308, %332, %356 in 0 : vector<2x8x8xf32>, vector<2x8x8xf32>, vector<2x8x8xf32>, vector<2x8x8xf32> -> vector<8x8x8xf32>
    %360 = tpu.concatenate %285, %309, %333, %357 in 0 : vector<2x8x8xf32>, vector<2x8x8xf32>, vector<2x8x8xf32>, vector<2x8x8xf32> -> vector<8x8x8xf32>
    %361 = arith.truncf %358 : vector<8x8x8xf32> to vector<8x8x8xbf16>
    %362 = arith.truncf %359 : vector<8x8x8xf32> to vector<8x8x8xbf16>
    "tpu.trace_start"() <{level = 10 : i32, message = "nqd,nkd->nqk"}> : () -> ()
    %cst_294 = arith.constant dense<0.000000e+00> : vector<8x8x8xf32>
    %363 = tpu.matmul %361, %362, %cst_294 {dimension_numbers = #tpu.dot_dimension_numbers<[2], [2], [1], [1], [0, 0, 0, 1, 1, 1], [0], [0]>} : vector<8x8x8xbf16>, vector<8x8x8xbf16>, vector<8x8x8xf32> -> vector<8x8x8xf32>
    "tpu.trace_stop"() : () -> ()
    %cst_295 = arith.constant 0.353553385 : f32
    %364 = vector.broadcast %cst_295 : f32 to vector<8x8x8xf32>
    %365 = arith.mulf %363, %364 : vector<8x8x8xf32>
    %366 = vector.broadcast %25 : vector<8x1x8xf32> to vector<8x8x8xf32>
    %367 = arith.addf %365, %366 : vector<8x8x8xf32>
    %cst_296 = arith.constant dense<0xFF800000> : vector<8x8xf32>
    %368 = vector.multi_reduction <maximumf>, %367, %cst_296 [2] : vector<8x8x8xf32> to vector<8x8xf32>
    %369 = vector.shape_cast %368 : vector<8x8xf32> to vector<8x8x1xf32>
    %370 = vector.broadcast %369 : vector<8x8x1xf32> to vector<8x8x8xf32>
    %371 = arith.subf %367, %370 : vector<8x8x8xf32>
    %372 = math.exp %371 : vector<8x8x8xf32>
    %cst_297 = arith.constant dense<0.000000e+00> : vector<8x8xf32>
    %373 = vector.multi_reduction <add>, %372, %cst_297 [2] : vector<8x8x8xf32> to vector<8x8xf32>
    %374 = vector.shape_cast %373 : vector<8x8xf32> to vector<8x8x1xf32>
    %375 = vector.broadcast %374 : vector<8x8x1xf32> to vector<8x8x8xf32>
    %376 = arith.divf %372, %375 : vector<8x8x8xf32>
    %377 = arith.truncf %376 : vector<8x8x8xf32> to vector<8x8x8xbf16>
    %378 = arith.truncf %360 : vector<8x8x8xf32> to vector<8x8x8xbf16>
    "tpu.trace_start"() <{level = 10 : i32, message = "nqk,nkd->nqd"}> : () -> ()
    %cst_298 = arith.constant dense<0.000000e+00> : vector<8x8x8xf32>
    %379 = tpu.matmul %377, %378, %cst_298 {dimension_numbers = #tpu.dot_dimension_numbers<[2], [1], [1], [2], [0, 0, 0, 1, 1, 2], [0], [0]>} : vector<8x8x8xbf16>, vector<8x8x8xbf16>, vector<8x8x8xf32> -> vector<8x8x8xf32>
    %cst_299 = arith.constant 0.000000e+00 : f32
    "tpu.trace_stop"() : () -> ()
    %380 = vector.broadcast %cst_299 : f32 to vector<16x32xf32>
    %381 = vector.extract_strided_slice %379 {offsets = [0, 0, 0], sizes = [2, 8, 8], strides = [1, 1, 1]} : vector<8x8x8xf32> to vector<2x8x8xf32>
    %382 = vector.shape_cast %381 : vector<2x8x8xf32> to vector<16x8xf32>
    %383 = arith.truncf %382 : vector<16x8xf32> to vector<16x8xbf16>
    %c1_300 = arith.constant 1 : index
    %c0_301 = arith.constant 0 : index
    %c0_302 = arith.constant 0 : index
    %c0_303 = arith.constant 0 : index
    %384 = vector.load %arg10[%c1_300, %c0_301, %c0_302, %c0_303] : memref<2x4x8x32xbf16, #tpu.memory_space<vmem>>, vector<1x1x8x32xbf16>
    %385 = vector.shape_cast %384 : vector<1x1x8x32xbf16> to vector<8x32xbf16>
    %cst_304 = arith.constant dense<0.000000e+00> : vector<16x32xf32>
    %386 = tpu.matmul %383, %385, %cst_304 {dimension_numbers = #tpu.dot_dimension_numbers<[1], [0], [0], [1], [0, 0, 1, 1], [], []>} : vector<16x8xbf16>, vector<8x32xbf16>, vector<16x32xf32> -> vector<16x32xf32>
    %387 = arith.addf %380, %386 : vector<16x32xf32>
    %388 = vector.extract_strided_slice %379 {offsets = [2, 0, 0], sizes = [2, 8, 8], strides = [1, 1, 1]} : vector<8x8x8xf32> to vector<2x8x8xf32>
    %389 = vector.shape_cast %388 : vector<2x8x8xf32> to vector<16x8xf32>
    %390 = arith.truncf %389 : vector<16x8xf32> to vector<16x8xbf16>
    %c1_305 = arith.constant 1 : index
    %c1_306 = arith.constant 1 : index
    %c0_307 = arith.constant 0 : index
    %c0_308 = arith.constant 0 : index
    %391 = vector.load %arg10[%c1_305, %c1_306, %c0_307, %c0_308] : memref<2x4x8x32xbf16, #tpu.memory_space<vmem>>, vector<1x1x8x32xbf16>
    %392 = vector.shape_cast %391 : vector<1x1x8x32xbf16> to vector<8x32xbf16>
    %cst_309 = arith.constant dense<0.000000e+00> : vector<16x32xf32>
    %393 = tpu.matmul %390, %392, %cst_309 {dimension_numbers = #tpu.dot_dimension_numbers<[1], [0], [0], [1], [0, 0, 1, 1], [], []>} : vector<16x8xbf16>, vector<8x32xbf16>, vector<16x32xf32> -> vector<16x32xf32>
    %394 = arith.addf %387, %393 : vector<16x32xf32>
    %395 = vector.extract_strided_slice %379 {offsets = [4, 0, 0], sizes = [2, 8, 8], strides = [1, 1, 1]} : vector<8x8x8xf32> to vector<2x8x8xf32>
    %396 = vector.shape_cast %395 : vector<2x8x8xf32> to vector<16x8xf32>
    %397 = arith.truncf %396 : vector<16x8xf32> to vector<16x8xbf16>
    %c1_310 = arith.constant 1 : index
    %c2_311 = arith.constant 2 : index
    %c0_312 = arith.constant 0 : index
    %c0_313 = arith.constant 0 : index
    %398 = vector.load %arg10[%c1_310, %c2_311, %c0_312, %c0_313] : memref<2x4x8x32xbf16, #tpu.memory_space<vmem>>, vector<1x1x8x32xbf16>
    %399 = vector.shape_cast %398 : vector<1x1x8x32xbf16> to vector<8x32xbf16>
    %cst_314 = arith.constant dense<0.000000e+00> : vector<16x32xf32>
    %400 = tpu.matmul %397, %399, %cst_314 {dimension_numbers = #tpu.dot_dimension_numbers<[1], [0], [0], [1], [0, 0, 1, 1], [], []>} : vector<16x8xbf16>, vector<8x32xbf16>, vector<16x32xf32> -> vector<16x32xf32>
    %401 = arith.addf %394, %400 : vector<16x32xf32>
    %402 = vector.extract_strided_slice %379 {offsets = [6, 0, 0], sizes = [2, 8, 8], strides = [1, 1, 1]} : vector<8x8x8xf32> to vector<2x8x8xf32>
    %403 = vector.shape_cast %402 : vector<2x8x8xf32> to vector<16x8xf32>
    %404 = arith.truncf %403 : vector<16x8xf32> to vector<16x8xbf16>
    %c1_315 = arith.constant 1 : index
    %c3_316 = arith.constant 3 : index
    %c0_317 = arith.constant 0 : index
    %c0_318 = arith.constant 0 : index
    %405 = vector.load %arg10[%c1_315, %c3_316, %c0_317, %c0_318] : memref<2x4x8x32xbf16, #tpu.memory_space<vmem>>, vector<1x1x8x32xbf16>
    %406 = vector.shape_cast %405 : vector<1x1x8x32xbf16> to vector<8x32xbf16>
    %cst_319 = arith.constant dense<0.000000e+00> : vector<16x32xf32>
    %407 = tpu.matmul %404, %406, %cst_319 {dimension_numbers = #tpu.dot_dimension_numbers<[1], [0], [0], [1], [0, 0, 1, 1], [], []>} : vector<16x8xbf16>, vector<8x32xbf16>, vector<16x32xf32> -> vector<16x32xf32>
    %408 = arith.addf %401, %407 : vector<16x32xf32>
    %c1_320 = arith.constant 1 : index
    %c0_321 = arith.constant 0 : index
    %c0_322 = arith.constant 0 : index
    %409 = vector.load %arg11[%c1_320, %c0_321, %c0_322] : memref<2x1x32xf32, #tpu.memory_space<vmem>>, vector<1x1x32xf32>
    %410 = vector.shape_cast %409 : vector<1x1x32xf32> to vector<1x32xf32>
    %411 = vector.broadcast %410 : vector<1x32xf32> to vector<16x32xf32>
    %412 = arith.addf %408, %411 : vector<16x32xf32>
    %413 = arith.addf %412, %260 : vector<16x32xf32>
    %c1_323 = arith.constant 1 : index
    %c0_324 = arith.constant 0 : index
    %c0_325 = arith.constant 0 : index
    %414 = vector.load %arg16[%c1_323, %c0_324, %c0_325] : memref<2x1x32xf32, #tpu.memory_space<vmem>>, vector<1x1x32xf32>
    %415 = vector.shape_cast %414 : vector<1x1x32xf32> to vector<1x32xf32>
    %c1_326 = arith.constant 1 : index
    %c0_327 = arith.constant 0 : index
    %c0_328 = arith.constant 0 : index
    %416 = vector.load %arg17[%c1_326, %c0_327, %c0_328] : memref<2x1x32xf32, #tpu.memory_space<vmem>>, vector<1x1x32xf32>
    %417 = vector.shape_cast %416 : vector<1x1x32xf32> to vector<1x32xf32>
    %cst_329 = arith.constant dense<0.000000e+00> : vector<16xf32>
    %418 = vector.multi_reduction <add>, %413, %cst_329 [1] : vector<16x32xf32> to vector<16xf32>
    %419 = vector.shape_cast %418 : vector<16xf32> to vector<16x1xf32>
    %cst_330 = arith.constant 3.200000e+01 : f32
    %420 = vector.broadcast %cst_330 : f32 to vector<16x1xf32>
    %421 = arith.divf %419, %420 : vector<16x1xf32>
    %422 = vector.broadcast %421 : vector<16x1xf32> to vector<16x32xf32>
    %423 = arith.subf %413, %422 : vector<16x32xf32>
    %424 = arith.mulf %423, %423 : vector<16x32xf32>
    %cst_331 = arith.constant dense<0.000000e+00> : vector<16xf32>
    %425 = vector.multi_reduction <add>, %424, %cst_331 [1] : vector<16x32xf32> to vector<16xf32>
    %426 = vector.shape_cast %425 : vector<16xf32> to vector<16x1xf32>
    %cst_332 = arith.constant 3.200000e+01 : f32
    %427 = vector.broadcast %cst_332 : f32 to vector<16x1xf32>
    %428 = arith.divf %426, %427 : vector<16x1xf32>
    %429 = vector.broadcast %421 : vector<16x1xf32> to vector<16x32xf32>
    %430 = arith.subf %413, %429 : vector<16x32xf32>
    %cst_333 = arith.constant 9.99999996E-13 : f32
    %431 = vector.broadcast %cst_333 : f32 to vector<16x1xf32>
    %432 = arith.addf %428, %431 : vector<16x1xf32>
    %433 = math.rsqrt %432 : vector<16x1xf32>
    %434 = vector.broadcast %433 : vector<16x1xf32> to vector<16x32xf32>
    %435 = arith.mulf %430, %434 : vector<16x32xf32>
    %436 = vector.broadcast %415 : vector<1x32xf32> to vector<16x32xf32>
    %437 = arith.mulf %435, %436 : vector<16x32xf32>
    %438 = vector.broadcast %417 : vector<1x32xf32> to vector<16x32xf32>
    %439 = arith.addf %437, %438 : vector<16x32xf32>
    %440 = arith.truncf %439 : vector<16x32xf32> to vector<16x32xbf16>
    %c1_334 = arith.constant 1 : index
    %c0_335 = arith.constant 0 : index
    %c0_336 = arith.constant 0 : index
    %441 = vector.load %arg12[%c1_334, %c0_335, %c0_336] : memref<2x32x64xbf16, #tpu.memory_space<vmem>>, vector<1x32x64xbf16>
    %442 = vector.shape_cast %441 : vector<1x32x64xbf16> to vector<32x64xbf16>
    %cst_337 = arith.constant dense<0.000000e+00> : vector<16x64xf32>
    %443 = tpu.matmul %440, %442, %cst_337 {dimension_numbers = #tpu.dot_dimension_numbers<[1], [0], [0], [1], [0, 0, 1, 1], [], []>} : vector<16x32xbf16>, vector<32x64xbf16>, vector<16x64xf32> -> vector<16x64xf32>
    %c1_338 = arith.constant 1 : index
    %c0_339 = arith.constant 0 : index
    %c0_340 = arith.constant 0 : index
    %444 = vector.load %arg13[%c1_338, %c0_339, %c0_340] : memref<2x1x64xf32, #tpu.memory_space<vmem>>, vector<1x1x64xf32>
    %445 = vector.shape_cast %444 : vector<1x1x64xf32> to vector<1x64xf32>
    %446 = vector.broadcast %445 : vector<1x64xf32> to vector<16x64xf32>
    %447 = arith.addf %443, %446 : vector<16x64xf32>
    %cst_341 = arith.constant 5.000000e-01 : f32
    %448 = vector.broadcast %cst_341 : f32 to vector<16x64xf32>
    %449 = arith.mulf %448, %447 : vector<16x64xf32>
    %cst_342 = arith.constant 4.471500e-02 : f32
    %450 = vector.broadcast %cst_342 : f32 to vector<16x64xf32>
    %451 = arith.mulf %450, %447 : vector<16x64xf32>
    %452 = arith.mulf %451, %447 : vector<16x64xf32>
    %453 = arith.mulf %452, %447 : vector<16x64xf32>
    %454 = arith.addf %447, %453 : vector<16x64xf32>
    %cst_343 = arith.constant 0.797884583 : f32
    %455 = vector.broadcast %cst_343 : f32 to vector<16x64xf32>
    %456 = arith.mulf %455, %454 : vector<16x64xf32>
    %457 = math.tanh %456 : vector<16x64xf32>
    %cst_344 = arith.constant 1.000000e+00 : f32
    %458 = vector.broadcast %cst_344 : f32 to vector<16x64xf32>
    %459 = arith.addf %458, %457 : vector<16x64xf32>
    %460 = arith.mulf %449, %459 : vector<16x64xf32>
    %461 = arith.truncf %460 : vector<16x64xf32> to vector<16x64xbf16>
    %c1_345 = arith.constant 1 : index
    %c0_346 = arith.constant 0 : index
    %c0_347 = arith.constant 0 : index
    %462 = vector.load %arg14[%c1_345, %c0_346, %c0_347] : memref<2x64x32xbf16, #tpu.memory_space<vmem>>, vector<1x64x32xbf16>
    %463 = vector.shape_cast %462 : vector<1x64x32xbf16> to vector<64x32xbf16>
    %cst_348 = arith.constant dense<0.000000e+00> : vector<16x32xf32>
    %464 = tpu.matmul %461, %463, %cst_348 {dimension_numbers = #tpu.dot_dimension_numbers<[1], [0], [0], [1], [0, 0, 1, 1], [], []>} : vector<16x64xbf16>, vector<64x32xbf16>, vector<16x32xf32> -> vector<16x32xf32>
    %c1_349 = arith.constant 1 : index
    %c0_350 = arith.constant 0 : index
    %c0_351 = arith.constant 0 : index
    %465 = vector.load %arg15[%c1_349, %c0_350, %c0_351] : memref<2x1x32xf32, #tpu.memory_space<vmem>>, vector<1x1x32xf32>
    %466 = vector.shape_cast %465 : vector<1x1x32xf32> to vector<1x32xf32>
    %467 = vector.broadcast %466 : vector<1x32xf32> to vector<16x32xf32>
    %468 = arith.addf %464, %467 : vector<16x32xf32>
    %469 = arith.addf %468, %439 : vector<16x32xf32>
    %c1_352 = arith.constant 1 : index
    %c0_353 = arith.constant 0 : index
    %c0_354 = arith.constant 0 : index
    %470 = vector.load %arg18[%c1_352, %c0_353, %c0_354] : memref<2x1x32xf32, #tpu.memory_space<vmem>>, vector<1x1x32xf32>
    %471 = vector.shape_cast %470 : vector<1x1x32xf32> to vector<1x32xf32>
    %c1_355 = arith.constant 1 : index
    %c0_356 = arith.constant 0 : index
    %c0_357 = arith.constant 0 : index
    %472 = vector.load %arg19[%c1_355, %c0_356, %c0_357] : memref<2x1x32xf32, #tpu.memory_space<vmem>>, vector<1x1x32xf32>
    %473 = vector.shape_cast %472 : vector<1x1x32xf32> to vector<1x32xf32>
    %cst_358 = arith.constant dense<0.000000e+00> : vector<16xf32>
    %474 = vector.multi_reduction <add>, %469, %cst_358 [1] : vector<16x32xf32> to vector<16xf32>
    %475 = vector.shape_cast %474 : vector<16xf32> to vector<16x1xf32>
    %cst_359 = arith.constant 3.200000e+01 : f32
    %476 = vector.broadcast %cst_359 : f32 to vector<16x1xf32>
    %477 = arith.divf %475, %476 : vector<16x1xf32>
    %478 = vector.broadcast %477 : vector<16x1xf32> to vector<16x32xf32>
    %479 = arith.subf %469, %478 : vector<16x32xf32>
    %480 = arith.mulf %479, %479 : vector<16x32xf32>
    %cst_360 = arith.constant dense<0.000000e+00> : vector<16xf32>
    %481 = vector.multi_reduction <add>, %480, %cst_360 [1] : vector<16x32xf32> to vector<16xf32>
    %482 = vector.shape_cast %481 : vector<16xf32> to vector<16x1xf32>
    %cst_361 = arith.constant 3.200000e+01 : f32
    %483 = vector.broadcast %cst_361 : f32 to vector<16x1xf32>
    %484 = arith.divf %482, %483 : vector<16x1xf32>
    %485 = vector.broadcast %477 : vector<16x1xf32> to vector<16x32xf32>
    %486 = arith.subf %469, %485 : vector<16x32xf32>
    %cst_362 = arith.constant 9.99999996E-13 : f32
    %487 = vector.broadcast %cst_362 : f32 to vector<16x1xf32>
    %488 = arith.addf %484, %487 : vector<16x1xf32>
    %489 = math.rsqrt %488 : vector<16x1xf32>
    %490 = vector.broadcast %489 : vector<16x1xf32> to vector<16x32xf32>
    %491 = arith.mulf %486, %490 : vector<16x32xf32>
    %492 = vector.broadcast %471 : vector<1x32xf32> to vector<16x32xf32>
    %493 = arith.mulf %491, %492 : vector<16x32xf32>
    %494 = vector.broadcast %473 : vector<1x32xf32> to vector<16x32xf32>
    %495 = arith.addf %493, %494 : vector<16x32xf32>
    %496 = arith.truncf %495 : vector<16x32xf32> to vector<16x32xbf16>
    %c0_363 = arith.constant 0 : index
    %c0_364 = arith.constant 0 : index
    %497 = vector.load %arg20[%c0_363, %c0_364] : memref<32x32xbf16, #tpu.memory_space<vmem>>, vector<32x32xbf16>
    %cst_365 = arith.constant dense<0.000000e+00> : vector<16x32xf32>
    %498 = tpu.matmul %496, %497, %cst_365 {dimension_numbers = #tpu.dot_dimension_numbers<[1], [0], [0], [1], [0, 0, 1, 1], [], []>} : vector<16x32xbf16>, vector<32x32xbf16>, vector<16x32xf32> -> vector<16x32xf32>
    %c0_366 = arith.constant 0 : index
    %c0_367 = arith.constant 0 : index
    %499 = vector.load %arg21[%c0_366, %c0_367] : memref<1x32xf32, #tpu.memory_space<vmem>>, vector<1x32xf32>
    %500 = vector.broadcast %499 : vector<1x32xf32> to vector<16x32xf32>
    %501 = arith.addf %498, %500 : vector<16x32xf32>
    %502 = math.tanh %501 : vector<16x32xf32>
    %503 = arith.truncf %502 : vector<16x32xf32> to vector<16x32xbf16>
    %c0_368 = arith.constant 0 : index
    %c0_369 = arith.constant 0 : index
    %504 = vector.load %arg22[%c0_368, %c0_369] : memref<32x128xbf16, #tpu.memory_space<vmem>>, vector<32x128xbf16>
    %cst_370 = arith.constant dense<0.000000e+00> : vector<16x128xf32>
    %505 = tpu.matmul %503, %504, %cst_370 {dimension_numbers = #tpu.dot_dimension_numbers<[1], [0], [0], [1], [0, 0, 1, 1], [], []>} : vector<16x32xbf16>, vector<32x128xbf16>, vector<16x128xf32> -> vector<16x128xf32>
    %c0_371 = arith.constant 0 : index
    %c0_372 = arith.constant 0 : index
    %506 = vector.load %arg23[%c0_371, %c0_372] : memref<1x128xf32, #tpu.memory_space<vmem>>, vector<1x128xf32>
    %507 = vector.broadcast %506 : vector<1x128xf32> to vector<16x128xf32>
    %508 = arith.addf %505, %507 : vector<16x128xf32>
    %c0_373 = arith.constant 0 : index
    %c0_374 = arith.constant 0 : index
    %509 = vector.load %arg24[%c0_373, %c0_374] : memref<16x128xf32, #tpu.memory_space<vmem>>, vector<16x128xf32>
    tpu.vector_store %arg24[%c0_373, %c0_374], %508 {strides = array<i32>} : memref<16x128xf32, #tpu.memory_space<vmem>>, vector<16x128xf32>,
    return
  }
}

</mosaic_0001>

<llo_original>
// kernel: bert_classifier_forward.1
$region0: #{bert_classifier_forward.1}
  #allocation0 [shape = 'u32[]', space=smem, size = 0x4, offset = 0x4, fixed_abs, tag = 'smem constant byte address 0x4 - core index']
  #allocation1 [shape = 'u32[144,128]{1,0:T(1,128)}', space=vmem, size = 0x12000, scoped, tag = 'internal scratch']
  %s0 = inlined_call_operand.vmem [shape: f32[16,32], index: 0, kind: input, shape index: {}]
  %s1 = inlined_call_operand.vmem [shape: f32[8,1,8], index: 1, kind: input, shape index: {}]
  %s2 = inlined_call_operand.vmem [shape: f32[1,32], index: 2, kind: input, shape index: {}]
  %s3 = inlined_call_operand.vmem [shape: f32[1,32], index: 3, kind: input, shape index: {}]
  %s4 = inlined_call_operand.vmem [shape: bf16[2,4,32,8], index: 4, kind: input, shape index: {}]
  %s5 = inlined_call_operand.vmem [shape: f32[2,4,1,8], index: 5, kind: input, shape index: {}]
  %s6 = inlined_call_operand.vmem [shape: bf16[2,4,32,8], index: 6, kind: input, shape index: {}]
  %s7 = inlined_call_operand.vmem [shape: f32[2,4,1,8], index: 7, kind: input, shape index: {}]
  %s8 = inlined_call_operand.vmem [shape: bf16[2,4,32,8], index: 8, kind: input, shape index: {}]
  %s9 = inlined_call_operand.vmem [shape: f32[2,4,1,8], index: 9, kind: input, shape index: {}]
  %s10 = inlined_call_operand.vmem [shape: bf16[2,4,8,32], index: 10, kind: input, shape index: {}]
  %s11 = inlined_call_operand.vmem [shape: f32[2,1,32], index: 11, kind: input, shape index: {}]
  %s12 = inlined_call_operand.vmem [shape: bf16[2,32,64], index: 12, kind: input, shape index: {}]
  %s13 = inlined_call_operand.vmem [shape: f32[2,1,64], index: 13, kind: input, shape index: {}]
  %s14 = inlined_call_operand.vmem [shape: bf16[2,64,32], index: 14, kind: input, shape index: {}]
  %s15 = inlined_call_operand.vmem [shape: f32[2,1,32], index: 15, kind: input, shape index: {}]
  %s16 = inlined_call_operand.vmem [shape: f32[2,1,32], index: 16, kind: input, shape index: {}]
  %s17 = inlined_call_operand.vmem [shape: f32[2,1,32], index: 17, kind: input, shape index: {}]
  %s18 = inlined_call_operand.vmem [shape: f32[2,1,32], index: 18, kind: input, shape index: {}]
  %s19 = inlined_call_operand.vmem [shape: f32[2,1,32], index: 19, kind: input, shape index: {}]
  %s20 = inlined_call_operand.vmem [shape: bf16[32,32], index: 20, kind: input, shape index: {}]
  %s21 = inlined_call_operand.vmem [shape: f32[1,32], index: 21, kind: input, shape index: {}]
  %s22 = inlined_call_operand.vmem [shape: bf16[32,128], index: 22, kind: input, shape index: {}]
  %s23 = inlined_call_operand.vmem [shape: f32[1,128], index: 23, kind: input, shape index: {}]
  %s24 = inlined_call_operand.vmem [shape: f32[16,128], index: 24, kind: output, shape index: {}]
  %s25 = sld [smem:[#allocation0]]
  $region106: #{bert_classifier_forward.1} parent=0
    _
  %s27 = ssub.s32 1, %s25
  %s28 = scalar_select 0, %s27, %s25
  // Predicated region
  $region2: #{bert_classifier_forward.1} parent=0 // pred_check
    _
  $region3: #{bert_classifier_forward.1} parent=0 // pred_check_branch
    %30 = sbr.rel (0) target = $region5
  $region4: #{bert_classifier_forward.1} parent=0 // pred_region
    _
  $region5: #{bert_classifier_forward.1} parent=0 // pred_fallthru
    _
  // Predicated region
  $region6: #{bert_classifier_forward.1} parent=0 // pred_check
    _
  $region7: #{bert_classifier_forward.1} parent=0 // pred_check_branch
    %32 = sbr.rel (0) target = $region9
  $region8: #{bert_classifier_forward.1} parent=0 // pred_region
    _
  $region9: #{bert_classifier_forward.1} parent=0 // pred_fallthru
    _
  // Predicated region
  $region10: #{bert_classifier_forward.1} parent=0 // pred_check
    _
  $region11: #{bert_classifier_forward.1} parent=0 // pred_check_branch
    %34 = sbr.rel (0) target = $region13
  $region12: #{bert_classifier_forward.1} parent=0 // pred_region
    _
  $region13: #{bert_classifier_forward.1} parent=0 // pred_fallthru
    _
  // Predicated region
  $region14: #{bert_classifier_forward.1} parent=0 // pred_check
    _
  $region15: #{bert_classifier_forward.1} parent=0 // pred_check_branch
    %36 = sbr.rel (0) target = $region17
  $region16: #{bert_classifier_forward.1} parent=0 // pred_region
    _
  $region17: #{bert_classifier_forward.1} parent=0 // pred_fallthru
    _
  // Predicated region
  $region18: #{bert_classifier_forward.1} parent=0 // pred_check
    _
  $region19: #{bert_classifier_forward.1} parent=0 // pred_check_branch
    %38 = sbr.rel (0) target = $region21
  $region20: #{bert_classifier_forward.1} parent=0 // pred_region
    _
  $region21: #{bert_classifier_forward.1} parent=0 // pred_fallthru
    _
  // Predicated region
  $region22: #{bert_classifier_forward.1} parent=0 // pred_check
    _
  $region23: #{bert_classifier_forward.1} parent=0 // pred_check_branch
    %40 = sbr.rel (0) target = $region25
  $region24: #{bert_classifier_forward.1} parent=0 // pred_region
    _
  $region25: #{bert_classifier_forward.1} parent=0 // pred_fallthru
    _
  // Predicated region
  $region26: #{bert_classifier_forward.1} parent=0 // pred_check
    _
  $region27: #{bert_classifier_forward.1} parent=0 // pred_check_branch
    %42 = sbr.rel (0) target = $region29
  $region28: #{bert_classifier_forward.1} parent=0 // pred_region
    _
  $region29: #{bert_classifier_forward.1} parent=0 // pred_fallthru
    _
  // Predicated region
  $region30: #{bert_classifier_forward.1} parent=0 // pred_check
    _
  $region31: #{bert_classifier_forward.1} parent=0 // pred_check_branch
    %44 = sbr.rel (0) target = $region33
  $region32: #{bert_classifier_forward.1} parent=0 // pred_region
    _
  $region33: #{bert_classifier_forward.1} parent=0 // pred_fallthru
    _
  // Predicated region
  $region34: #{bert_classifier_forward.1} parent=0 // pred_check
    _
  $region35: #{bert_classifier_forward.1} parent=0 // pred_check_branch
    %46 = sbr.rel (0) target = $region37
  $region36: #{bert_classifier_forward.1} parent=0 // pred_region
    _
  $region37: #{bert_classifier_forward.1} parent=0 // pred_fallthru
    _
  // Predicated region
  $region38: #{bert_classifier_forward.1} parent=0 // pred_check
    _
  $region39: #{bert_classifier_forward.1} parent=0 // pred_check_branch
    %48 = sbr.rel (0) target = $region41
  $region40: #{bert_classifier_forward.1} parent=0 // pred_region
    _
  $region41: #{bert_classifier_forward.1} parent=0 // pred_fallthru
    _
  // Predicated region
  $region42: #{bert_classifier_forward.1} parent=0 // pred_check
    _
  $region43: #{bert_classifier_forward.1} parent=0 // pred_check_branch
    %50 = sbr.rel (0) target = $region45
  $region44: #{bert_classifier_forward.1} parent=0 // pred_region
    _
  $region45: #{bert_classifier_forward.1} parent=0 // pred_fallthru
    _
  // Predicated region
  $region46: #{bert_classifier_forward.1} parent=0 // pred_check
    _
  $region47: #{bert_classifier_forward.1} parent=0 // pred_check_branch
    %52 = sbr.rel (0) target = $region49
  $region48: #{bert_classifier_forward.1} parent=0 // pred_region
    _
  $region49: #{bert_classifier_forward.1} parent=0 // pred_fallthru
    _
  // Predicated region
  $region50: #{bert_classifier_forward.1} parent=0 // pred_check
    _
  $region51: #{bert_classifier_forward.1} parent=0 // pred_check_branch
    %54 = sbr.rel (0) target = $region53
  $region52: #{bert_classifier_forward.1} parent=0 // pred_region
    _
  $region53: #{bert_classifier_forward.1} parent=0 // pred_fallthru
    _
  // Predicated region
  $region54: #{bert_classifier_forward.1} parent=0 // pred_check
    _
  $region55: #{bert_classifier_forward.1} parent=0 // pred_check_branch
    %56 = sbr.rel (0) target = $region57
  $region56: #{bert_classifier_forward.1} parent=0 // pred_region
    _
  $region57: #{bert_classifier_forward.1} parent=0 // pred_fallthru
    _
  // Predicated region
  $region58: #{bert_classifier_forward.1} parent=0 // pred_check
    _
  $region59: #{bert_classifier_forward.1} parent=0 // pred_check_branch
    %58 = sbr.rel (0) target = $region61
  $region60: #{bert_classifier_forward.1} parent=0 // pred_region
    _
  $region61: #{bert_classifier_forward.1} parent=0 // pred_fallthru
    _
  // Predicated region
  $region62: #{bert_classifier_forward.1} parent=0 // pred_check
    _
  $region63: #{bert_classifier_forward.1} parent=0 // pred_check_branch
    %60 = sbr.rel (0) target = $region65
  $region64: #{bert_classifier_forward.1} parent=0 // pred_region
    _
  $region65: #{bert_classifier_forward.1} parent=0 // pred_fallthru
    _
  // Predicated region
  $region66: #{bert_classifier_forward.1} parent=0 // pred_check
    _
  $region67: #{bert_classifier_forward.1} parent=0 // pred_check_branch
    %62 = sbr.rel (0) target = $region69
  $region68: #{bert_classifier_forward.1} parent=0 // pred_region
    _
  $region69: #{bert_classifier_forward.1} parent=0 // pred_fallthru
    _
  // Predicated region
  $region70: #{bert_classifier_forward.1} parent=0 // pred_check
    _
  $region71: #{bert_classifier_forward.1} parent=0 // pred_check_branch
    %64 = sbr.rel (0) target = $region73
  $region72: #{bert_classifier_forward.1} parent=0 // pred_region
    _
  $region73: #{bert_classifier_forward.1} parent=0 // pred_fallthru
    _
  // Predicated region
  $region74: #{bert_classifier_forward.1} parent=0 // pred_check
    _
  $region75: #{bert_classifier_forward.1} parent=0 // pred_check_branch
    %66 = sbr.rel (0) target = $region77
  $region76: #{bert_classifier_forward.1} parent=0 // pred_region
    _
  $region77: #{bert_classifier_forward.1} parent=0 // pred_fallthru
    _
  // Predicated region
  $region78: #{bert_classifier_forward.1} parent=0 // pred_check
    _
  $region79: #{bert_classifier_forward.1} parent=0 // pred_check_branch
    %68 = sbr.rel (0) target = $region81
  $region80: #{bert_classifier_forward.1} parent=0 // pred_region
    _
  $region81: #{bert_classifier_forward.1} parent=0 // pred_fallthru
    _
  // Predicated region
  $region82: #{bert_classifier_forward.1} parent=0 // pred_check
    _
  $region83: #{bert_classifier_forward.1} parent=0 // pred_check_branch
    %70 = sbr.rel (0) target = $region85
  $region84: #{bert_classifier_forward.1} parent=0 // pred_region
    _
  $region85: #{bert_classifier_forward.1} parent=0 // pred_fallthru
    _
  // Predicated region
  $region86: #{bert_classifier_forward.1} parent=0 // pred_check
    _
  $region87: #{bert_classifier_forward.1} parent=0 // pred_check_branch
    %72 = sbr.rel (0) target = $region89
  $region88: #{bert_classifier_forward.1} parent=0 // pred_region
    _
  $region89: #{bert_classifier_forward.1} parent=0 // pred_fallthru
    _
  // Predicated region
  $region90: #{bert_classifier_forward.1} parent=0 // pred_check
    _
  $region91: #{bert_classifier_forward.1} parent=0 // pred_check_branch
    %74 = sbr.rel (0) target = $region93
  $region92: #{bert_classifier_forward.1} parent=0 // pred_region
    _
  $region93: #{bert_classifier_forward.1} parent=0 // pred_fallthru
    _
  // Predicated region
  $region94: #{bert_classifier_forward.1} parent=0 // pred_check
    _
  $region95: #{bert_classifier_forward.1} parent=0 // pred_check_branch
    %76 = sbr.rel (0) target = $region97
  $region96: #{bert_classifier_forward.1} parent=0 // pred_region
    _
  $region97: #{bert_classifier_forward.1} parent=0 // pred_fallthru
    _
  %v78 = vld [vmem:[%s0] sm:$0xff]
  %v79 = vld [vmem:[%s0 + $0x8] sm:$0xff]
  %v80 = vld [vmem:[%s2] sm:$0x1]
  %v81 = vld [vmem:[%s3] sm:$0x1]
  %vm82 = vcmask 261120
  %v83 = vsel %vm82, %v78, 0.0
  %84 = vadd.xlane.f32.xlu0 %v83
  %v85 = vpop.xlane.xlu0 %84
  %v86 = vsel %vm82, %v79, 0.0
  %87 = vadd.xlane.f32.xlu0 %v86
  %v88 = vpop.xlane.xlu0 %87
  %v89 = vrcp.pop 32.0
  %v90 = vmul.f32 %v85, %v89
  %v91 = vmul.f32 %v88, %v89
  %v92 = vsub.f32 %v78, %v90
  %v93 = vsub.f32 %v79, %v91
  %v94 = vmul.f32 %v92, %v92
  %v95 = vmul.f32 %v93, %v93
  %v96 = vsel %vm82, %v94, 0.0
  %97 = vadd.xlane.f32.xlu0 %v96
  %v98 = vpop.xlane.xlu0 %97
  %v99 = vsel %vm82, %v95, 0.0
  %100 = vadd.xlane.f32.xlu0 %v99
  %v101 = vpop.xlane.xlu0 %100
  %v102 = vmul.f32 %v98, %v89
  %v103 = vmul.f32 %v101, %v89
  %v104 = vadd.f32 %v102, 1e-12
  %v105 = vadd.f32 %v103, 1e-12
  %v106 = vrsqrt.pop %v104
  %v107 = vrsqrt.pop %v105
  %v108 = vmul.f32 %v92, %v106
  %v109 = vmul.f32 %v93, %v107
  %v111 = vlaneseq
  %v112 = vshrl.u32 %v111, 7
  %v113 = vsub.s32 0, %v112
  %v114 = vrot.slane %v80, %v113
  %v116 = vmul.f32 %v108, %v114
  %v117 = vmul.f32 %v109, %v114
  %v119 = vlaneseq
  %v120 = vshrl.u32 %v119, 7
  %v121 = vsub.s32 0, %v120
  %v122 = vrot.slane %v81, %v121
  %v124 = vadd.f32 %v116, %v122
  %v125 = vadd.f32 %v117, %v122
  %v126 = vld [vmem:[%s1] sm:$0x1]
  %v127 = vld [vmem:[%s1 + $0x1] sm:$0x1]
  %v128 = vld [vmem:[%s1 + $0x2] sm:$0x1]
  %v129 = vld [vmem:[%s1 + $0x3] sm:$0x1]
  %v130 = vld [vmem:[%s1 + $0x4] sm:$0x1]
  %v131 = vld [vmem:[%s1 + $0x5] sm:$0x1]
  %v132 = vld [vmem:[%s1 + $0x6] sm:$0x1]
  %v133 = vld [vmem:[%s1 + $0x7] sm:$0x1]
  %v134 = vpack.c.bf16 %v125, %v124
  %v135 = vld [vmem:[%s4] sm:$0xf]
  %v136 = vld [vmem:[%s4 + $0x4] sm:$0xf]
  %v137 = vld [vmem:[%s4 + $0x8] sm:$0xf]
  %v138 = vld [vmem:[%s4 + $0xc] sm:$0xf]
  %v139 = vld [vmem:[%s5] sm:$0x1]
  %v141 = vlaneseq
  %v142 = vshrl.u32 %v141, 7
  %v143 = vsub.s32 0, %v142
  %v144 = vrot.slane %v139, %v143
  %v150 = vunpack.c.l.b16 %v135
  %v151 = vunpack.c.l.b16 %v136
  %v152 = vunpack.c.l.b16 %v137
  %v153 = vunpack.c.l.b16 %v138
  %v154 = vpack.c.b16 %v151, %v150
  %v155 = vpack.c.b16 %v153, %v152
  %v159 = vsel %vm82, %v134, 0
  %161 = vmatprep.subr.bf16.mxu0 0
  %162 = vmatpush1.bf16.msra.mxu0 %v154
  %163 = vmatprep.subr.bf16.mxu0 0
  %164 = vmatpush1.bf16.msra.mxu0 %v155
  %165 = vmatprep.subr.bf16.mxu0 0
  %166 = vmatpush1.bf16.msra.mxu0 0
  %167 = vmatprep.subr.bf16.mxu0 0
  %168 = vmatpush1.bf16.msra.mxu0 0
  %169 = vmatprep.subr.bf16.mxu0 0
  %170 = vmatpush1.bf16.msra.mxu0 0
  %171 = vmatprep.subr.bf16.mxu0 0
  %172 = vmatpush1.bf16.msra.mxu0 0
  %173 = vmatprep.subr.bf16.mxu0 0
  %174 = vmatpush1.bf16.msra.mxu0 0
  %175 = vmatprep.subr.bf16.mxu0 0
  %176 = vmatpush1.bf16.msra.mxu0 0
  %177 = vmatprep.subr.bf16.mxu0 0
  %178 = vmatpush1.bf16.msra.mxu0 0
  %179 = vmatprep.subr.bf16.mxu0 0
  %180 = vmatpush1.bf16.msra.mxu0 0
  %181 = vmatprep.subr.bf16.mxu0 0
  %182 = vmatpush1.bf16.msra.mxu0 0
  %183 = vmatprep.subr.bf16.mxu0 0
  %184 = vmatpush1.bf16.msra.mxu0 0
  %185 = vmatprep.subr.bf16.mxu0 0
  %186 = vmatpush1.bf16.msra.mxu0 0
  %187 = vmatprep.subr.bf16.mxu0 0
  %188 = vmatpush1.bf16.msra.mxu0 0
  %189 = vmatprep.subr.bf16.mxu0 0
  %190 = vmatpush1.bf16.msra.mxu0 0
  %191 = vmatprep.subr.bf16.mxu0 0
  %192 = vmatpush1.bf16.msra.mxu0 0
  %193 = vmatprep.mubr.bf16.mxu0 0
  %194 = vmatmul.mubr.bf16.gmra.mrb[0].mxu0 %v159
  %v195 = vpop.f32.mrb[0].mxu0
  %v196 = vadd.f32 %v144, %v195
  %v197 = vpop.f32.mrb[0].mxu0
  %v198 = vpop.f32.mrb[0].mxu0
  %v199 = vadd.f32 %v144, %v198
  %v200 = vpop.f32.mrb[0].mxu0
  %201 = vdwg.mxu0
  %v202 = vld [vmem:[%s6] sm:$0xf]
  %v203 = vld [vmem:[%s6 + $0x4] sm:$0xf]
  %v204 = vld [vmem:[%s6 + $0x8] sm:$0xf]
  %v205 = vld [vmem:[%s6 + $0xc] sm:$0xf]
  %v206 = vld [vmem:[%s7] sm:$0x1]
  %v208 = vlaneseq
  %v209 = vshrl.u32 %v208, 7
  %v210 = vsub.s32 0, %v209
  %v211 = vrot.slane %v206, %v210
  %v217 = vunpack.c.l.b16 %v202
  %v218 = vunpack.c.l.b16 %v203
  %v219 = vunpack.c.l.b16 %v204
  %v220 = vunpack.c.l.b16 %v205
  %v221 = vpack.c.b16 %v218, %v217
  %v222 = vpack.c.b16 %v220, %v219
  %225 = vmatprep.subr.bf16.mxu0 0
  %226 = vmatpush1.bf16.msra.mxu0 %v221
  %227 = vmatprep.subr.bf16.mxu0 0
  %228 = vmatpush1.bf16.msra.mxu0 %v222
  %229 = vmatprep.subr.bf16.mxu0 0
  %230 = vmatpush1.bf16.msra.mxu0 0
  %231 = vmatprep.subr.bf16.mxu0 0
  %232 = vmatpush1.bf16.msra.mxu0 0
  %233 = vmatprep.subr.bf16.mxu0 0
  %234 = vmatpush1.bf16.msra.mxu0 0
  %235 = vmatprep.subr.bf16.mxu0 0
  %236 = vmatpush1.bf16.msra.mxu0 0
  %237 = vmatprep.subr.bf16.mxu0 0
  %238 = vmatpush1.bf16.msra.mxu0 0
  %239 = vmatprep.subr.bf16.mxu0 0
  %240 = vmatpush1.bf16.msra.mxu0 0
  %241 = vmatprep.subr.bf16.mxu0 0
  %242 = vmatpush1.bf16.msra.mxu0 0
  %243 = vmatprep.subr.bf16.mxu0 0
  %244 = vmatpush1.bf16.msra.mxu0 0
  %245 = vmatprep.subr.bf16.mxu0 0
  %246 = vmatpush1.bf16.msra.mxu0 0
  %247 = vmatprep.subr.bf16.mxu0 0
  %248 = vmatpush1.bf16.msra.mxu0 0
  %249 = vmatprep.subr.bf16.mxu0 0
  %250 = vmatpush1.bf16.msra.mxu0 0
  %251 = vmatprep.subr.bf16.mxu0 0
  %252 = vmatpush1.bf16.msra.mxu0 0
  %253 = vmatprep.subr.bf16.mxu0 0
  %254 = vmatpush1.bf16.msra.mxu0 0
  %255 = vmatprep.subr.bf16.mxu0 0
  %256 = vmatpush1.bf16.msra.mxu0 0
  %257 = vmatprep.mubr.bf16.mxu0 0
  %258 = vmatmul.mubr.bf16.gmra.mrb[0].mxu0 %v159
  %v259 = vpop.f32.mrb[0].mxu0
  %v260 = vadd.f32 %v211, %v259
  %v261 = vpop.f32.mrb[0].mxu0
  %v262 = vpop.f32.mrb[0].mxu0
  %v263 = vadd.f32 %v211, %v262
  %v264 = vpop.f32.mrb[0].mxu0
  %265 = vdwg.mxu0
  %v266 = vld [vmem:[%s8] sm:$0xf]
  %v267 = vld [vmem:[%s8 + $0x4] sm:$0xf]
  %v268 = vld [vmem:[%s8 + $0x8] sm:$0xf]
  %v269 = vld [vmem:[%s8 + $0xc] sm:$0xf]
  %v270 = vld [vmem:[%s9] sm:$0x1]
  %v272 = vlaneseq
  %v273 = vshrl.u32 %v272, 7
  %v274 = vsub.s32 0, %v273
  %v275 = vrot.slane %v270, %v274
  %v281 = vunpack.c.l.b16 %v266
  %v282 = vunpack.c.l.b16 %v267
  %v283 = vunpack.c.l.b16 %v268
  %v284 = vunpack.c.l.b16 %v269
  %v285 = vpack.c.b16 %v282, %v281
  %v286 = vpack.c.b16 %v284, %v283
  %289 = vmatprep.subr.bf16.mxu0 0
  %290 = vmatpush1.bf16.msra.mxu0 %v285
  %291 = vmatprep.subr.bf16.mxu0 0
  %292 = vmatpush1.bf16.msra.mxu0 %v286
  %293 = vmatprep.subr.bf16.mxu0 0
  %294 = vmatpush1.bf16.msra.mxu0 0
  %295 = vmatprep.subr.bf16.mxu0 0
  %296 = vmatpush1.bf16.msra.mxu0 0
  %297 = vmatprep.subr.bf16.mxu0 0
  %298 = vmatpush1.bf16.msra.mxu0 0
  %299 = vmatprep.subr.bf16.mxu0 0
  %300 = vmatpush1.bf16.msra.mxu0 0
  %301 = vmatprep.subr.bf16.mxu0 0
  %302 = vmatpush1.bf16.msra.mxu0 0
  %303 = vmatprep.subr.bf16.mxu0 0
  %304 = vmatpush1.bf16.msra.mxu0 0
  %305 = vmatprep.subr.bf16.mxu0 0
  %306 = vmatpush1.bf16.msra.mxu0 0
  %307 = vmatprep.subr.bf16.mxu0 0
  %308 = vmatpush1.bf16.msra.mxu0 0
  %309 = vmatprep.subr.bf16.mxu0 0
  %310 = vmatpush1.bf16.msra.mxu0 0
  %311 = vmatprep.subr.bf16.mxu0 0
  %312 = vmatpush1.bf16.msra.mxu0 0
  %313 = vmatprep.subr.bf16.mxu0 0
  %314 = vmatpush1.bf16.msra.mxu0 0
  %315 = vmatprep.subr.bf16.mxu0 0
  %316 = vmatpush1.bf16.msra.mxu0 0
  %317 = vmatprep.subr.bf16.mxu0 0
  %318 = vmatpush1.bf16.msra.mxu0 0
  %319 = vmatprep.subr.bf16.mxu0 0
  %320 = vmatpush1.bf16.msra.mxu0 0
  %321 = vmatprep.mubr.bf16.mxu0 0
  %322 = vmatmul.mubr.bf16.gmra.mrb[0].mxu0 %v159
  %v323 = vpop.f32.mrb[0].mxu0
  %v324 = vadd.f32 %v275, %v323
  %v325 = vpop.f32.mrb[0].mxu0
  %v326 = vpop.f32.mrb[0].mxu0
  %v327 = vadd.f32 %v275, %v326
  %v328 = vpop.f32.mrb[0].mxu0
  %329 = vdwg.mxu0
  %s330 = scalar_lea.vmem %s4, 16
  %v331 = vld [vmem:[%s330] sm:$0xf]
  %v332 = vld [vmem:[%s330 + $0x4] sm:$0xf]
  %v333 = vld [vmem:[%s330 + $0x8] sm:$0xf]
  %v334 = vld [vmem:[%s330 + $0xc] sm:$0xf]
  %s335 = scalar_lea.vmem %s5, 1
  %v336 = vld [vmem:[%s335] sm:$0x1]
  %v338 = vlaneseq
  %v339 = vshrl.u32 %v338, 7
  %v340 = vsub.s32 0, %v339
  %v341 = vrot.slane %v336, %v340
  %v347 = vunpack.c.l.b16 %v331
  %v348 = vunpack.c.l.b16 %v332
  %v349 = vunpack.c.l.b16 %v333
  %v350 = vunpack.c.l.b16 %v334
  %v351 = vpack.c.b16 %v348, %v347
  %v352 = vpack.c.b16 %v350, %v349
  %355 = vmatprep.subr.bf16.mxu0 0
  %356 = vmatpush1.bf16.msra.mxu0 %v351
  %357 = vmatprep.subr.bf16.mxu0 0
  %358 = vmatpush1.bf16.msra.mxu0 %v352
  %359 = vmatprep.subr.bf16.mxu0 0
  %360 = vmatpush1.bf16.msra.mxu0 0
  %361 = vmatprep.subr.bf16.mxu0 0
  %362 = vmatpush1.bf16.msra.mxu0 0
  %363 = vmatprep.subr.bf16.mxu0 0
  %364 = vmatpush1.bf16.msra.mxu0 0
  %365 = vmatprep.subr.bf16.mxu0 0
  %366 = vmatpush1.bf16.msra.mxu0 0
  %367 = vmatprep.subr.bf16.mxu0 0
  %368 = vmatpush1.bf16.msra.mxu0 0
  %369 = vmatprep.subr.bf16.mxu0 0
  %370 = vmatpush1.bf16.msra.mxu0 0
  %371 = vmatprep.subr.bf16.mxu0 0
  %372 = vmatpush1.bf16.msra.mxu0 0
  %373 = vmatprep.subr.bf16.mxu0 0
  %374 = vmatpush1.bf16.msra.mxu0 0
  %375 = vmatprep.subr.bf16.mxu0 0
  %376 = vmatpush1.bf16.msra.mxu0 0
  %377 = vmatprep.subr.bf16.mxu0 0
  %378 = vmatpush1.bf16.msra.mxu0 0
  %379 = vmatprep.subr.bf16.mxu0 0
  %380 = vmatpush1.bf16.msra.mxu0 0
  %381 = vmatprep.subr.bf16.mxu0 0
  %382 = vmatpush1.bf16.msra.mxu0 0
  %383 = vmatprep.subr.bf16.mxu0 0
  %384 = vmatpush1.bf16.msra.mxu0 0
  %385 = vmatprep.subr.bf16.mxu0 0
  %386 = vmatpush1.bf16.msra.mxu0 0
  %387 = vmatprep.mubr.bf16.mxu0 0
  %388 = vmatmul.mubr.bf16.gmra.mrb[0].mxu0 %v159
  %v389 = vpop.f32.mrb[0].mxu0
  %v390 = vadd.f32 %v341, %v389
  %v391 = vpop.f32.mrb[0].mxu0
  %v392 = vpop.f32.mrb[0].mxu0
  %v393 = vadd.f32 %v341, %v392
  %v394 = vpop.f32.mrb[0].mxu0
  %395 = vdwg.mxu0
  %s396 = scalar_lea.vmem %s6, 16
  %v397 = vld [vmem:[%s396] sm:$0xf]
  %v398 = vld [vmem:[%s396 + $0x4] sm:$0xf]
  %v399 = vld [vmem:[%s396 + $0x8] sm:$0xf]
  %v400 = vld [vmem:[%s396 + $0xc] sm:$0xf]
  %s401 = scalar_lea.vmem %s7, 1
  %v402 = vld [vmem:[%s401] sm:$0x1]
  %v404 = vlaneseq
  %v405 = vshrl.u32 %v404, 7
  %v406 = vsub.s32 0, %v405
  %v407 = vrot.slane %v402, %v406
  %v413 = vunpack.c.l.b16 %v397
  %v414 = vunpack.c.l.b16 %v398
  %v415 = vunpack.c.l.b16 %v399
  %v416 = vunpack.c.l.b16 %v400
  %v417 = vpack.c.b16 %v414, %v413
  %v418 = vpack.c.b16 %v416, %v415
  %421 = vmatprep.subr.bf16.mxu0 0
  %422 = vmatpush1.bf16.msra.mxu0 %v417
  %423 = vmatprep.subr.bf16.mxu0 0
  %424 = vmatpush1.bf16.msra.mxu0 %v418
  %425 = vmatprep.subr.bf16.mxu0 0
  %426 = vmatpush1.bf16.msra.mxu0 0
  %427 = vmatprep.subr.bf16.mxu0 0
  %428 = vmatpush1.bf16.msra.mxu0 0
  %429 = vmatprep.subr.bf16.mxu0 0
  %430 = vmatpush1.bf16.msra.mxu0 0
  %431 = vmatprep.subr.bf16.mxu0 0
  %432 = vmatpush1.bf16.msra.mxu0 0
  %433 = vmatprep.subr.bf16.mxu0 0
  %434 = vmatpush1.bf16.msra.mxu0 0
  %435 = vmatprep.subr.bf16.mxu0 0
  %436 = vmatpush1.bf16.msra.mxu0 0
  %437 = vmatprep.subr.bf16.mxu0 0
  %438 = vmatpush1.bf16.msra.mxu0 0
  %439 = vmatprep.subr.bf16.mxu0 0
  %440 = vmatpush1.bf16.msra.mxu0 0
  %441 = vmatprep.subr.bf16.mxu0 0
  %442 = vmatpush1.bf16.msra.mxu0 0
  %443 = vmatprep.subr.bf16.mxu0 0
  %444 = vmatpush1.bf16.msra.mxu0 0
  %445 = vmatprep.subr.bf16.mxu0 0
  %446 = vmatpush1.bf16.msra.mxu0 0
  %447 = vmatprep.subr.bf16.mxu0 0
  %448 = vmatpush1.bf16.msra.mxu0 0
  %449 = vmatprep.subr.bf16.mxu0 0
  %450 = vmatpush1.bf16.msra.mxu0 0
  %451 = vmatprep.subr.bf16.mxu0 0
  %452 = vmatpush1.bf16.msra.mxu0 0
  %453 = vmatprep.mubr.bf16.mxu0 0
  %454 = vmatmul.mubr.bf16.gmra.mrb[0].mxu0 %v159
  %v455 = vpop.f32.mrb[0].mxu0
  %v456 = vadd.f32 %v407, %v455
  %v457 = vpop.f32.mrb[0].mxu0
  %v458 = vpop.f32.mrb[0].mxu0
  %v459 = vadd.f32 %v407, %v458
  %v460 = vpop.f32.mrb[0].mxu0
  %461 = vdwg.mxu0
  %s462 = scalar_lea.vmem %s8, 16
  %v463 = vld [vmem:[%s462] sm:$0xf]
  %v464 = vld [vmem:[%s462 + $0x4] sm:$0xf]
  %v465 = vld [vmem:[%s462 + $0x8] sm:$0xf]
  %v466 = vld [vmem:[%s462 + $0xc] sm:$0xf]
  %s467 = scalar_lea.vmem %s9, 1
  %v468 = vld [vmem:[%s467] sm:$0x1]
  %v470 = vlaneseq
  %v471 = vshrl.u32 %v470, 7
  %v472 = vsub.s32 0, %v471
  %v473 = vrot.slane %v468, %v472
  %v479 = vunpack.c.l.b16 %v463
  %v480 = vunpack.c.l.b16 %v464
  %v481 = vunpack.c.l.b16 %v465
  %v482 = vunpack.c.l.b16 %v466
  %v483 = vpack.c.b16 %v480, %v479
  %v484 = vpack.c.b16 %v482, %v481
  %487 = vmatprep.subr.bf16.mxu0 0
  %488 = vmatpush1.bf16.msra.mxu0 %v483
  %489 = vmatprep.subr.bf16.mxu0 0
  %490 = vmatpush1.bf16.msra.mxu0 %v484
  %491 = vmatprep.subr.bf16.mxu0 0
  %492 = vmatpush1.bf16.msra.mxu0 0
  %493 = vmatprep.subr.bf16.mxu0 0
  %494 = vmatpush1.bf16.msra.mxu0 0
  %495 = vmatprep.subr.bf16.mxu0 0
  %496 = vmatpush1.bf16.msra.mxu0 0
  %497 = vmatprep.subr.bf16.mxu0 0
  %498 = vmatpush1.bf16.msra.mxu0 0
  %499 = vmatprep.subr.bf16.mxu0 0
  %500 = vmatpush1.bf16.msra.mxu0 0
  %501 = vmatprep.subr.bf16.mxu0 0
  %502 = vmatpush1.bf16.msra.mxu0 0
  %503 = vmatprep.subr.bf16.mxu0 0
  %504 = vmatpush1.bf16.msra.mxu0 0
  %505 = vmatprep.subr.bf16.mxu0 0
  %506 = vmatpush1.bf16.msra.mxu0 0
  %507 = vmatprep.subr.bf16.mxu0 0
  %508 = vmatpush1.bf16.msra.mxu0 0
  %509 = vmatprep.subr.bf16.mxu0 0
  %510 = vmatpush1.bf16.msra.mxu0 0
  %511 = vmatprep.subr.bf16.mxu0 0
  %512 = vmatpush1.bf16.msra.mxu0 0
  %513 = vmatprep.subr.bf16.mxu0 0
  %514 = vmatpush1.bf16.msra.mxu0 0
  %515 = vmatprep.subr.bf16.mxu0 0
  %516 = vmatpush1.bf16.msra.mxu0 0
  %517 = vmatprep.subr.bf16.mxu0 0
  %518 = vmatpush1.bf16.msra.mxu0 0
  %519 = vmatprep.mubr.bf16.mxu0 0
  %520 = vmatmul.mubr.bf16.gmra.mrb[0].mxu0 %v159
  %v521 = vpop.f32.mrb[0].mxu0
  %v522 = vadd.f32 %v473, %v521
  %v523 = vpop.f32.mrb[0].mxu0
  %v524 = vpop.f32.mrb[0].mxu0
  %v525 = vadd.f32 %v473, %v524
  %v526 = vpop.f32.mrb[0].mxu0
  %527 = vdwg.mxu0
  %s528 = scalar_lea.vmem %s4, 32
  %v529 = vld [vmem:[%s528] sm:$0xf]
  %v530 = vld [vmem:[%s528 + $0x4] sm:$0xf]
  %v531 = vld [vmem:[%s528 + $0x8] sm:$0xf]
  %v532 = vld [vmem:[%s528 + $0xc] sm:$0xf]
  %s533 = scalar_lea.vmem %s5, 2
  %v534 = vld [vmem:[%s533] sm:$0x1]
  %v536 = vlaneseq
  %v537 = vshrl.u32 %v536, 7
  %v538 = vsub.s32 0, %v537
  %v539 = vrot.slane %v534, %v538
  %v545 = vunpack.c.l.b16 %v529
  %v546 = vunpack.c.l.b16 %v530
  %v547 = vunpack.c.l.b16 %v531
  %v548 = vunpack.c.l.b16 %v532
  %v549 = vpack.c.b16 %v546, %v545
  %v550 = vpack.c.b16 %v548, %v547
  %553 = vmatprep.subr.bf16.mxu0 0
  %554 = vmatpush1.bf16.msra.mxu0 %v549
  %555 = vmatprep.subr.bf16.mxu0 0
  %556 = vmatpush1.bf16.msra.mxu0 %v550
  %557 = vmatprep.subr.bf16.mxu0 0
  %558 = vmatpush1.bf16.msra.mxu0 0
  %559 = vmatprep.subr.bf16.mxu0 0
  %560 = vmatpush1.bf16.msra.mxu0 0
  %561 = vmatprep.subr.bf16.mxu0 0
  %562 = vmatpush1.bf16.msra.mxu0 0
  %563 = vmatprep.subr.bf16.mxu0 0
  %564 = vmatpush1.bf16.msra.mxu0 0
  %565 = vmatprep.subr.bf16.mxu0 0
  %566 = vmatpush1.bf16.msra.mxu0 0
  %567 = vmatprep.subr.bf16.mxu0 0
  %568 = vmatpush1.bf16.msra.mxu0 0
  %569 = vmatprep.subr.bf16.mxu0 0
  %570 = vmatpush1.bf16.msra.mxu0 0
  %571 = vmatprep.subr.bf16.mxu0 0
  %572 = vmatpush1.bf16.msra.mxu0 0
  %573 = vmatprep.subr.bf16.mxu0 0
  %574 = vmatpush1.bf16.msra.mxu0 0
  %575 = vmatprep.subr.bf16.mxu0 0
  %576 = vmatpush1.bf16.msra.mxu0 0
  %577 = vmatprep.subr.bf16.mxu0 0
  %578 = vmatpush1.bf16.msra.mxu0 0
  %579 = vmatprep.subr.bf16.mxu0 0
  %580 = vmatpush1.bf16.msra.mxu0 0
  %581 = vmatprep.subr.bf16.mxu0 0
  %582 = vmatpush1.bf16.msra.mxu0 0
  %583 = vmatprep.subr.bf16.mxu0 0
  %584 = vmatpush1.bf16.msra.mxu0 0
  %585 = vmatprep.mubr.bf16.mxu0 0
  %586 = vmatmul.mubr.bf16.gmra.mrb[0].mxu0 %v159
  %v587 = vpop.f32.mrb[0].mxu0
  %v588 = vadd.f32 %v539, %v587
  %v589 = vpop.f32.mrb[0].mxu0
  %v590 = vpop.f32.mrb[0].mxu0
  %v591 = vadd.f32 %v539, %v590
  %v592 = vpop.f32.mrb[0].mxu0
  %593 = vdwg.mxu0
  %s594 = scalar_lea.vmem %s6, 32
  %v595 = vld [vmem:[%s594] sm:$0xf]
  %v596 = vld [vmem:[%s594 + $0x4] sm:$0xf]
  %v597 = vld [vmem:[%s594 + $0x8] sm:$0xf]
  %v598 = vld [vmem:[%s594 + $0xc] sm:$0xf]
  %s599 = scalar_lea.vmem %s7, 2
  %v600 = vld [vmem:[%s599] sm:$0x1]
  %v602 = vlaneseq
  %v603 = vshrl.u32 %v602, 7
  %v604 = vsub.s32 0, %v603
  %v605 = vrot.slane %v600, %v604
  %v611 = vunpack.c.l.b16 %v595
  %v612 = vunpack.c.l.b16 %v596
  %v613 = vunpack.c.l.b16 %v597
  %v614 = vunpack.c.l.b16 %v598
  %v615 = vpack.c.b16 %v612, %v611
  %v616 = vpack.c.b16 %v614, %v613
  %619 = vmatprep.subr.bf16.mxu0 0
  %620 = vmatpush1.bf16.msra.mxu0 %v615
  %621 = vmatprep.subr.bf16.mxu0 0
  %622 = vmatpush1.bf16.msra.mxu0 %v616
  %623 = vmatprep.subr.bf16.mxu0 0
  %624 = vmatpush1.bf16.msra.mxu0 0
  %625 = vmatprep.subr.bf16.mxu0 0
  %626 = vmatpush1.bf16.msra.mxu0 0
  %627 = vmatprep.subr.bf16.mxu0 0
  %628 = vmatpush1.bf16.msra.mxu0 0
  %629 = vmatprep.subr.bf16.mxu0 0
  %630 = vmatpush1.bf16.msra.mxu0 0
  %631 = vmatprep.subr.bf16.mxu0 0
  %632 = vmatpush1.bf16.msra.mxu0 0
  %633 = vmatprep.subr.bf16.mxu0 0
  %634 = vmatpush1.bf16.msra.mxu0 0
  %635 = vmatprep.subr.bf16.mxu0 0
  %636 = vmatpush1.bf16.msra.mxu0 0
  %637 = vmatprep.subr.bf16.mxu0 0
  %638 = vmatpush1.bf16.msra.mxu0 0
  %639 = vmatprep.subr.bf16.mxu0 0
  %640 = vmatpush1.bf16.msra.mxu0 0
  %641 = vmatprep.subr.bf16.mxu0 0
  %642 = vmatpush1.bf16.msra.mxu0 0
  %643 = vmatprep.subr.bf16.mxu0 0
  %644 = vmatpush1.bf16.msra.mxu0 0
  %645 = vmatprep.subr.bf16.mxu0 0
  %646 = vmatpush1.bf16.msra.mxu0 0
  %647 = vmatprep.subr.bf16.mxu0 0
  %648 = vmatpush1.bf16.msra.mxu0 0
  %649 = vmatprep.subr.bf16.mxu0 0
  %650 = vmatpush1.bf16.msra.mxu0 0
  %651 = vmatprep.mubr.bf16.mxu0 0
  %652 = vmatmul.mubr.bf16.gmra.mrb[0].mxu0 %v159
  %v653 = vpop.f32.mrb[0].mxu0
  %v654 = vadd.f32 %v605, %v653
  %v655 = vpop.f32.mrb[0].mxu0
  %v656 = vpop.f32.mrb[0].mxu0
  %v657 = vadd.f32 %v605, %v656
  %v658 = vpop.f32.mrb[0].mxu0
  %659 = vdwg.mxu0
  %s660 = scalar_lea.vmem %s8, 32
  %v661 = vld [vmem:[%s660] sm:$0xf]
  %v662 = vld [vmem:[%s660 + $0x4] sm:$0xf]
  %v663 = vld [vmem:[%s660 + $0x8] sm:$0xf]
  %v664 = vld [vmem:[%s660 + $0xc] sm:$0xf]
  %s665 = scalar_lea.vmem %s9, 2
  %v666 = vld [vmem:[%s665] sm:$0x1]
  %v668 = vlaneseq
  %v669 = vshrl.u32 %v668, 7
  %v670 = vsub.s32 0, %v669
  %v671 = vrot.slane %v666, %v670
  %v677 = vunpack.c.l.b16 %v661
  %v678 = vunpack.c.l.b16 %v662
  %v679 = vunpack.c.l.b16 %v663
  %v680 = vunpack.c.l.b16 %v664
  %v681 = vpack.c.b16 %v678, %v677
  %v682 = vpack.c.b16 %v680, %v679
  %685 = vmatprep.subr.bf16.mxu0 0
  %686 = vmatpush1.bf16.msra.mxu0 %v681
  %687 = vmatprep.subr.bf16.mxu0 0
  %688 = vmatpush1.bf16.msra.mxu0 %v682
  %689 = vmatprep.subr.bf16.mxu0 0
  %690 = vmatpush1.bf16.msra.mxu0 0
  %691 = vmatprep.subr.bf16.mxu0 0
  %692 = vmatpush1.bf16.msra.mxu0 0
  %693 = vmatprep.subr.bf16.mxu0 0
  %694 = vmatpush1.bf16.msra.mxu0 0
  %695 = vmatprep.subr.bf16.mxu0 0
  %696 = vmatpush1.bf16.msra.mxu0 0
  %697 = vmatprep.subr.bf16.mxu0 0
  %698 = vmatpush1.bf16.msra.mxu0 0
  %699 = vmatprep.subr.bf16.mxu0 0
  %700 = vmatpush1.bf16.msra.mxu0 0
  %701 = vmatprep.subr.bf16.mxu0 0
  %702 = vmatpush1.bf16.msra.mxu0 0
  %703 = vmatprep.subr.bf16.mxu0 0
  %704 = vmatpush1.bf16.msra.mxu0 0
  %705 = vmatprep.subr.bf16.mxu0 0
  %706 = vmatpush1.bf16.msra.mxu0 0
  %707 = vmatprep.subr.bf16.mxu0 0
  %708 = vmatpush1.bf16.msra.mxu0 0
  %709 = vmatprep.subr.bf16.mxu0 0
  %710 = vmatpush1.bf16.msra.mxu0 0
  %711 = vmatprep.subr.bf16.mxu0 0
  %712 = vmatpush1.bf16.msra.mxu0 0
  %713 = vmatprep.subr.bf16.mxu0 0
  %714 = vmatpush1.bf16.msra.mxu0 0
  %715 = vmatprep.subr.bf16.mxu0 0
  %716 = vmatpush1.bf16.msra.mxu0 0
  %717 = vmatprep.mubr.bf16.mxu0 0
  %718 = vmatmul.mubr.bf16.gmra.mrb[0].mxu0 %v159
  %v719 = vpop.f32.mrb[0].mxu0
  %v720 = vadd.f32 %v671, %v719
  %v721 = vpop.f32.mrb[0].mxu0
  %v722 = vpop.f32.mrb[0].mxu0
  %v723 = vadd.f32 %v671, %v722
  %v724 = vpop.f32.mrb[0].mxu0
  %725 = vdwg.mxu0
  %s726 = scalar_lea.vmem %s4, 48
  %v727 = vld [vmem:[%s726] sm:$0xf]
  %v728 = vld [vmem:[%s726 + $0x4] sm:$0xf]
  %v729 = vld [vmem:[%s726 + $0x8] sm:$0xf]
  %v730 = vld [vmem:[%s726 + $0xc] sm:$0xf]
  %s731 = scalar_lea.vmem %s5, 3
  %v732 = vld [vmem:[%s731] sm:$0x1]
  %v734 = vlaneseq
  %v735 = vshrl.u32 %v734, 7
  %v736 = vsub.s32 0, %v735
  %v737 = vrot.slane %v732, %v736
  %v743 = vunpack.c.l.b16 %v727
  %v744 = vunpack.c.l.b16 %v728
  %v745 = vunpack.c.l.b16 %v729
  %v746 = vunpack.c.l.b16 %v730
  %v747 = vpack.c.b16 %v744, %v743
  %v748 = vpack.c.b16 %v746, %v745
  %751 = vmatprep.subr.bf16.mxu0 0
  %752 = vmatpush1.bf16.msra.mxu0 %v747
  %753 = vmatprep.subr.bf16.mxu0 0
  %754 = vmatpush1.bf16.msra.mxu0 %v748
  %755 = vmatprep.subr.bf16.mxu0 0
  %756 = vmatpush1.bf16.msra.mxu0 0
  %757 = vmatprep.subr.bf16.mxu0 0
  %758 = vmatpush1.bf16.msra.mxu0 0
  %759 = vmatprep.subr.bf16.mxu0 0
  %760 = vmatpush1.bf16.msra.mxu0 0
  %761 = vmatprep.subr.bf16.mxu0 0
  %762 = vmatpush1.bf16.msra.mxu0 0
  %763 = vmatprep.subr.bf16.mxu0 0
  %764 = vmatpush1.bf16.msra.mxu0 0
  %765 = vmatprep.subr.bf16.mxu0 0
  %766 = vmatpush1.bf16.msra.mxu0 0
  %767 = vmatprep.subr.bf16.mxu0 0
  %768 = vmatpush1.bf16.msra.mxu0 0
  %769 = vmatprep.subr.bf16.mxu0 0
  %770 = vmatpush1.bf16.msra.mxu0 0
  %771 = vmatprep.subr.bf16.mxu0 0
  %772 = vmatpush1.bf16.msra.mxu0 0
  %773 = vmatprep.subr.bf16.mxu0 0
  %774 = vmatpush1.bf16.msra.mxu0 0
  %775 = vmatprep.subr.bf16.mxu0 0
  %776 = vmatpush1.bf16.msra.mxu0 0
  %777 = vmatprep.subr.bf16.mxu0 0
  %778 = vmatpush1.bf16.msra.mxu0 0
  %779 = vmatprep.subr.bf16.mxu0 0
  %780 = vmatpush1.bf16.msra.mxu0 0
  %781 = vmatprep.subr.bf16.mxu0 0
  %782 = vmatpush1.bf16.msra.mxu0 0
  %783 = vmatprep.mubr.bf16.mxu0 0
  %784 = vmatmul.mubr.bf16.gmra.mrb[0].mxu0 %v159
  %v785 = vpop.f32.mrb[0].mxu0
  %v786 = vadd.f32 %v737, %v785
  %v787 = vpop.f32.mrb[0].mxu0
  %v788 = vpop.f32.mrb[0].mxu0
  %v789 = vadd.f32 %v737, %v788
  %v790 = vpop.f32.mrb[0].mxu0
  %791 = vdwg.mxu0
  %s792 = scalar_lea.vmem %s6, 48
  %v793 = vld [vmem:[%s792] sm:$0xf]
  %v794 = vld [vmem:[%s792 + $0x4] sm:$0xf]
  %v795 = vld [vmem:[%s792 + $0x8] sm:$0xf]
  %v796 = vld [vmem:[%s792 + $0xc] sm:$0xf]
  %s797 = scalar_lea.vmem %s7, 3
  %v798 = vld [vmem:[%s797] sm:$0x1]
  %v800 = vlaneseq
  %v801 = vshrl.u32 %v800, 7
  %v802 = vsub.s32 0, %v801
  %v803 = vrot.slane %v798, %v802
  %v809 = vunpack.c.l.b16 %v793
  %v810 = vunpack.c.l.b16 %v794
  %v811 = vunpack.c.l.b16 %v795
  %v812 = vunpack.c.l.b16 %v796
  %v813 = vpack.c.b16 %v810, %v809
  %v814 = vpack.c.b16 %v812, %v811
  %817 = vmatprep.subr.bf16.mxu0 0
  %818 = vmatpush1.bf16.msra.mxu0 %v813
  %819 = vmatprep.subr.bf16.mxu0 0
  %820 = vmatpush1.bf16.msra.mxu0 %v814
  %821 = vmatprep.subr.bf16.mxu0 0
  %822 = vmatpush1.bf16.msra.mxu0 0
  %823 = vmatprep.subr.bf16.mxu0 0
  %824 = vmatpush1.bf16.msra.mxu0 0
  %825 = vmatprep.subr.bf16.mxu0 0
  %826 = vmatpush1.bf16.msra.mxu0 0
  %827 = vmatprep.subr.bf16.mxu0 0
  %828 = vmatpush1.bf16.msra.mxu0 0
  %829 = vmatprep.subr.bf16.mxu0 0
  %830 = vmatpush1.bf16.msra.mxu0 0
  %831 = vmatprep.subr.bf16.mxu0 0
  %832 = vmatpush1.bf16.msra.mxu0 0
  %833 = vmatprep.subr.bf16.mxu0 0
  %834 = vmatpush1.bf16.msra.mxu0 0
  %835 = vmatprep.subr.bf16.mxu0 0
  %836 = vmatpush1.bf16.msra.mxu0 0
  %837 = vmatprep.subr.bf16.mxu0 0
  %838 = vmatpush1.bf16.msra.mxu0 0
  %839 = vmatprep.subr.bf16.mxu0 0
  %840 = vmatpush1.bf16.msra.mxu0 0
  %841 = vmatprep.subr.bf16.mxu0 0
  %842 = vmatpush1.bf16.msra.mxu0 0
  %843 = vmatprep.subr.bf16.mxu0 0
  %844 = vmatpush1.bf16.msra.mxu0 0
  %845 = vmatprep.subr.bf16.mxu0 0
  %846 = vmatpush1.bf16.msra.mxu0 0
  %847 = vmatprep.subr.bf16.mxu0 0
  %848 = vmatpush1.bf16.msra.mxu0 0
  %849 = vmatprep.mubr.bf16.mxu0 0
  %850 = vmatmul.mubr.bf16.gmra.mrb[0].mxu0 %v159
  %v851 = vpop.f32.mrb[0].mxu0
  %v852 = vadd.f32 %v803, %v851
  %v853 = vpop.f32.mrb[0].mxu0
  %v854 = vpop.f32.mrb[0].mxu0
  %v855 = vadd.f32 %v803, %v854
  %v856 = vpop.f32.mrb[0].mxu0
  %857 = vdwg.mxu0
  %s858 = scalar_lea.vmem %s8, 48
  %v859 = vld [vmem:[%s858] sm:$0xf]
  %v860 = vld [vmem:[%s858 + $0x4] sm:$0xf]
  %v861 = vld [vmem:[%s858 + $0x8] sm:$0xf]
  %v862 = vld [vmem:[%s858 + $0xc] sm:$0xf]
  %s863 = scalar_lea.vmem %s9, 3
  %v864 = vld [vmem:[%s863] sm:$0x1]
  %v866 = vlaneseq
  %v867 = vshrl.u32 %v866, 7
  %v868 = vsub.s32 0, %v867
  %v869 = vrot.slane %v864, %v868
  %v875 = vunpack.c.l.b16 %v859
  %v876 = vunpack.c.l.b16 %v860
  %v877 = vunpack.c.l.b16 %v861
  %v878 = vunpack.c.l.b16 %v862
  %v879 = vpack.c.b16 %v876, %v875
  %v880 = vpack.c.b16 %v878, %v877
  %883 = vmatprep.subr.bf16.mxu0 0
  %884 = vmatpush1.bf16.msra.mxu0 %v879
  %885 = vmatprep.subr.bf16.mxu0 0
  %886 = vmatpush1.bf16.msra.mxu0 %v880
  %887 = vmatprep.subr.bf16.mxu0 0
  %888 = vmatpush1.bf16.msra.mxu0 0
  %889 = vmatprep.subr.bf16.mxu0 0
  %890 = vmatpush1.bf16.msra.mxu0 0
  %891 = vmatprep.subr.bf16.mxu0 0
  %892 = vmatpush1.bf16.msra.mxu0 0
  %893 = vmatprep.subr.bf16.mxu0 0
  %894 = vmatpush1.bf16.msra.mxu0 0
  %895 = vmatprep.subr.bf16.mxu0 0
  %896 = vmatpush1.bf16.msra.mxu0 0
  %897 = vmatprep.subr.bf16.mxu0 0
  %898 = vmatpush1.bf16.msra.mxu0 0
  %899 = vmatprep.subr.bf16.mxu0 0
  %900 = vmatpush1.bf16.msra.mxu0 0
  %901 = vmatprep.subr.bf16.mxu0 0
  %902 = vmatpush1.bf16.msra.mxu0 0
  %903 = vmatprep.subr.bf16.mxu0 0
  %904 = vmatpush1.bf16.msra.mxu0 0
  %905 = vmatprep.subr.bf16.mxu0 0
  %906 = vmatpush1.bf16.msra.mxu0 0
  %907 = vmatprep.subr.bf16.mxu0 0
  %908 = vmatpush1.bf16.msra.mxu0 0
  %909 = vmatprep.subr.bf16.mxu0 0
  %910 = vmatpush1.bf16.msra.mxu0 0
  %911 = vmatprep.subr.bf16.mxu0 0
  %912 = vmatpush1.bf16.msra.mxu0 0
  %913 = vmatprep.subr.bf16.mxu0 0
  %914 = vmatpush1.bf16.msra.mxu0 0
  %915 = vmatprep.mubr.bf16.mxu0 0
  %916 = vmatmul.mubr.bf16.gmra.mrb[0].mxu0 %v159
  %v917 = vpop.f32.mrb[0].mxu0
  %v918 = vadd.f32 %v869, %v917
  %v919 = vpop.f32.mrb[0].mxu0
  %v920 = vpop.f32.mrb[0].mxu0
  %v921 = vadd.f32 %v869, %v920
  %v922 = vpop.f32.mrb[0].mxu0
  %923 = vdwg.mxu0
  %v924 = vpack.c.bf16 %v196, %v196
  %v925 = vpack.c.bf16 %v199, %v199
  %v926 = vpack.c.bf16 %v390, %v390
  %v927 = vpack.c.bf16 %v393, %v393
  %v928 = vpack.c.bf16 %v588, %v588
  %v929 = vpack.c.bf16 %v591, %v591
  %v930 = vpack.c.bf16 %v786, %v786
  %v931 = vpack.c.bf16 %v789, %v789
  %v932 = vpack.c.bf16 %v260, %v260
  %v933 = vpack.c.bf16 %v263, %v263
  %v934 = vpack.c.bf16 %v456, %v456
  %v935 = vpack.c.bf16 %v459, %v459
  %v936 = vpack.c.bf16 %v654, %v654
  %v937 = vpack.c.bf16 %v657, %v657
  %v938 = vpack.c.bf16 %v852, %v852
  %v939 = vpack.c.bf16 %v855, %v855
  %vm940 = vcmask 64512
  %v942 = vsel %vm940, %v924, 0
  %v945 = vsel %vm940, %v932, 0
  %947 = vmatprep.subr.bf16.mxu0 0
  %948 = vmatpush1.bf16.xpose.msra.mxu0 %v945
  %949 = vmatprep.subr.bf16.mxu0 0
  %950 = vmatpush1.bf16.xpose.msra.mxu0 0
  %951 = vmatprep.subr.bf16.mxu0 0
  %952 = vmatpush1.bf16.xpose.msra.mxu0 0
  %953 = vmatprep.subr.bf16.mxu0 0
  %954 = vmatpush1.bf16.xpose.msra.mxu0 0
  %955 = vmatprep.subr.bf16.mxu0 0
  %956 = vmatpush1.bf16.xpose.msra.mxu0 0
  %957 = vmatprep.subr.bf16.mxu0 0
  %958 = vmatpush1.bf16.xpose.msra.mxu0 0
  %959 = vmatprep.subr.bf16.mxu0 0
  %960 = vmatpush1.bf16.xpose.msra.mxu0 0
  %961 = vmatprep.subr.bf16.mxu0 0
  %962 = vmatpush1.bf16.xpose.msra.mxu0 0
  %963 = vmatprep.subr.bf16.mxu0 0
  %964 = vmatpush1.bf16.xpose.msra.mxu0 0
  %965 = vmatprep.subr.bf16.mxu0 0
  %966 = vmatpush1.bf16.xpose.msra.mxu0 0
  %967 = vmatprep.subr.bf16.mxu0 0
  %968 = vmatpush1.bf16.xpose.msra.mxu0 0
  %969 = vmatprep.subr.bf16.mxu0 0
  %970 = vmatpush1.bf16.xpose.msra.mxu0 0
  %971 = vmatprep.subr.bf16.mxu0 0
  %972 = vmatpush1.bf16.xpose.msra.mxu0 0
  %973 = vmatprep.subr.bf16.mxu0 0
  %974 = vmatpush1.bf16.xpose.msra.mxu0 0
  %975 = vmatprep.subr.bf16.mxu0 0
  %976 = vmatpush1.bf16.xpose.msra.mxu0 0
  %977 = vmatprep.subr.bf16.mxu0 0
  %978 = vmatpush1.bf16.xpose.msra.mxu0 0
  %979 = vmatprep.mubr.bf16.mxu0 0
  %980 = vmatmul.mubr.bf16.gmra.mrb[0].mxu0 %v942
  %v981 = vpop.f32.mrb[0].mxu0
  %v982 = vadd.f32 0.0, %v981
  %v983 = vpop.f32.mrb[0].mxu0
  %v984 = vpop.f32.mrb[0].mxu0
  %v985 = vpop.f32.mrb[0].mxu0
  %986 = vdwg.mxu0
  %v988 = vsel %vm940, %v925, 0
  %v991 = vsel %vm940, %v933, 0
  %993 = vmatprep.subr.bf16.mxu0 0
  %994 = vmatpush1.bf16.xpose.msra.mxu0 %v991
  %995 = vmatprep.subr.bf16.mxu0 0
  %996 = vmatpush1.bf16.xpose.msra.mxu0 0
  %997 = vmatprep.subr.bf16.mxu0 0
  %998 = vmatpush1.bf16.xpose.msra.mxu0 0
  %999 = vmatprep.subr.bf16.mxu0 0
  %1000 = vmatpush1.bf16.xpose.msra.mxu0 0
  %1001 = vmatprep.subr.bf16.mxu0 0
  %1002 = vmatpush1.bf16.xpose.msra.mxu0 0
  %1003 = vmatprep.subr.bf16.mxu0 0
  %1004 = vmatpush1.bf16.xpose.msra.mxu0 0
  %1005 = vmatprep.subr.bf16.mxu0 0
  %1006 = vmatpush1.bf16.xpose.msra.mxu0 0
  %1007 = vmatprep.subr.bf16.mxu0 0
  %1008 = vmatpush1.bf16.xpose.msra.mxu0 0
  %1009 = vmatprep.subr.bf16.mxu0 0
  %1010 = vmatpush1.bf16.xpose.msra.mxu0 0
  %1011 = vmatprep.subr.bf16.mxu0 0
  %1012 = vmatpush1.bf16.xpose.msra.mxu0 0
  %1013 = vmatprep.subr.bf16.mxu0 0
  %1014 = vmatpush1.bf16.xpose.msra.mxu0 0
  %1015 = vmatprep.subr.bf16.mxu0 0
  %1016 = vmatpush1.bf16.xpose.msra.mxu0 0
  %1017 = vmatprep.subr.bf16.mxu0 0
  %1018 = vmatpush1.bf16.xpose.msra.mxu0 0
  %1019 = vmatprep.subr.bf16.mxu0 0
  %1020 = vmatpush1.bf16.xpose.msra.mxu0 0
  %1021 = vmatprep.subr.bf16.mxu0 0
  %1022 = vmatpush1.bf16.xpose.msra.mxu0 0
  %1023 = vmatprep.subr.bf16.mxu0 0
  %1024 = vmatpush1.bf16.xpose.msra.mxu0 0
  %1025 = vmatprep.mubr.bf16.mxu0 0
  %1026 = vmatmul.mubr.bf16.gmra.mrb[0].mxu0 %v988
  %v1027 = vpop.f32.mrb[0].mxu0
  %v1028 = vadd.f32 0.0, %v1027
  %v1029 = vpop.f32.mrb[0].mxu0
  %v1030 = vpop.f32.mrb[0].mxu0
  %v1031 = vpop.f32.mrb[0].mxu0
  %1032 = vdwg.mxu0
  %v1034 = vsel %vm940, %v926, 0
  %v1037 = vsel %vm940, %v934, 0
  %1039 = vmatprep.subr.bf16.mxu0 0
  %1040 = vmatpush1.bf16.xpose.msra.mxu0 %v1037
  %1041 = vmatprep.subr.bf16.mxu0 0
  %1042 = vmatpush1.bf16.xpose.msra.mxu0 0
  %1043 = vmatprep.subr.bf16.mxu0 0
  %1044 = vmatpush1.bf16.xpose.msra.mxu0 0
  %1045 = vmatprep.subr.bf16.mxu0 0
  %1046 = vmatpush1.bf16.xpose.msra.mxu0 0
  %1047 = vmatprep.subr.bf16.mxu0 0
  %1048 = vmatpush1.bf16.xpose.msra.mxu0 0
  %1049 = vmatprep.subr.bf16.mxu0 0
  %1050 = vmatpush1.bf16.xpose.msra.mxu0 0
  %1051 = vmatprep.subr.bf16.mxu0 0
  %1052 = vmatpush1.bf16.xpose.msra.mxu0 0
  %1053 = vmatprep.subr.bf16.mxu0 0
  %1054 = vmatpush1.bf16.xpose.msra.mxu0 0
  %1055 = vmatprep.subr.bf16.mxu0 0
  %1056 = vmatpush1.bf16.xpose.msra.mxu0 0
  %1057 = vmatprep.subr.bf16.mxu0 0
  %1058 = vmatpush1.bf16.xpose.msra.mxu0 0
  %1059 = vmatprep.subr.bf16.mxu0 0
  %1060 = vmatpush1.bf16.xpose.msra.mxu0 0
  %1061 = vmatprep.subr.bf16.mxu0 0
  %1062 = vmatpush1.bf16.xpose.msra.mxu0 0
  %1063 = vmatprep.subr.bf16.mxu0 0
  %1064 = vmatpush1.bf16.xpose.msra.mxu0 0
  %1065 = vmatprep.subr.bf16.mxu0 0
  %1066 = vmatpush1.bf16.xpose.msra.mxu0 0
  %1067 = vmatprep.subr.bf16.mxu0 0
  %1068 = vmatpush1.bf16.xpose.msra.mxu0 0
  %1069 = vmatprep.subr.bf16.mxu0 0
  %1070 = vmatpush1.bf16.xpose.msra.mxu0 0
  %1071 = vmatprep.mubr.bf16.mxu0 0
  %1072 = vmatmul.mubr.bf16.gmra.mrb[0].mxu0 %v1034
  %v1073 = vpop.f32.mrb[0].mxu0
  %v1074 = vadd.f32 0.0, %v1073
  %v1075 = vpop.f32.mrb[0].mxu0
  %v1076 = vpop.f32.mrb[0].mxu0
  %v1077 = vpop.f32.mrb[0].mxu0
  %1078 = vdwg.mxu0
  %v1080 = vsel %vm940, %v927, 0
  %v1083 = vsel %vm940, %v935, 0
  %1085 = vmatprep.subr.bf16.mxu0 0
  %1086 = vmatpush1.bf16.xpose.msra.mxu0 %v1083
  %1087 = vmatprep.subr.bf16.mxu0 0
  %1088 = vmatpush1.bf16.xpose.msra.mxu0 0
  %1089 = vmatprep.subr.bf16.mxu0 0
  %1090 = vmatpush1.bf16.xpose.msra.mxu0 0
  %1091 = vmatprep.subr.bf16.mxu0 0
  %1092 = vmatpush1.bf16.xpose.msra.mxu0 0
  %1093 = vmatprep.subr.bf16.mxu0 0
  %1094 = vmatpush1.bf16.xpose.msra.mxu0 0
  %1095 = vmatprep.subr.bf16.mxu0 0
  %1096 = vmatpush1.bf16.xpose.msra.mxu0 0
  %1097 = vmatprep.subr.bf16.mxu0 0
  %1098 = vmatpush1.bf16.xpose.msra.mxu0 0
  %1099 = vmatprep.subr.bf16.mxu0 0
  %1100 = vmatpush1.bf16.xpose.msra.mxu0 0
  %1101 = vmatprep.subr.bf16.mxu0 0
  %1102 = vmatpush1.bf16.xpose.msra.mxu0 0
  %1103 = vmatprep.subr.bf16.mxu0 0
  %1104 = vmatpush1.bf16.xpose.msra.mxu0 0
  %1105 = vmatprep.subr.bf16.mxu0 0
  %1106 = vmatpush1.bf16.xpose.msra.mxu0 0
  %1107 = vmatprep.subr.bf16.mxu0 0
  %1108 = vmatpush1.bf16.xpose.msra.mxu0 0
  %1109 = vmatprep.subr.bf16.mxu0 0
  %1110 = vmatpush1.bf16.xpose.msra.mxu0 0
  %1111 = vmatprep.subr.bf16.mxu0 0
  %1112 = vmatpush1.bf16.xpose.msra.mxu0 0
  %1113 = vmatprep.subr.bf16.mxu0 0
  %1114 = vmatpush1.bf16.xpose.msra.mxu0 0
  %1115 = vmatprep.subr.bf16.mxu0 0
  %1116 = vmatpush1.bf16.xpose.msra.mxu0 0
  %1117 = vmatprep.mubr.bf16.mxu0 0
  %1118 = vmatmul.mubr.bf16.gmra.mrb[0].mxu0 %v1080
  %v1119 = vpop.f32.mrb[0].mxu0
  %v1120 = vadd.f32 0.0, %v1119
  %v1121 = vpop.f32.mrb[0].mxu0
  %v1122 = vpop.f32.mrb[0].mxu0
  %v1123 = vpop.f32.mrb[0].mxu0
  %1124 = vdwg.mxu0
  %v1126 = vsel %vm940, %v928, 0
  %v1129 = vsel %vm940, %v936, 0
  %1131 = vmatprep.subr.bf16.mxu0 0
  %1132 = vmatpush1.bf16.xpose.msra.mxu0 %v1129
  %1133 = vmatprep.subr.bf16.mxu0 0
  %1134 = vmatpush1.bf16.xpose.msra.mxu0 0
  %1135 = vmatprep.subr.bf16.mxu0 0
  %1136 = vmatpush1.bf16.xpose.msra.mxu0 0
  %1137 = vmatprep.subr.bf16.mxu0 0
  %1138 = vmatpush1.bf16.xpose.msra.mxu0 0
  %1139 = vmatprep.subr.bf16.mxu0 0
  %1140 = vmatpush1.bf16.xpose.msra.mxu0 0
  %1141 = vmatprep.subr.bf16.mxu0 0
  %1142 = vmatpush1.bf16.xpose.msra.mxu0 0
  %1143 = vmatprep.subr.bf16.mxu0 0
  %1144 = vmatpush1.bf16.xpose.msra.mxu0 0
  %1145 = vmatprep.subr.bf16.mxu0 0
  %1146 = vmatpush1.bf16.xpose.msra.mxu0 0
  %1147 = vmatprep.subr.bf16.mxu0 0
  %1148 = vmatpush1.bf16.xpose.msra.mxu0 0
  %1149 = vmatprep.subr.bf16.mxu0 0
  %1150 = vmatpush1.bf16.xpose.msra.mxu0 0
  %1151 = vmatprep.subr.bf16.mxu0 0
  %1152 = vmatpush1.bf16.xpose.msra.mxu0 0
  %1153 = vmatprep.subr.bf16.mxu0 0
  %1154 = vmatpush1.bf16.xpose.msra.mxu0 0
  %1155 = vmatprep.subr.bf16.mxu0 0
  %1156 = vmatpush1.bf16.xpose.msra.mxu0 0
  %1157 = vmatprep.subr.bf16.mxu0 0
  %1158 = vmatpush1.bf16.xpose.msra.mxu0 0
  %1159 = vmatprep.subr.bf16.mxu0 0
  %1160 = vmatpush1.bf16.xpose.msra.mxu0 0
  %1161 = vmatprep.subr.bf16.mxu0 0
  %1162 = vmatpush1.bf16.xpose.msra.mxu0 0
  %1163 = vmatprep.mubr.bf16.mxu0 0
  %1164 = vmatmul.mubr.bf16.gmra.mrb[0].mxu0 %v1126
  %v1165 = vpop.f32.mrb[0].mxu0
  %v1166 = vadd.f32 0.0, %v1165
  %v1167 = vpop.f32.mrb[0].mxu0
  %v1168 = vpop.f32.mrb[0].mxu0
  %v1169 = vpop.f32.mrb[0].mxu0
  %1170 = vdwg.mxu0
  %v1172 = vsel %vm940, %v929, 0
  %v1175 = vsel %vm940, %v937, 0
  %1177 = vmatprep.subr.bf16.mxu0 0
  %1178 = vmatpush1.bf16.xpose.msra.mxu0 %v1175
  %1179 = vmatprep.subr.bf16.mxu0 0
  %1180 = vmatpush1.bf16.xpose.msra.mxu0 0
  %1181 = vmatprep.subr.bf16.mxu0 0
  %1182 = vmatpush1.bf16.xpose.msra.mxu0 0
  %1183 = vmatprep.subr.bf16.mxu0 0
  %1184 = vmatpush1.bf16.xpose.msra.mxu0 0
  %1185 = vmatprep.subr.bf16.mxu0 0
  %1186 = vmatpush1.bf16.xpose.msra.mxu0 0
  %1187 = vmatprep.subr.bf16.mxu0 0
  %1188 = vmatpush1.bf16.xpose.msra.mxu0 0
  %1189 = vmatprep.subr.bf16.mxu0 0
  %1190 = vmatpush1.bf16.xpose.msra.mxu0 0
  %1191 = vmatprep.subr.bf16.mxu0 0
  %1192 = vmatpush1.bf16.xpose.msra.mxu0 0
  %1193 = vmatprep.subr.bf16.mxu0 0
  %1194 = vmatpush1.bf16.xpose.msra.mxu0 0
  %1195 = vmatprep.subr.bf16.mxu0 0
  %1196 = vmatpush1.bf16.xpose.msra.mxu0 0
  %1197 = vmatprep.subr.bf16.mxu0 0
  %1198 = vmatpush1.bf16.xpose.msra.mxu0 0
  %1199 = vmatprep.subr.bf16.mxu0 0
  %1200 = vmatpush1.bf16.xpose.msra.mxu0 0
  %1201 = vmatprep.subr.bf16.mxu0 0
  %1202 = vmatpush1.bf16.xpose.msra.mxu0 0
  %1203 = vmatprep.subr.bf16.mxu0 0
  %1204 = vmatpush1.bf16.xpose.msra.mxu0 0
  %1205 = vmatprep.subr.bf16.mxu0 0
  %1206 = vmatpush1.bf16.xpose.msra.mxu0 0
  %1207 = vmatprep.subr.bf16.mxu0 0
  %1208 = vmatpush1.bf16.xpose.msra.mxu0 0
  %1209 = vmatprep.mubr.bf16.mxu0 0
  %1210 = vmatmul.mubr.bf16.gmra.mrb[0].mxu0 %v1172
  %v1211 = vpop.f32.mrb[0].mxu0
  %v1212 = vadd.f32 0.0, %v1211
  %v1213 = vpop.f32.mrb[0].mxu0
  %v1214 = vpop.f32.mrb[0].mxu0
  %v1215 = vpop.f32.mrb[0].mxu0
  %1216 = vdwg.mxu0
  %v1218 = vsel %vm940, %v930, 0
  %v1221 = vsel %vm940, %v938, 0
  %1223 = vmatprep.subr.bf16.mxu0 0
  %1224 = vmatpush1.bf16.xpose.msra.mxu0 %v1221
  %1225 = vmatprep.subr.bf16.mxu0 0
  %1226 = vmatpush1.bf16.xpose.msra.mxu0 0
  %1227 = vmatprep.subr.bf16.mxu0 0
  %1228 = vmatpush1.bf16.xpose.msra.mxu0 0
  %1229 = vmatprep.subr.bf16.mxu0 0
  %1230 = vmatpush1.bf16.xpose.msra.mxu0 0
  %1231 = vmatprep.subr.bf16.mxu0 0
  %1232 = vmatpush1.bf16.xpose.msra.mxu0 0
  %1233 = vmatprep.subr.bf16.mxu0 0
  %1234 = vmatpush1.bf16.xpose.msra.mxu0 0
  %1235 = vmatprep.subr.bf16.mxu0 0
  %1236 = vmatpush1.bf16.xpose.msra.mxu0 0
  %1237 = vmatprep.subr.bf16.mxu0 0
  %1238 = vmatpush1.bf16.xpose.msra.mxu0 0
  %1239 = vmatprep.subr.bf16.mxu0 0
  %1240 = vmatpush1.bf16.xpose.msra.mxu0 0
  %1241 = vmatprep.subr.bf16.mxu0 0
  %1242 = vmatpush1.bf16.xpose.msra.mxu0 0
  %1243 = vmatprep.subr.bf16.mxu0 0
  %1244 = vmatpush1.bf16.xpose.msra.mxu0 0
  %1245 = vmatprep.subr.bf16.mxu0 0
  %1246 = vmatpush1.bf16.xpose.msra.mxu0 0
  %1247 = vmatprep.subr.bf16.mxu0 0
  %1248 = vmatpush1.bf16.xpose.msra.mxu0 0
  %1249 = vmatprep.subr.bf16.mxu0 0
  %1250 = vmatpush1.bf16.xpose.msra.mxu0 0
  %1251 = vmatprep.subr.bf16.mxu0 0
  %1252 = vmatpush1.bf16.xpose.msra.mxu0 0
  %1253 = vmatprep.subr.bf16.mxu0 0
  %1254 = vmatpush1.bf16.xpose.msra.mxu0 0
  %1255 = vmatprep.mubr.bf16.mxu0 0
  %1256 = vmatmul.mubr.bf16.gmra.mrb[0].mxu0 %v1218
  %v1257 = vpop.f32.mrb[0].mxu0
  %v1258 = vadd.f32 0.0, %v1257
  %v1259 = vpop.f32.mrb[0].mxu0
  %v1260 = vpop.f32.mrb[0].mxu0
  %v1261 = vpop.f32.mrb[0].mxu0
  %1262 = vdwg.mxu0
  %v1264 = vsel %vm940, %v931, 0
  %v1267 = vsel %vm940, %v939, 0
  %1269 = vmatprep.subr.bf16.mxu0 0
  %1270 = vmatpush1.bf16.xpose.msra.mxu0 %v1267
  %1271 = vmatprep.subr.bf16.mxu0 0
  %1272 = vmatpush1.bf16.xpose.msra.mxu0 0
  %1273 = vmatprep.subr.bf16.mxu0 0
  %1274 = vmatpush1.bf16.xpose.msra.mxu0 0
  %1275 = vmatprep.subr.bf16.mxu0 0
  %1276 = vmatpush1.bf16.xpose.msra.mxu0 0
  %1277 = vmatprep.subr.bf16.mxu0 0
  %1278 = vmatpush1.bf16.xpose.msra.mxu0 0
  %1279 = vmatprep.subr.bf16.mxu0 0
  %1280 = vmatpush1.bf16.xpose.msra.mxu0 0
  %1281 = vmatprep.subr.bf16.mxu0 0
  %1282 = vmatpush1.bf16.xpose.msra.mxu0 0
  %1283 = vmatprep.subr.bf16.mxu0 0
  %1284 = vmatpush1.bf16.xpose.msra.mxu0 0
  %1285 = vmatprep.subr.bf16.mxu0 0
  %1286 = vmatpush1.bf16.xpose.msra.mxu0 0
  %1287 = vmatprep.subr.bf16.mxu0 0
  %1288 = vmatpush1.bf16.xpose.msra.mxu0 0
  %1289 = vmatprep.subr.bf16.mxu0 0
  %1290 = vmatpush1.bf16.xpose.msra.mxu0 0
  %1291 = vmatprep.subr.bf16.mxu0 0
  %1292 = vmatpush1.bf16.xpose.msra.mxu0 0
  %1293 = vmatprep.subr.bf16.mxu0 0
  %1294 = vmatpush1.bf16.xpose.msra.mxu0 0
  %1295 = vmatprep.subr.bf16.mxu0 0
  %1296 = vmatpush1.bf16.xpose.msra.mxu0 0
  %1297 = vmatprep.subr.bf16.mxu0 0
  %1298 = vmatpush1.bf16.xpose.msra.mxu0 0
  %1299 = vmatprep.subr.bf16.mxu0 0
  %1300 = vmatpush1.bf16.xpose.msra.mxu0 0
  %1301 = vmatprep.mubr.bf16.mxu0 0
  %1302 = vmatmul.mubr.bf16.gmra.mrb[0].mxu0 %v1264
  %v1303 = vpop.f32.mrb[0].mxu0
  %v1304 = vadd.f32 0.0, %v1303
  %v1305 = vpop.f32.mrb[0].mxu0
  %v1306 = vpop.f32.mrb[0].mxu0
  %v1307 = vpop.f32.mrb[0].mxu0
  %1308 = vdwg.mxu0
  %v1309 = vmul.f32 %v982, 0.35355338
  %v1310 = vmul.f32 %v1028, 0.35355338
  %v1311 = vmul.f32 %v1074, 0.35355338
  %v1312 = vmul.f32 %v1120, 0.35355338
  %v1313 = vmul.f32 %v1166, 0.35355338
  %v1314 = vmul.f32 %v1212, 0.35355338
  %v1315 = vmul.f32 %v1258, 0.35355338
  %v1316 = vmul.f32 %v1304, 0.35355338
  %v1325 = vlaneseq
  %v1326 = vshrl.u32 %v1325, 7
  %v1327 = vsub.s32 0, %v1326
  %v1328 = vrot.slane %v126, %v1327
  %v1329 = vlaneseq
  %v1330 = vshrl.u32 %v1329, 7
  %v1331 = vsub.s32 0, %v1330
  %v1332 = vrot.slane %v127, %v1331
  %v1333 = vlaneseq
  %v1334 = vshrl.u32 %v1333, 7
  %v1335 = vsub.s32 0, %v1334
  %v1336 = vrot.slane %v128, %v1335
  %v1337 = vlaneseq
  %v1338 = vshrl.u32 %v1337, 7
  %v1339 = vsub.s32 0, %v1338
  %v1340 = vrot.slane %v129, %v1339
  %v1341 = vlaneseq
  %v1342 = vshrl.u32 %v1341, 7
  %v1343 = vsub.s32 0, %v1342
  %v1344 = vrot.slane %v130, %v1343
  %v1345 = vlaneseq
  %v1346 = vshrl.u32 %v1345, 7
  %v1347 = vsub.s32 0, %v1346
  %v1348 = vrot.slane %v131, %v1347
  %v1349 = vlaneseq
  %v1350 = vshrl.u32 %v1349, 7
  %v1351 = vsub.s32 0, %v1350
  %v1352 = vrot.slane %v132, %v1351
  %v1353 = vlaneseq
  %v1354 = vshrl.u32 %v1353, 7
  %v1355 = vsub.s32 0, %v1354
  %v1356 = vrot.slane %v133, %v1355
  %v1365 = vadd.f32 %v1309, %v1328
  %v1366 = vadd.f32 %v1310, %v1332
  %v1367 = vadd.f32 %v1311, %v1336
  %v1368 = vadd.f32 %v1312, %v1340
  %v1369 = vadd.f32 %v1313, %v1344
  %v1370 = vadd.f32 %v1314, %v1348
  %v1371 = vadd.f32 %v1315, %v1352
  %v1372 = vadd.f32 %v1316, %v1356
  %v1373 = vsel %vm940, %v1365, -inf
  %1374 = vmax.xlane.f32.xlu0 %v1373
  %v1375 = vpop.xlane.xlu0 %1374
  %v1376 = vsel %vm940, %v1366, -inf
  %1377 = vmax.xlane.f32.xlu0 %v1376
  %v1378 = vpop.xlane.xlu0 %1377
  %v1379 = vsel %vm940, %v1367, -inf
  %1380 = vmax.xlane.f32.xlu0 %v1379
  %v1381 = vpop.xlane.xlu0 %1380
  %v1382 = vsel %vm940, %v1368, -inf
  %1383 = vmax.xlane.f32.xlu0 %v1382
  %v1384 = vpop.xlane.xlu0 %1383
  %v1385 = vsel %vm940, %v1369, -inf
  %1386 = vmax.xlane.f32.xlu0 %v1385
  %v1387 = vpop.xlane.xlu0 %1386
  %v1388 = vsel %vm940, %v1370, -inf
  %1389 = vmax.xlane.f32.xlu0 %v1388
  %v1390 = vpop.xlane.xlu0 %1389
  %v1391 = vsel %vm940, %v1371, -inf
  %1392 = vmax.xlane.f32.xlu0 %v1391
  %v1393 = vpop.xlane.xlu0 %1392
  %v1394 = vsel %vm940, %v1372, -inf
  %1395 = vmax.xlane.f32.xlu0 %v1394
  %v1396 = vpop.xlane.xlu0 %1395
  %v1397 = vsub.f32 %v1365, %v1375
  %v1398 = vsub.f32 %v1366, %v1378
  %v1399 = vsub.f32 %v1367, %v1381
  %v1400 = vsub.f32 %v1368, %v1384
  %v1401 = vsub.f32 %v1369, %v1387
  %v1402 = vsub.f32 %v1370, %v1390
  %v1403 = vsub.f32 %v1371, %v1393
  %v1404 = vsub.f32 %v1372, %v1396
  %v1405 = vmul.f32 %v1397, 1.442695
  %v1406 = vpow.pop %v1405
  %v1407 = vmul.f32 %v1398, 1.442695
  %v1408 = vpow.pop %v1407
  %v1409 = vmul.f32 %v1399, 1.442695
  %v1410 = vpow.pop %v1409
  %v1411 = vmul.f32 %v1400, 1.442695
  %v1412 = vpow.pop %v1411
  %v1413 = vmul.f32 %v1401, 1.442695
  %v1414 = vpow.pop %v1413
  %v1415 = vmul.f32 %v1402, 1.442695
  %v1416 = vpow.pop %v1415
  %v1417 = vmul.f32 %v1403, 1.442695
  %v1418 = vpow.pop %v1417
  %v1419 = vmul.f32 %v1404, 1.442695
  %v1420 = vpow.pop %v1419
  %v1421 = vsel %vm940, %v1406, 0.0
  %1422 = vadd.xlane.f32.xlu0 %v1421
  %v1423 = vpop.xlane.xlu0 %1422
  %v1424 = vsel %vm940, %v1408, 0.0
  %1425 = vadd.xlane.f32.xlu0 %v1424
  %v1426 = vpop.xlane.xlu0 %1425
  %v1427 = vsel %vm940, %v1410, 0.0
  %1428 = vadd.xlane.f32.xlu0 %v1427
  %v1429 = vpop.xlane.xlu0 %1428
  %v1430 = vsel %vm940, %v1412, 0.0
  %1431 = vadd.xlane.f32.xlu0 %v1430
  %v1432 = vpop.xlane.xlu0 %1431
  %v1433 = vsel %vm940, %v1414, 0.0
  %1434 = vadd.xlane.f32.xlu0 %v1433
  %v1435 = vpop.xlane.xlu0 %1434
  %v1436 = vsel %vm940, %v1416, 0.0
  %1437 = vadd.xlane.f32.xlu0 %v1436
  %v1438 = vpop.xlane.xlu0 %1437
  %v1439 = vsel %vm940, %v1418, 0.0
  %1440 = vadd.xlane.f32.xlu0 %v1439
  %v1441 = vpop.xlane.xlu0 %1440
  %v1442 = vsel %vm940, %v1420, 0.0
  %1443 = vadd.xlane.f32.xlu0 %v1442
  %v1444 = vpop.xlane.xlu0 %1443
  %v1445 = vrcp.pop %v1423
  %v1446 = vmul.f32 %v1406, %v1445
  %v1447 = vrcp.pop %v1426
  %v1448 = vmul.f32 %v1408, %v1447
  %v1449 = vrcp.pop %v1429
  %v1450 = vmul.f32 %v1410, %v1449
  %v1451 = vrcp.pop %v1432
  %v1452 = vmul.f32 %v1412, %v1451
  %v1453 = vrcp.pop %v1435
  %v1454 = vmul.f32 %v1414, %v1453
  %v1455 = vrcp.pop %v1438
  %v1456 = vmul.f32 %v1416, %v1455
  %v1457 = vrcp.pop %v1441
  %v1458 = vmul.f32 %v1418, %v1457
  %v1459 = vrcp.pop %v1444
  %v1460 = vmul.f32 %v1420, %v1459
  %v1461 = vpack.c.bf16 %v1446, %v1446
  %v1462 = vpack.c.bf16 %v1448, %v1448
  %v1463 = vpack.c.bf16 %v1450, %v1450
  %v1464 = vpack.c.bf16 %v1452, %v1452
  %v1465 = vpack.c.bf16 %v1454, %v1454
  %v1466 = vpack.c.bf16 %v1456, %v1456
  %v1467 = vpack.c.bf16 %v1458, %v1458
  %v1468 = vpack.c.bf16 %v1460, %v1460
  %v1469 = vpack.c.bf16 %v324, %v324
  %v1470 = vpack.c.bf16 %v327, %v327
  %v1471 = vpack.c.bf16 %v522, %v522
  %v1472 = vpack.c.bf16 %v525, %v525
  %v1473 = vpack.c.bf16 %v720, %v720
  %v1474 = vpack.c.bf16 %v723, %v723
  %v1475 = vpack.c.bf16 %v918, %v918
  %v1476 = vpack.c.bf16 %v921, %v921
  %v1478 = vsel %vm940, %v1461, 0
  %vm1480 = vcmask 1043456
  %v1482 = vsel %vm1480, %v1469, 0
  %1484 = vmatprep.subr.bf16.mxu0 0
  %1485 = vmatpush1.bf16.msra.mxu0 %v1482
  %1486 = vmatprep.subr.bf16.mxu0 0
  %1487 = vmatpush1.bf16.msra.mxu0 0
  %1488 = vmatprep.subr.bf16.mxu0 0
  %1489 = vmatpush1.bf16.msra.mxu0 0
  %1490 = vmatprep.subr.bf16.mxu0 0
  %1491 = vmatpush1.bf16.msra.mxu0 0
  %1492 = vmatprep.subr.bf16.mxu0 0
  %1493 = vmatpush1.bf16.msra.mxu0 0
  %1494 = vmatprep.subr.bf16.mxu0 0
  %1495 = vmatpush1.bf16.msra.mxu0 0
  %1496 = vmatprep.subr.bf16.mxu0 0
  %1497 = vmatpush1.bf16.msra.mxu0 0
  %1498 = vmatprep.subr.bf16.mxu0 0
  %1499 = vmatpush1.bf16.msra.mxu0 0
  %1500 = vmatprep.subr.bf16.mxu0 0
  %1501 = vmatpush1.bf16.msra.mxu0 0
  %1502 = vmatprep.subr.bf16.mxu0 0
  %1503 = vmatpush1.bf16.msra.mxu0 0
  %1504 = vmatprep.subr.bf16.mxu0 0
  %1505 = vmatpush1.bf16.msra.mxu0 0
  %1506 = vmatprep.subr.bf16.mxu0 0
  %1507 = vmatpush1.bf16.msra.mxu0 0
  %1508 = vmatprep.subr.bf16.mxu0 0
  %1509 = vmatpush1.bf16.msra.mxu0 0
  %1510 = vmatprep.subr.bf16.mxu0 0
  %1511 = vmatpush1.bf16.msra.mxu0 0
  %1512 = vmatprep.subr.bf16.mxu0 0
  %1513 = vmatpush1.bf16.msra.mxu0 0
  %1514 = vmatprep.subr.bf16.mxu0 0
  %1515 = vmatpush1.bf16.msra.mxu0 0
  %1516 = vmatprep.mubr.bf16.mxu0 0
  %1517 = vmatmul.mubr.bf16.gmra.mrb[0].mxu0 %v1478
  %v1518 = vpop.f32.mrb[0].mxu0
  %v1519 = vadd.f32 0.0, %v1518
  %v1520 = vpop.f32.mrb[0].mxu0
  %v1521 = vpop.f32.mrb[0].mxu0
  %v1522 = vpop.f32.mrb[0].mxu0
  %1523 = vdwg.mxu0
  %v1525 = vsel %vm940, %v1462, 0
  %v1528 = vsel %vm1480, %v1470, 0
  %1530 = vmatprep.subr.bf16.mxu0 0
  %1531 = vmatpush1.bf16.msra.mxu0 %v1528
  %1532 = vmatprep.subr.bf16.mxu0 0
  %1533 = vmatpush1.bf16.msra.mxu0 0
  %1534 = vmatprep.subr.bf16.mxu0 0
  %1535 = vmatpush1.bf16.msra.mxu0 0
  %1536 = vmatprep.subr.bf16.mxu0 0
  %1537 = vmatpush1.bf16.msra.mxu0 0
  %1538 = vmatprep.subr.bf16.mxu0 0
  %1539 = vmatpush1.bf16.msra.mxu0 0
  %1540 = vmatprep.subr.bf16.mxu0 0
  %1541 = vmatpush1.bf16.msra.mxu0 0
  %1542 = vmatprep.subr.bf16.mxu0 0
  %1543 = vmatpush1.bf16.msra.mxu0 0
  %1544 = vmatprep.subr.bf16.mxu0 0
  %1545 = vmatpush1.bf16.msra.mxu0 0
  %1546 = vmatprep.subr.bf16.mxu0 0
  %1547 = vmatpush1.bf16.msra.mxu0 0
  %1548 = vmatprep.subr.bf16.mxu0 0
  %1549 = vmatpush1.bf16.msra.mxu0 0
  %1550 = vmatprep.subr.bf16.mxu0 0
  %1551 = vmatpush1.bf16.msra.mxu0 0
  %1552 = vmatprep.subr.bf16.mxu0 0
  %1553 = vmatpush1.bf16.msra.mxu0 0
  %1554 = vmatprep.subr.bf16.mxu0 0
  %1555 = vmatpush1.bf16.msra.mxu0 0
  %1556 = vmatprep.subr.bf16.mxu0 0
  %1557 = vmatpush1.bf16.msra.mxu0 0
  %1558 = vmatprep.subr.bf16.mxu0 0
  %1559 = vmatpush1.bf16.msra.mxu0 0
  %1560 = vmatprep.subr.bf16.mxu0 0
  %1561 = vmatpush1.bf16.msra.mxu0 0
  %1562 = vmatprep.mubr.bf16.mxu0 0
  %1563 = vmatmul.mubr.bf16.gmra.mrb[0].mxu0 %v1525
  %v1564 = vpop.f32.mrb[0].mxu0
  %v1565 = vadd.f32 0.0, %v1564
  %v1566 = vpop.f32.mrb[0].mxu0
  %v1567 = vpop.f32.mrb[0].mxu0
  %v1568 = vpop.f32.mrb[0].mxu0
  %1569 = vdwg.mxu0
  %v1571 = vsel %vm940, %v1463, 0
  %v1574 = vsel %vm1480, %v1471, 0
  %1576 = vmatprep.subr.bf16.mxu0 0
  %1577 = vmatpush1.bf16.msra.mxu0 %v1574
  %1578 = vmatprep.subr.bf16.mxu0 0
  %1579 = vmatpush1.bf16.msra.mxu0 0
  %1580 = vmatprep.subr.bf16.mxu0 0
  %1581 = vmatpush1.bf16.msra.mxu0 0
  %1582 = vmatprep.subr.bf16.mxu0 0
  %1583 = vmatpush1.bf16.msra.mxu0 0
  %1584 = vmatprep.subr.bf16.mxu0 0
  %1585 = vmatpush1.bf16.msra.mxu0 0
  %1586 = vmatprep.subr.bf16.mxu0 0
  %1587 = vmatpush1.bf16.msra.mxu0 0
  %1588 = vmatprep.subr.bf16.mxu0 0
  %1589 = vmatpush1.bf16.msra.mxu0 0
  %1590 = vmatprep.subr.bf16.mxu0 0
  %1591 = vmatpush1.bf16.msra.mxu0 0
  %1592 = vmatprep.subr.bf16.mxu0 0
  %1593 = vmatpush1.bf16.msra.mxu0 0
  %1594 = vmatprep.subr.bf16.mxu0 0
  %1595 = vmatpush1.bf16.msra.mxu0 0
  %1596 = vmatprep.subr.bf16.mxu0 0
  %1597 = vmatpush1.bf16.msra.mxu0 0
  %1598 = vmatprep.subr.bf16.mxu0 0
  %1599 = vmatpush1.bf16.msra.mxu0 0
  %1600 = vmatprep.subr.bf16.mxu0 0
  %1601 = vmatpush1.bf16.msra.mxu0 0
  %1602 = vmatprep.subr.bf16.mxu0 0
  %1603 = vmatpush1.bf16.msra.mxu0 0
  %1604 = vmatprep.subr.bf16.mxu0 0
  %1605 = vmatpush1.bf16.msra.mxu0 0
  %1606 = vmatprep.subr.bf16.mxu0 0
  %1607 = vmatpush1.bf16.msra.mxu0 0
  %1608 = vmatprep.mubr.bf16.mxu0 0
  %1609 = vmatmul.mubr.bf16.gmra.mrb[0].mxu0 %v1571
  %v1610 = vpop.f32.mrb[0].mxu0
  %v1611 = vadd.f32 0.0, %v1610
  %v1612 = vpop.f32.mrb[0].mxu0
  %v1613 = vpop.f32.mrb[0].mxu0
  %v1614 = vpop.f32.mrb[0].mxu0
  %1615 = vdwg.mxu0
  %v1617 = vsel %vm940, %v1464, 0
  %v1620 = vsel %vm1480, %v1472, 0
  %1622 = vmatprep.subr.bf16.mxu0 0
  %1623 = vmatpush1.bf16.msra.mxu0 %v1620
  %1624 = vmatprep.subr.bf16.mxu0 0
  %1625 = vmatpush1.bf16.msra.mxu0 0
  %1626 = vmatprep.subr.bf16.mxu0 0
  %1627 = vmatpush1.bf16.msra.mxu0 0
  %1628 = vmatprep.subr.bf16.mxu0 0
  %1629 = vmatpush1.bf16.msra.mxu0 0
  %1630 = vmatprep.subr.bf16.mxu0 0
  %1631 = vmatpush1.bf16.msra.mxu0 0
  %1632 = vmatprep.subr.bf16.mxu0 0
  %1633 = vmatpush1.bf16.msra.mxu0 0
  %1634 = vmatprep.subr.bf16.mxu0 0
  %1635 = vmatpush1.bf16.msra.mxu0 0
  %1636 = vmatprep.subr.bf16.mxu0 0
  %1637 = vmatpush1.bf16.msra.mxu0 0
  %1638 = vmatprep.subr.bf16.mxu0 0
  %1639 = vmatpush1.bf16.msra.mxu0 0
  %1640 = vmatprep.subr.bf16.mxu0 0
  %1641 = vmatpush1.bf16.msra.mxu0 0
  %1642 = vmatprep.subr.bf16.mxu0 0
  %1643 = vmatpush1.bf16.msra.mxu0 0
  %1644 = vmatprep.subr.bf16.mxu0 0
  %1645 = vmatpush1.bf16.msra.mxu0 0
  %1646 = vmatprep.subr.bf16.mxu0 0
  %1647 = vmatpush1.bf16.msra.mxu0 0
  %1648 = vmatprep.subr.bf16.mxu0 0
  %1649 = vmatpush1.bf16.msra.mxu0 0
  %1650 = vmatprep.subr.bf16.mxu0 0
  %1651 = vmatpush1.bf16.msra.mxu0 0
  %1652 = vmatprep.subr.bf16.mxu0 0
  %1653 = vmatpush1.bf16.msra.mxu0 0
  %1654 = vmatprep.mubr.bf16.mxu0 0
  %1655 = vmatmul.mubr.bf16.gmra.mrb[0].mxu0 %v1617
  %v1656 = vpop.f32.mrb[0].mxu0
  %v1657 = vadd.f32 0.0, %v1656
  %v1658 = vpop.f32.mrb[0].mxu0
  %v1659 = vpop.f32.mrb[0].mxu0
  %v1660 = vpop.f32.mrb[0].mxu0
  %1661 = vdwg.mxu0
  %v1663 = vsel %vm940, %v1465, 0
  %v1666 = vsel %vm1480, %v1473, 0
  %1668 = vmatprep.subr.bf16.mxu0 0
  %1669 = vmatpush1.bf16.msra.mxu0 %v1666
  %1670 = vmatprep.subr.bf16.mxu0 0
  %1671 = vmatpush1.bf16.msra.mxu0 0
  %1672 = vmatprep.subr.bf16.mxu0 0
  %1673 = vmatpush1.bf16.msra.mxu0 0
  %1674 = vmatprep.subr.bf16.mxu0 0
  %1675 = vmatpush1.bf16.msra.mxu0 0
  %1676 = vmatprep.subr.bf16.mxu0 0
  %1677 = vmatpush1.bf16.msra.mxu0 0
  %1678 = vmatprep.subr.bf16.mxu0 0
  %1679 = vmatpush1.bf16.msra.mxu0 0
  %1680 = vmatprep.subr.bf16.mxu0 0
  %1681 = vmatpush1.bf16.msra.mxu0 0
  %1682 = vmatprep.subr.bf16.mxu0 0
  %1683 = vmatpush1.bf16.msra.mxu0 0
  %1684 = vmatprep.subr.bf16.mxu0 0
  %1685 = vmatpush1.bf16.msra.mxu0 0
  %1686 = vmatprep.subr.bf16.mxu0 0
  %1687 = vmatpush1.bf16.msra.mxu0 0
  %1688 = vmatprep.subr.bf16.mxu0 0
  %1689 = vmatpush1.bf16.msra.mxu0 0
  %1690 = vmatprep.subr.bf16.mxu0 0
  %1691 = vmatpush1.bf16.msra.mxu0 0
  %1692 = vmatprep.subr.bf16.mxu0 0
  %1693 = vmatpush1.bf16.msra.mxu0 0
  %1694 = vmatprep.subr.bf16.mxu0 0
  %1695 = vmatpush1.bf16.msra.mxu0 0
  %1696 = vmatprep.subr.bf16.mxu0 0
  %1697 = vmatpush1.bf16.msra.mxu0 0
  %1698 = vmatprep.subr.bf16.mxu0 0
  %1699 = vmatpush1.bf16.msra.mxu0 0
  %1700 = vmatprep.mubr.bf16.mxu0 0
  %1701 = vmatmul.mubr.bf16.gmra.mrb[0].mxu0 %v1663
  %v1702 = vpop.f32.mrb[0].mxu0
  %v1703 = vadd.f32 0.0, %v1702
  %v1704 = vpop.f32.mrb[0].mxu0
  %v1705 = vpop.f32.mrb[0].mxu0
  %v1706 = vpop.f32.mrb[0].mxu0
  %1707 = vdwg.mxu0
  %v1709 = vsel %vm940, %v1466, 0
  %v1712 = vsel %vm1480, %v1474, 0
  %1714 = vmatprep.subr.bf16.mxu0 0
  %1715 = vmatpush1.bf16.msra.mxu0 %v1712
  %1716 = vmatprep.subr.bf16.mxu0 0
  %1717 = vmatpush1.bf16.msra.mxu0 0
  %1718 = vmatprep.subr.bf16.mxu0 0
  %1719 = vmatpush1.bf16.msra.mxu0 0
  %1720 = vmatprep.subr.bf16.mxu0 0
  %1721 = vmatpush1.bf16.msra.mxu0 0
  %1722 = vmatprep.subr.bf16.mxu0 0
  %1723 = vmatpush1.bf16.msra.mxu0 0
  %1724 = vmatprep.subr.bf16.mxu0 0
  %1725 = vmatpush1.bf16.msra.mxu0 0
  %1726 = vmatprep.subr.bf16.mxu0 0
  %1727 = vmatpush1.bf16.msra.mxu0 0
  %1728 = vmatprep.subr.bf16.mxu0 0
  %1729 = vmatpush1.bf16.msra.mxu0 0
  %1730 = vmatprep.subr.bf16.mxu0 0
  %1731 = vmatpush1.bf16.msra.mxu0 0
  %1732 = vmatprep.subr.bf16.mxu0 0
  %1733 = vmatpush1.bf16.msra.mxu0 0
  %1734 = vmatprep.subr.bf16.mxu0 0
  %1735 = vmatpush1.bf16.msra.mxu0 0
  %1736 = vmatprep.subr.bf16.mxu0 0
  %1737 = vmatpush1.bf16.msra.mxu0 0
  %1738 = vmatprep.subr.bf16.mxu0 0
  %1739 = vmatpush1.bf16.msra.mxu0 0
  %1740 = vmatprep.subr.bf16.mxu0 0
  %1741 = vmatpush1.bf16.msra.mxu0 0
  %1742 = vmatprep.subr.bf16.mxu0 0
  %1743 = vmatpush1.bf16.msra.mxu0 0
  %1744 = vmatprep.subr.bf16.mxu0 0
  %1745 = vmatpush1.bf16.msra.mxu0 0
  %1746 = vmatprep.mubr.bf16.mxu0 0
  %1747 = vmatmul.mubr.bf16.gmra.mrb[0].mxu0 %v1709
  %v1748 = vpop.f32.mrb[0].mxu0
  %v1749 = vadd.f32 0.0, %v1748
  %v1750 = vpop.f32.mrb[0].mxu0
  %v1751 = vpop.f32.mrb[0].mxu0
  %v1752 = vpop.f32.mrb[0].mxu0
  %1753 = vdwg.mxu0
  %v1755 = vsel %vm940, %v1467, 0
  %v1758 = vsel %vm1480, %v1475, 0
  %1760 = vmatprep.subr.bf16.mxu0 0
  %1761 = vmatpush1.bf16.msra.mxu0 %v1758
  %1762 = vmatprep.subr.bf16.mxu0 0
  %1763 = vmatpush1.bf16.msra.mxu0 0
  %1764 = vmatprep.subr.bf16.mxu0 0
  %1765 = vmatpush1.bf16.msra.mxu0 0
  %1766 = vmatprep.subr.bf16.mxu0 0
  %1767 = vmatpush1.bf16.msra.mxu0 0
  %1768 = vmatprep.subr.bf16.mxu0 0
  %1769 = vmatpush1.bf16.msra.mxu0 0
  %1770 = vmatprep.subr.bf16.mxu0 0
  %1771 = vmatpush1.bf16.msra.mxu0 0
  %1772 = vmatprep.subr.bf16.mxu0 0
  %1773 = vmatpush1.bf16.msra.mxu0 0
  %1774 = vmatprep.subr.bf16.mxu0 0
  %1775 = vmatpush1.bf16.msra.mxu0 0
  %1776 = vmatprep.subr.bf16.mxu0 0
  %1777 = vmatpush1.bf16.msra.mxu0 0
  %1778 = vmatprep.subr.bf16.mxu0 0
  %1779 = vmatpush1.bf16.msra.mxu0 0
  %1780 = vmatprep.subr.bf16.mxu0 0
  %1781 = vmatpush1.bf16.msra.mxu0 0
  %1782 = vmatprep.subr.bf16.mxu0 0
  %1783 = vmatpush1.bf16.msra.mxu0 0
  %1784 = vmatprep.subr.bf16.mxu0 0
  %1785 = vmatpush1.bf16.msra.mxu0 0
  %1786 = vmatprep.subr.bf16.mxu0 0
  %1787 = vmatpush1.bf16.msra.mxu0 0
  %1788 = vmatprep.subr.bf16.mxu0 0
  %1789 = vmatpush1.bf16.msra.mxu0 0
  %1790 = vmatprep.subr.bf16.mxu0 0
  %1791 = vmatpush1.bf16.msra.mxu0 0
  %1792 = vmatprep.mubr.bf16.mxu0 0
  %1793 = vmatmul.mubr.bf16.gmra.mrb[0].mxu0 %v1755
  %v1794 = vpop.f32.mrb[0].mxu0
  %v1795 = vadd.f32 0.0, %v1794
  %v1796 = vpop.f32.mrb[0].mxu0
  %v1797 = vpop.f32.mrb[0].mxu0
  %v1798 = vpop.f32.mrb[0].mxu0
  %1799 = vdwg.mxu0
  %v1801 = vsel %vm940, %v1468, 0
  %v1804 = vsel %vm1480, %v1476, 0
  %1806 = vmatprep.subr.bf16.mxu0 0
  %1807 = vmatpush1.bf16.msra.mxu0 %v1804
  %1808 = vmatprep.subr.bf16.mxu0 0
  %1809 = vmatpush1.bf16.msra.mxu0 0
  %1810 = vmatprep.subr.bf16.mxu0 0
  %1811 = vmatpush1.bf16.msra.mxu0 0
  %1812 = vmatprep.subr.bf16.mxu0 0
  %1813 = vmatpush1.bf16.msra.mxu0 0
  %1814 = vmatprep.subr.bf16.mxu0 0
  %1815 = vmatpush1.bf16.msra.mxu0 0
  %1816 = vmatprep.subr.bf16.mxu0 0
  %1817 = vmatpush1.bf16.msra.mxu0 0
  %1818 = vmatprep.subr.bf16.mxu0 0
  %1819 = vmatpush1.bf16.msra.mxu0 0
  %1820 = vmatprep.subr.bf16.mxu0 0
  %1821 = vmatpush1.bf16.msra.mxu0 0
  %1822 = vmatprep.subr.bf16.mxu0 0
  %1823 = vmatpush1.bf16.msra.mxu0 0
  %1824 = vmatprep.subr.bf16.mxu0 0
  %1825 = vmatpush1.bf16.msra.mxu0 0
  %1826 = vmatprep.subr.bf16.mxu0 0
  %1827 = vmatpush1.bf16.msra.mxu0 0
  %1828 = vmatprep.subr.bf16.mxu0 0
  %1829 = vmatpush1.bf16.msra.mxu0 0
  %1830 = vmatprep.subr.bf16.mxu0 0
  %1831 = vmatpush1.bf16.msra.mxu0 0
  %1832 = vmatprep.subr.bf16.mxu0 0
  %1833 = vmatpush1.bf16.msra.mxu0 0
  %1834 = vmatprep.subr.bf16.mxu0 0
  %1835 = vmatpush1.bf16.msra.mxu0 0
  %1836 = vmatprep.subr.bf16.mxu0 0
  %1837 = vmatpush1.bf16.msra.mxu0 0
  %1838 = vmatprep.mubr.bf16.mxu0 0
  %1839 = vmatmul.mubr.bf16.gmra.mrb[0].mxu0 %v1801
  %v1840 = vpop.f32.mrb[0].mxu0
  %v1841 = vadd.f32 0.0, %v1840
  %v1842 = vpop.f32.mrb[0].mxu0
  %v1843 = vpop.f32.mrb[0].mxu0
  %v1844 = vpop.f32.mrb[0].mxu0
  %1845 = vdwg.mxu0
  %v1846 = vpack.c.bf16 %v1565, %v1519
  %v1847 = vld [vmem:[%s10] sm:$0xf]
  %v1848 = vpack.c.bf16 %v1657, %v1611
  %s1849 = scalar_lea.vmem %s10, 4
  %v1850 = vld [vmem:[%s1849] sm:$0xf]
  %v1852 = vsel %vm940, %v1848, 0
  %v1855 = vsel %vm1480, %v1850, 0
  %1857 = vmatprep.subr.bf16.mxu0 0
  %1858 = vmatpush1.bf16.msra.mxu0 %v1855
  %1859 = vmatprep.subr.bf16.mxu0 0
  %1860 = vmatpush1.bf16.msra.mxu0 0
  %1861 = vmatprep.subr.bf16.mxu0 0
  %1862 = vmatpush1.bf16.msra.mxu0 0
  %1863 = vmatprep.subr.bf16.mxu0 0
  %1864 = vmatpush1.bf16.msra.mxu0 0
  %1865 = vmatprep.subr.bf16.mxu0 0
  %1866 = vmatpush1.bf16.msra.mxu0 0
  %1867 = vmatprep.subr.bf16.mxu0 0
  %1868 = vmatpush1.bf16.msra.mxu0 0
  %1869 = vmatprep.subr.bf16.mxu0 0
  %1870 = vmatpush1.bf16.msra.mxu0 0
  %1871 = vmatprep.subr.bf16.mxu0 0
  %1872 = vmatpush1.bf16.msra.mxu0 0
  %1873 = vmatprep.subr.bf16.mxu0 0
  %1874 = vmatpush1.bf16.msra.mxu0 0
  %1875 = vmatprep.subr.bf16.mxu0 0
  %1876 = vmatpush1.bf16.msra.mxu0 0
  %1877 = vmatprep.subr.bf16.mxu0 0
  %1878 = vmatpush1.bf16.msra.mxu0 0
  %1879 = vmatprep.subr.bf16.mxu0 0
  %1880 = vmatpush1.bf16.msra.mxu0 0
  %1881 = vmatprep.subr.bf16.mxu0 0
  %1882 = vmatpush1.bf16.msra.mxu0 0
  %1883 = vmatprep.subr.bf16.mxu0 0
  %1884 = vmatpush1.bf16.msra.mxu0 0
  %1885 = vmatprep.subr.bf16.mxu0 0
  %1886 = vmatpush1.bf16.msra.mxu0 0
  %1887 = vmatprep.subr.bf16.mxu0 0
  %1888 = vmatpush1.bf16.msra.mxu0 0
  %1889 = vmatprep.mubr.bf16.mxu0 0
  %1890 = vmatmul.mubr.bf16.gmra.mrb[0].mxu0 %v1852
  %v1891 = vpop.f32.mrb[0].mxu0
  %v1892 = vadd.f32 0.0, %v1891
  %v1893 = vpop.f32.mrb[0].mxu0
  %v1894 = vpop.f32.mrb[0].mxu0
  %v1895 = vadd.f32 0.0, %v1894
  %v1896 = vpop.f32.mrb[0].mxu0
  %1897 = vdwg.mxu0
  %v1899 = vsel %vm940, %v1846, 0
  %v1902 = vsel %vm1480, %v1847, 0
  %1904 = vmatprep.subr.bf16.mxu0 0
  %1905 = vmatpush1.bf16.msra.mxu0 %v1902
  %1906 = vmatprep.subr.bf16.mxu0 0
  %1907 = vmatpush1.bf16.msra.mxu0 0
  %1908 = vmatprep.subr.bf16.mxu0 0
  %1909 = vmatpush1.bf16.msra.mxu0 0
  %1910 = vmatprep.subr.bf16.mxu0 0
  %1911 = vmatpush1.bf16.msra.mxu0 0
  %1912 = vmatprep.subr.bf16.mxu0 0
  %1913 = vmatpush1.bf16.msra.mxu0 0
  %1914 = vmatprep.subr.bf16.mxu0 0
  %1915 = vmatpush1.bf16.msra.mxu0 0
  %1916 = vmatprep.subr.bf16.mxu0 0
  %1917 = vmatpush1.bf16.msra.mxu0 0
  %1918 = vmatprep.subr.bf16.mxu0 0
  %1919 = vmatpush1.bf16.msra.mxu0 0
  %1920 = vmatprep.subr.bf16.mxu0 0
  %1921 = vmatpush1.bf16.msra.mxu0 0
  %1922 = vmatprep.subr.bf16.mxu0 0
  %1923 = vmatpush1.bf16.msra.mxu0 0
  %1924 = vmatprep.subr.bf16.mxu0 0
  %1925 = vmatpush1.bf16.msra.mxu0 0
  %1926 = vmatprep.subr.bf16.mxu0 0
  %1927 = vmatpush1.bf16.msra.mxu0 0
  %1928 = vmatprep.subr.bf16.mxu0 0
  %1929 = vmatpush1.bf16.msra.mxu0 0
  %1930 = vmatprep.subr.bf16.mxu0 0
  %1931 = vmatpush1.bf16.msra.mxu0 0
  %1932 = vmatprep.subr.bf16.mxu0 0
  %1933 = vmatpush1.bf16.msra.mxu0 0
  %1934 = vmatprep.subr.bf16.mxu0 0
  %1935 = vmatpush1.bf16.msra.mxu0 0
  %1936 = vmatprep.mubr.bf16.mxu0 0
  %1937 = vmatmul.mubr.bf16.gmra.mrb[0].mxu0 %v1899
  %v1938 = vpop.f32.mrb[0].mxu0
  %v1939 = vadd.f32 %v1892, %v1938
  %v1940 = vpop.f32.mrb[0].mxu0
  %v1941 = vpop.f32.mrb[0].mxu0
  %v1942 = vadd.f32 %v1895, %v1941
  %v1943 = vpop.f32.mrb[0].mxu0
  %1944 = vdwg.mxu0
  %v1945 = vpack.c.bf16 %v1749, %v1703
  %s1946 = scalar_lea.vmem %s10, 8
  %v1947 = vld [vmem:[%s1946] sm:$0xf]
  %v1949 = vsel %vm940, %v1945, 0
  %v1952 = vsel %vm1480, %v1947, 0
  %1954 = vmatprep.subr.bf16.mxu0 0
  %1955 = vmatpush1.bf16.msra.mxu0 %v1952
  %1956 = vmatprep.subr.bf16.mxu0 0
  %1957 = vmatpush1.bf16.msra.mxu0 0
  %1958 = vmatprep.subr.bf16.mxu0 0
  %1959 = vmatpush1.bf16.msra.mxu0 0
  %1960 = vmatprep.subr.bf16.mxu0 0
  %1961 = vmatpush1.bf16.msra.mxu0 0
  %1962 = vmatprep.subr.bf16.mxu0 0
  %1963 = vmatpush1.bf16.msra.mxu0 0
  %1964 = vmatprep.subr.bf16.mxu0 0
  %1965 = vmatpush1.bf16.msra.mxu0 0
  %1966 = vmatprep.subr.bf16.mxu0 0
  %1967 = vmatpush1.bf16.msra.mxu0 0
  %1968 = vmatprep.subr.bf16.mxu0 0
  %1969 = vmatpush1.bf16.msra.mxu0 0
  %1970 = vmatprep.subr.bf16.mxu0 0
  %1971 = vmatpush1.bf16.msra.mxu0 0
  %1972 = vmatprep.subr.bf16.mxu0 0
  %1973 = vmatpush1.bf16.msra.mxu0 0
  %1974 = vmatprep.subr.bf16.mxu0 0
  %1975 = vmatpush1.bf16.msra.mxu0 0
  %1976 = vmatprep.subr.bf16.mxu0 0
  %1977 = vmatpush1.bf16.msra.mxu0 0
  %1978 = vmatprep.subr.bf16.mxu0 0
  %1979 = vmatpush1.bf16.msra.mxu0 0
  %1980 = vmatprep.subr.bf16.mxu0 0
  %1981 = vmatpush1.bf16.msra.mxu0 0
  %1982 = vmatprep.subr.bf16.mxu0 0
  %1983 = vmatpush1.bf16.msra.mxu0 0
  %1984 = vmatprep.subr.bf16.mxu0 0
  %1985 = vmatpush1.bf16.msra.mxu0 0
  %1986 = vmatprep.mubr.bf16.mxu0 0
  %1987 = vmatmul.mubr.bf16.gmra.mrb[0].mxu0 %v1949
  %v1988 = vpop.f32.mrb[0].mxu0
  %v1989 = vadd.f32 0.0, %v1988
  %v1990 = vpop.f32.mrb[0].mxu0
  %v1991 = vpop.f32.mrb[0].mxu0
  %v1992 = vadd.f32 0.0, %v1991
  %v1993 = vpop.f32.mrb[0].mxu0
  %1994 = vdwg.mxu0
  %v1995 = vadd.f32 %v1939, %v1989
  %v1996 = vadd.f32 %v1942, %v1992
  %v1997 = vpack.c.bf16 %v1841, %v1795
  %s1998 = scalar_lea.vmem %s10, 12
  %v1999 = vld [vmem:[%s1998] sm:$0xf]
  %v2001 = vsel %vm940, %v1997, 0
  %v2004 = vsel %vm1480, %v1999, 0
  %2006 = vmatprep.subr.bf16.mxu0 0
  %2007 = vmatpush1.bf16.msra.mxu0 %v2004
  %2008 = vmatprep.subr.bf16.mxu0 0
  %2009 = vmatpush1.bf16.msra.mxu0 0
  %2010 = vmatprep.subr.bf16.mxu0 0
  %2011 = vmatpush1.bf16.msra.mxu0 0
  %2012 = vmatprep.subr.bf16.mxu0 0
  %2013 = vmatpush1.bf16.msra.mxu0 0
  %2014 = vmatprep.subr.bf16.mxu0 0
  %2015 = vmatpush1.bf16.msra.mxu0 0
  %2016 = vmatprep.subr.bf16.mxu0 0
  %2017 = vmatpush1.bf16.msra.mxu0 0
  %2018 = vmatprep.subr.bf16.mxu0 0
  %2019 = vmatpush1.bf16.msra.mxu0 0
  %2020 = vmatprep.subr.bf16.mxu0 0
  %2021 = vmatpush1.bf16.msra.mxu0 0
  %2022 = vmatprep.subr.bf16.mxu0 0
  %2023 = vmatpush1.bf16.msra.mxu0 0
  %2024 = vmatprep.subr.bf16.mxu0 0
  %2025 = vmatpush1.bf16.msra.mxu0 0
  %2026 = vmatprep.subr.bf16.mxu0 0
  %2027 = vmatpush1.bf16.msra.mxu0 0
  %2028 = vmatprep.subr.bf16.mxu0 0
  %2029 = vmatpush1.bf16.msra.mxu0 0
  %2030 = vmatprep.subr.bf16.mxu0 0
  %2031 = vmatpush1.bf16.msra.mxu0 0
  %2032 = vmatprep.subr.bf16.mxu0 0
  %2033 = vmatpush1.bf16.msra.mxu0 0
  %2034 = vmatprep.subr.bf16.mxu0 0
  %2035 = vmatpush1.bf16.msra.mxu0 0
  %2036 = vmatprep.subr.bf16.mxu0 0
  %2037 = vmatpush1.bf16.msra.mxu0 0
  %2038 = vmatprep.mubr.bf16.mxu0 0
  %2039 = vmatmul.mubr.bf16.gmra.mrb[0].mxu0 %v2001
  %v2040 = vpop.f32.mrb[0].mxu0
  %v2041 = vadd.f32 0.0, %v2040
  %v2042 = vpop.f32.mrb[0].mxu0
  %v2043 = vpop.f32.mrb[0].mxu0
  %v2044 = vadd.f32 0.0, %v2043
  %v2045 = vpop.f32.mrb[0].mxu0
  %2046 = vdwg.mxu0
  %v2047 = vadd.f32 %v1995, %v2041
  %v2048 = vadd.f32 %v1996, %v2044
  %v2049 = vld [vmem:[%s11] sm:$0x1]
  %v2051 = vlaneseq
  %v2052 = vshrl.u32 %v2051, 7
  %v2053 = vsub.s32 0, %v2052
  %v2054 = vrot.slane %v2049, %v2053
  %v2056 = vadd.f32 %v2047, %v2054
  %v2057 = vadd.f32 %v2048, %v2054
  %v2058 = vadd.f32 %v2056, %v124
  %v2059 = vadd.f32 %v2057, %v125
  %v2060 = vld [vmem:[%s16] sm:$0x1]
  %v2061 = vld [vmem:[%s17] sm:$0x1]
  %v2062 = vsel %vm82, %v2058, 0.0
  %2063 = vadd.xlane.f32.xlu0 %v2062
  %v2064 = vpop.xlane.xlu0 %2063
  %v2065 = vsel %vm82, %v2059, 0.0
  %2066 = vadd.xlane.f32.xlu0 %v2065
  %v2067 = vpop.xlane.xlu0 %2066
  %v2068 = vmul.f32 %v2064, %v89
  %v2069 = vmul.f32 %v2067, %v89
  %v2070 = vsub.f32 %v2058, %v2068
  %v2071 = vsub.f32 %v2059, %v2069
  %v2072 = vmul.f32 %v2070, %v2070
  %v2073 = vmul.f32 %v2071, %v2071
  %v2074 = vsel %vm82, %v2072, 0.0
  %2075 = vadd.xlane.f32.xlu0 %v2074
  %v2076 = vpop.xlane.xlu0 %2075
  %v2077 = vsel %vm82, %v2073, 0.0
  %2078 = vadd.xlane.f32.xlu0 %v2077
  %v2079 = vpop.xlane.xlu0 %2078
  %v2080 = vmul.f32 %v2076, %v89
  %v2081 = vmul.f32 %v2079, %v89
  %v2082 = vadd.f32 %v2080, 1e-12
  %v2083 = vadd.f32 %v2081, 1e-12
  %v2084 = vrsqrt.pop %v2082
  %v2085 = vrsqrt.pop %v2083
  %v2086 = vmul.f32 %v2070, %v2084
  %v2087 = vmul.f32 %v2071, %v2085
  %v2089 = vlaneseq
  %v2090 = vshrl.u32 %v2089, 7
  %v2091 = vsub.s32 0, %v2090
  %v2092 = vrot.slane %v2060, %v2091
  %v2094 = vmul.f32 %v2086, %v2092
  %v2095 = vmul.f32 %v2087, %v2092
  %v2097 = vlaneseq
  %v2098 = vshrl.u32 %v2097, 7
  %v2099 = vsub.s32 0, %v2098
  %v2100 = vrot.slane %v2061, %v2099
  %v2102 = vadd.f32 %v2094, %v2100
  %v2103 = vadd.f32 %v2095, %v2100
  %v2104 = vpack.c.bf16 %v2103, %v2102
  %v2105 = vld [vmem:[%s12] sm:$0xf]
  %v2106 = vld [vmem:[%s12 + $0x4] sm:$0xf]
  %v2107 = vld [vmem:[%s12 + $0x8] sm:$0xf]
  %v2108 = vld [vmem:[%s12 + $0xc] sm:$0xf]
  %v2109 = vld [vmem:[%s13] sm:$0x1]
  %v2111 = vlaneseq
  %v2112 = vshrl.u32 %v2111, 7
  %v2113 = vsub.s32 0, %v2112
  %v2114 = vrot.slane %v2109, %v2113
  %v2120 = vunpack.c.l.b16 %v2105
  %v2121 = vunpack.c.l.b16 %v2106
  %v2122 = vunpack.c.l.b16 %v2107
  %v2123 = vunpack.c.l.b16 %v2108
  %v2124 = vpack.c.b16 %v2121, %v2120
  %v2125 = vpack.c.b16 %v2123, %v2122
  %v2129 = vsel %vm82, %v2104, 0
  %2131 = vmatprep.subr.bf16.mxu0 0
  %2132 = vmatpush1.bf16.msra.mxu0 %v2124
  %2133 = vmatprep.subr.bf16.mxu0 0
  %2134 = vmatpush1.bf16.msra.mxu0 %v2125
  %2135 = vmatprep.subr.bf16.mxu0 0
  %2136 = vmatpush1.bf16.msra.mxu0 0
  %2137 = vmatprep.subr.bf16.mxu0 0
  %2138 = vmatpush1.bf16.msra.mxu0 0
  %2139 = vmatprep.subr.bf16.mxu0 0
  %2140 = vmatpush1.bf16.msra.mxu0 0
  %2141 = vmatprep.subr.bf16.mxu0 0
  %2142 = vmatpush1.bf16.msra.mxu0 0
  %2143 = vmatprep.subr.bf16.mxu0 0
  %2144 = vmatpush1.bf16.msra.mxu0 0
  %2145 = vmatprep.subr.bf16.mxu0 0
  %2146 = vmatpush1.bf16.msra.mxu0 0
  %2147 = vmatprep.subr.bf16.mxu0 0
  %2148 = vmatpush1.bf16.msra.mxu0 0
  %2149 = vmatprep.subr.bf16.mxu0 0
  %2150 = vmatpush1.bf16.msra.mxu0 0
  %2151 = vmatprep.subr.bf16.mxu0 0
  %2152 = vmatpush1.bf16.msra.mxu0 0
  %2153 = vmatprep.subr.bf16.mxu0 0
  %2154 = vmatpush1.bf16.msra.mxu0 0
  %2155 = vmatprep.subr.bf16.mxu0 0
  %2156 = vmatpush1.bf16.msra.mxu0 0
  %2157 = vmatprep.subr.bf16.mxu0 0
  %2158 = vmatpush1.bf16.msra.mxu0 0
  %2159 = vmatprep.subr.bf16.mxu0 0
  %2160 = vmatpush1.bf16.msra.mxu0 0
  %2161 = vmatprep.subr.bf16.mxu0 0
  %2162 = vmatpush1.bf16.msra.mxu0 0
  %2163 = vmatprep.mubr.bf16.mxu0 0
  %2164 = vmatmul.mubr.bf16.gmra.mrb[0].mxu0 %v2129
  %v2165 = vpop.f32.mrb[0].mxu0
  %v2166 = vadd.f32 %v2114, %v2165
  %v2167 = vpop.f32.mrb[0].mxu0
  %v2168 = vpop.f32.mrb[0].mxu0
  %v2169 = vadd.f32 %v2114, %v2168
  %v2170 = vpop.f32.mrb[0].mxu0
  %2171 = vdwg.mxu0
  %v2172 = vmul.f32 %v2166, 0.5
  %v2173 = vmul.f32 %v2169, 0.5
  %v2174 = vmul.f32 %v2166, 0.044715
  %v2175 = vmul.f32 %v2169, 0.044715
  %v2176 = vmul.f32 %v2174, %v2166
  %v2177 = vmul.f32 %v2175, %v2169
  %v2178 = vmul.f32 %v2176, %v2166
  %v2179 = vmul.f32 %v2177, %v2169
  %v2180 = vadd.f32 %v2166, %v2178
  %v2181 = vadd.f32 %v2169, %v2179
  %v2182 = vmul.f32 %v2180, 0.7978846
  %v2183 = vmul.f32 %v2181, 0.7978846
  %v2184 = vtanh.pop %v2182
  %v2185 = vtanh.pop %v2183
  %v2186 = vadd.f32 %v2184, 1.0
  %v2187 = vadd.f32 %v2185, 1.0
  %v2188 = vmul.f32 %v2172, %v2186
  %v2189 = vmul.f32 %v2173, %v2187
  %v2190 = vpack.c.bf16 %v2189, %v2188
  %v2191 = vld [vmem:[%s14] sm:$0xf]
  %v2192 = vld [vmem:[%s14 + $0x4] sm:$0xf]
  %v2193 = vld [vmem:[%s14 + $0x8] sm:$0xf]
  %v2194 = vld [vmem:[%s14 + $0xc] sm:$0xf]
  %v2195 = vld [vmem:[%s14 + $0x10] sm:$0xf]
  %v2196 = vld [vmem:[%s14 + $0x14] sm:$0xf]
  %v2197 = vld [vmem:[%s14 + $0x18] sm:$0xf]
  %v2198 = vld [vmem:[%s14 + $0x1c] sm:$0xf]
  %v2199 = vld [vmem:[%s15] sm:$0x1]
  %v2201 = vlaneseq
  %v2202 = vshrl.u32 %v2201, 7
  %v2203 = vsub.s32 0, %v2202
  %v2204 = vrot.slane %v2199, %v2203
  %v2214 = vunpack.c.l.b16 %v2191
  %v2215 = vunpack.c.l.b16 %v2192
  %v2216 = vunpack.c.l.b16 %v2193
  %v2217 = vunpack.c.l.b16 %v2194
  %v2218 = vunpack.c.l.b16 %v2195
  %v2219 = vunpack.c.l.b16 %v2196
  %v2220 = vunpack.c.l.b16 %v2197
  %v2221 = vunpack.c.l.b16 %v2198
  %v2222 = vpack.c.b16 %v2215, %v2214
  %v2223 = vpack.c.b16 %v2217, %v2216
  %v2224 = vpack.c.b16 %v2219, %v2218
  %v2225 = vpack.c.b16 %v2221, %v2220
  %vm2230 = vcmask 523264
  %v2232 = vsel %vm2230, %v2190, 0
  %2234 = vmatprep.subr.bf16.mxu0 0
  %2235 = vmatpush1.bf16.msra.mxu0 %v2222
  %2236 = vmatprep.subr.bf16.mxu0 0
  %2237 = vmatpush1.bf16.msra.mxu0 %v2223
  %2238 = vmatprep.subr.bf16.mxu0 0
  %2239 = vmatpush1.bf16.msra.mxu0 %v2224
  %2240 = vmatprep.subr.bf16.mxu0 0
  %2241 = vmatpush1.bf16.msra.mxu0 %v2225
  %2242 = vmatprep.subr.bf16.mxu0 0
  %2243 = vmatpush1.bf16.msra.mxu0 0
  %2244 = vmatprep.subr.bf16.mxu0 0
  %2245 = vmatpush1.bf16.msra.mxu0 0
  %2246 = vmatprep.subr.bf16.mxu0 0
  %2247 = vmatpush1.bf16.msra.mxu0 0
  %2248 = vmatprep.subr.bf16.mxu0 0
  %2249 = vmatpush1.bf16.msra.mxu0 0
  %2250 = vmatprep.subr.bf16.mxu0 0
  %2251 = vmatpush1.bf16.msra.mxu0 0
  %2252 = vmatprep.subr.bf16.mxu0 0
  %2253 = vmatpush1.bf16.msra.mxu0 0
  %2254 = vmatprep.subr.bf16.mxu0 0
  %2255 = vmatpush1.bf16.msra.mxu0 0
  %2256 = vmatprep.subr.bf16.mxu0 0
  %2257 = vmatpush1.bf16.msra.mxu0 0
  %2258 = vmatprep.subr.bf16.mxu0 0
  %2259 = vmatpush1.bf16.msra.mxu0 0
  %2260 = vmatprep.subr.bf16.mxu0 0
  %2261 = vmatpush1.bf16.msra.mxu0 0
  %2262 = vmatprep.subr.bf16.mxu0 0
  %2263 = vmatpush1.bf16.msra.mxu0 0
  %2264 = vmatprep.subr.bf16.mxu0 0
  %2265 = vmatpush1.bf16.msra.mxu0 0
  %2266 = vmatprep.mubr.bf16.mxu0 0
  %2267 = vmatmul.mubr.bf16.gmra.mrb[0].mxu0 %v2232
  %v2268 = vpop.f32.mrb[0].mxu0
  %v2269 = vadd.f32 %v2204, %v2268
  %v2270 = vpop.f32.mrb[0].mxu0
  %v2271 = vpop.f32.mrb[0].mxu0
  %v2272 = vadd.f32 %v2204, %v2271
  %v2273 = vpop.f32.mrb[0].mxu0
  %2274 = vdwg.mxu0
  %v2275 = vadd.f32 %v2269, %v2102
  %v2276 = vadd.f32 %v2272, %v2103
  %v2277 = vld [vmem:[%s18] sm:$0x1]
  %v2278 = vld [vmem:[%s19] sm:$0x1]
  %v2279 = vsel %vm82, %v2275, 0.0
  %2280 = vadd.xlane.f32.xlu0 %v2279
  %v2281 = vpop.xlane.xlu0 %2280
  %v2282 = vsel %vm82, %v2276, 0.0
  %2283 = vadd.xlane.f32.xlu0 %v2282
  %v2284 = vpop.xlane.xlu0 %2283
  %v2285 = vmul.f32 %v2281, %v89
  %v2286 = vmul.f32 %v2284, %v89
  %v2287 = vsub.f32 %v2275, %v2285
  %v2288 = vsub.f32 %v2276, %v2286
  %v2289 = vmul.f32 %v2287, %v2287
  %v2290 = vmul.f32 %v2288, %v2288
  %v2291 = vsel %vm82, %v2289, 0.0
  %2292 = vadd.xlane.f32.xlu0 %v2291
  %v2293 = vpop.xlane.xlu0 %2292
  %v2294 = vsel %vm82, %v2290, 0.0
  %2295 = vadd.xlane.f32.xlu0 %v2294
  %v2296 = vpop.xlane.xlu0 %2295
  %v2297 = vmul.f32 %v2293, %v89
  %v2298 = vmul.f32 %v2296, %v89
  %v2299 = vadd.f32 %v2297, 1e-12
  %v2300 = vadd.f32 %v2298, 1e-12
  %v2301 = vrsqrt.pop %v2299
  %v2302 = vrsqrt.pop %v2300
  %v2303 = vmul.f32 %v2287, %v2301
  %v2304 = vmul.f32 %v2288, %v2302
  %v2306 = vlaneseq
  %v2307 = vshrl.u32 %v2306, 7
  %v2308 = vsub.s32 0, %v2307
  %v2309 = vrot.slane %v2277, %v2308
  %v2311 = vmul.f32 %v2303, %v2309
  %v2312 = vmul.f32 %v2304, %v2309
  %v2314 = vlaneseq
  %v2315 = vshrl.u32 %v2314, 7
  %v2316 = vsub.s32 0, %v2315
  %v2317 = vrot.slane %v2278, %v2316
  %v2319 = vadd.f32 %v2311, %v2317
  %v2320 = vadd.f32 %v2312, %v2317
  %v2321 = vpack.c.bf16 %v2320, %v2319
  %s2322 = scalar_lea.vmem %s4, 64
  %v2323 = vld [vmem:[%s2322] sm:$0xf]
  %v2324 = vld [vmem:[%s2322 + $0x4] sm:$0xf]
  %v2325 = vld [vmem:[%s2322 + $0x8] sm:$0xf]
  %v2326 = vld [vmem:[%s2322 + $0xc] sm:$0xf]
  %s2327 = scalar_lea.vmem %s5, 4
  %v2328 = vld [vmem:[%s2327] sm:$0x1]
  %v2330 = vlaneseq
  %v2331 = vshrl.u32 %v2330, 7
  %v2332 = vsub.s32 0, %v2331
  %v2333 = vrot.slane %v2328, %v2332
  %v2339 = vunpack.c.l.b16 %v2323
  %v2340 = vunpack.c.l.b16 %v2324
  %v2341 = vunpack.c.l.b16 %v2325
  %v2342 = vunpack.c.l.b16 %v2326
  %v2343 = vpack.c.b16 %v2340, %v2339
  %v2344 = vpack.c.b16 %v2342, %v2341
  %v2348 = vsel %vm82, %v2321, 0
  %2350 = vmatprep.subr.bf16.mxu0 0
  %2351 = vmatpush1.bf16.msra.mxu0 %v2343
  %2352 = vmatprep.subr.bf16.mxu0 0
  %2353 = vmatpush1.bf16.msra.mxu0 %v2344
  %2354 = vmatprep.subr.bf16.mxu0 0
  %2355 = vmatpush1.bf16.msra.mxu0 0
  %2356 = vmatprep.subr.bf16.mxu0 0
  %2357 = vmatpush1.bf16.msra.mxu0 0
  %2358 = vmatprep.subr.bf16.mxu0 0
  %2359 = vmatpush1.bf16.msra.mxu0 0
  %2360 = vmatprep.subr.bf16.mxu0 0
  %2361 = vmatpush1.bf16.msra.mxu0 0
  %2362 = vmatprep.subr.bf16.mxu0 0
  %2363 = vmatpush1.bf16.msra.mxu0 0
  %2364 = vmatprep.subr.bf16.mxu0 0
  %2365 = vmatpush1.bf16.msra.mxu0 0
  %2366 = vmatprep.subr.bf16.mxu0 0
  %2367 = vmatpush1.bf16.msra.mxu0 0
  %2368 = vmatprep.subr.bf16.mxu0 0
  %2369 = vmatpush1.bf16.msra.mxu0 0
  %2370 = vmatprep.subr.bf16.mxu0 0
  %2371 = vmatpush1.bf16.msra.mxu0 0
  %2372 = vmatprep.subr.bf16.mxu0 0
  %2373 = vmatpush1.bf16.msra.mxu0 0
  %2374 = vmatprep.subr.bf16.mxu0 0
  %2375 = vmatpush1.bf16.msra.mxu0 0
  %2376 = vmatprep.subr.bf16.mxu0 0
  %2377 = vmatpush1.bf16.msra.mxu0 0
  %2378 = vmatprep.subr.bf16.mxu0 0
  %2379 = vmatpush1.bf16.msra.mxu0 0
  %2380 = vmatprep.subr.bf16.mxu0 0
  %2381 = vmatpush1.bf16.msra.mxu0 0
  %2382 = vmatprep.mubr.bf16.mxu0 0
  %2383 = vmatmul.mubr.bf16.gmra.mrb[0].mxu0 %v2348
  %v2384 = vpop.f32.mrb[0].mxu0
  %v2385 = vadd.f32 %v2333, %v2384
  %v2386 = vpop.f32.mrb[0].mxu0
  %v2387 = vpop.f32.mrb[0].mxu0
  %v2388 = vadd.f32 %v2333, %v2387
  %v2389 = vpop.f32.mrb[0].mxu0
  %2390 = vdwg.mxu0
  %s2391 = scalar_lea.vmem %s6, 64
  %v2392 = vld [vmem:[%s2391] sm:$0xf]
  %v2393 = vld [vmem:[%s2391 + $0x4] sm:$0xf]
  %v2394 = vld [vmem:[%s2391 + $0x8] sm:$0xf]
  %v2395 = vld [vmem:[%s2391 + $0xc] sm:$0xf]
  %s2396 = scalar_lea.vmem %s7, 4
  %v2397 = vld [vmem:[%s2396] sm:$0x1]
  %v2399 = vlaneseq
  %v2400 = vshrl.u32 %v2399, 7
  %v2401 = vsub.s32 0, %v2400
  %v2402 = vrot.slane %v2397, %v2401
  %v2408 = vunpack.c.l.b16 %v2392
  %v2409 = vunpack.c.l.b16 %v2393
  %v2410 = vunpack.c.l.b16 %v2394
  %v2411 = vunpack.c.l.b16 %v2395
  %v2412 = vpack.c.b16 %v2409, %v2408
  %v2413 = vpack.c.b16 %v2411, %v2410
  %2416 = vmatprep.subr.bf16.mxu0 0
  %2417 = vmatpush1.bf16.msra.mxu0 %v2412
  %2418 = vmatprep.subr.bf16.mxu0 0
  %2419 = vmatpush1.bf16.msra.mxu0 %v2413
  %2420 = vmatprep.subr.bf16.mxu0 0
  %2421 = vmatpush1.bf16.msra.mxu0 0
  %2422 = vmatprep.subr.bf16.mxu0 0
  %2423 = vmatpush1.bf16.msra.mxu0 0
  %2424 = vmatprep.subr.bf16.mxu0 0
  %2425 = vmatpush1.bf16.msra.mxu0 0
  %2426 = vmatprep.subr.bf16.mxu0 0
  %2427 = vmatpush1.bf16.msra.mxu0 0
  %2428 = vmatprep.subr.bf16.mxu0 0
  %2429 = vmatpush1.bf16.msra.mxu0 0
  %2430 = vmatprep.subr.bf16.mxu0 0
  %2431 = vmatpush1.bf16.msra.mxu0 0
  %2432 = vmatprep.subr.bf16.mxu0 0
  %2433 = vmatpush1.bf16.msra.mxu0 0
  %2434 = vmatprep.subr.bf16.mxu0 0
  %2435 = vmatpush1.bf16.msra.mxu0 0
  %2436 = vmatprep.subr.bf16.mxu0 0
  %2437 = vmatpush1.bf16.msra.mxu0 0
  %2438 = vmatprep.subr.bf16.mxu0 0
  %2439 = vmatpush1.bf16.msra.mxu0 0
  %2440 = vmatprep.subr.bf16.mxu0 0
  %2441 = vmatpush1.bf16.msra.mxu0 0
  %2442 = vmatprep.subr.bf16.mxu0 0
  %2443 = vmatpush1.bf16.msra.mxu0 0
  %2444 = vmatprep.subr.bf16.mxu0 0
  %2445 = vmatpush1.bf16.msra.mxu0 0
  %2446 = vmatprep.subr.bf16.mxu0 0
  %2447 = vmatpush1.bf16.msra.mxu0 0
  %2448 = vmatprep.mubr.bf16.mxu0 0
  %2449 = vmatmul.mubr.bf16.gmra.mrb[0].mxu0 %v2348
  %v2450 = vpop.f32.mrb[0].mxu0
  %v2451 = vadd.f32 %v2402, %v2450
  %v2452 = vpop.f32.mrb[0].mxu0
  %v2453 = vpop.f32.mrb[0].mxu0
  %v2454 = vadd.f32 %v2402, %v2453
  %v2455 = vpop.f32.mrb[0].mxu0
  %2456 = vdwg.mxu0
  %s2457 = scalar_lea.vmem %s8, 64
  %v2458 = vld [vmem:[%s2457] sm:$0xf]
  %v2459 = vld [vmem:[%s2457 + $0x4] sm:$0xf]
  %v2460 = vld [vmem:[%s2457 + $0x8] sm:$0xf]
  %v2461 = vld [vmem:[%s2457 + $0xc] sm:$0xf]
  %s2462 = scalar_lea.vmem %s9, 4
  %v2463 = vld [vmem:[%s2462] sm:$0x1]
  %v2465 = vlaneseq
  %v2466 = vshrl.u32 %v2465, 7
  %v2467 = vsub.s32 0, %v2466
  %v2468 = vrot.slane %v2463, %v2467
  %v2474 = vunpack.c.l.b16 %v2458
  %v2475 = vunpack.c.l.b16 %v2459
  %v2476 = vunpack.c.l.b16 %v2460
  %v2477 = vunpack.c.l.b16 %v2461
  %v2478 = vpack.c.b16 %v2475, %v2474
  %v2479 = vpack.c.b16 %v2477, %v2476
  %2482 = vmatprep.subr.bf16.mxu0 0
  %2483 = vmatpush1.bf16.msra.mxu0 %v2478
  %2484 = vmatprep.subr.bf16.mxu0 0
  %2485 = vmatpush1.bf16.msra.mxu0 %v2479
  %2486 = vmatprep.subr.bf16.mxu0 0
  %2487 = vmatpush1.bf16.msra.mxu0 0
  %2488 = vmatprep.subr.bf16.mxu0 0
  %2489 = vmatpush1.bf16.msra.mxu0 0
  %2490 = vmatprep.subr.bf16.mxu0 0
  %2491 = vmatpush1.bf16.msra.mxu0 0
  %2492 = vmatprep.subr.bf16.mxu0 0
  %2493 = vmatpush1.bf16.msra.mxu0 0
  %2494 = vmatprep.subr.bf16.mxu0 0
  %2495 = vmatpush1.bf16.msra.mxu0 0
  %2496 = vmatprep.subr.bf16.mxu0 0
  %2497 = vmatpush1.bf16.msra.mxu0 0
  %2498 = vmatprep.subr.bf16.mxu0 0
  %2499 = vmatpush1.bf16.msra.mxu0 0
  %2500 = vmatprep.subr.bf16.mxu0 0
  %2501 = vmatpush1.bf16.msra.mxu0 0
  %2502 = vmatprep.subr.bf16.mxu0 0
  %2503 = vmatpush1.bf16.msra.mxu0 0
  %2504 = vmatprep.subr.bf16.mxu0 0
  %2505 = vmatpush1.bf16.msra.mxu0 0
  %2506 = vmatprep.subr.bf16.mxu0 0
  %2507 = vmatpush1.bf16.msra.mxu0 0
  %2508 = vmatprep.subr.bf16.mxu0 0
  %2509 = vmatpush1.bf16.msra.mxu0 0
  %2510 = vmatprep.subr.bf16.mxu0 0
  %2511 = vmatpush1.bf16.msra.mxu0 0
  %2512 = vmatprep.subr.bf16.mxu0 0
  %2513 = vmatpush1.bf16.msra.mxu0 0
  %2514 = vmatprep.mubr.bf16.mxu0 0
  %2515 = vmatmul.mubr.bf16.gmra.mrb[0].mxu0 %v2348
  %v2516 = vpop.f32.mrb[0].mxu0
  %v2517 = vadd.f32 %v2468, %v2516
  %v2518 = vpop.f32.mrb[0].mxu0
  %v2519 = vpop.f32.mrb[0].mxu0
  %v2520 = vadd.f32 %v2468, %v2519
  %v2521 = vpop.f32.mrb[0].mxu0
  %2522 = vdwg.mxu0
  %s2523 = scalar_lea.vmem %s4, 80
  %v2524 = vld [vmem:[%s2523] sm:$0xf]
  %v2525 = vld [vmem:[%s2523 + $0x4] sm:$0xf]
  %v2526 = vld [vmem:[%s2523 + $0x8] sm:$0xf]
  %v2527 = vld [vmem:[%s2523 + $0xc] sm:$0xf]
  %s2528 = scalar_lea.vmem %s5, 5
  %v2529 = vld [vmem:[%s2528] sm:$0x1]
  %v2531 = vlaneseq
  %v2532 = vshrl.u32 %v2531, 7
  %v2533 = vsub.s32 0, %v2532
  %v2534 = vrot.slane %v2529, %v2533
  %v2540 = vunpack.c.l.b16 %v2524
  %v2541 = vunpack.c.l.b16 %v2525
  %v2542 = vunpack.c.l.b16 %v2526
  %v2543 = vunpack.c.l.b16 %v2527
  %v2544 = vpack.c.b16 %v2541, %v2540
  %v2545 = vpack.c.b16 %v2543, %v2542
  %2548 = vmatprep.subr.bf16.mxu0 0
  %2549 = vmatpush1.bf16.msra.mxu0 %v2544
  %2550 = vmatprep.subr.bf16.mxu0 0
  %2551 = vmatpush1.bf16.msra.mxu0 %v2545
  %2552 = vmatprep.subr.bf16.mxu0 0
  %2553 = vmatpush1.bf16.msra.mxu0 0
  %2554 = vmatprep.subr.bf16.mxu0 0
  %2555 = vmatpush1.bf16.msra.mxu0 0
  %2556 = vmatprep.subr.bf16.mxu0 0
  %2557 = vmatpush1.bf16.msra.mxu0 0
  %2558 = vmatprep.subr.bf16.mxu0 0
  %2559 = vmatpush1.bf16.msra.mxu0 0
  %2560 = vmatprep.subr.bf16.mxu0 0
  %2561 = vmatpush1.bf16.msra.mxu0 0
  %2562 = vmatprep.subr.bf16.mxu0 0
  %2563 = vmatpush1.bf16.msra.mxu0 0
  %2564 = vmatprep.subr.bf16.mxu0 0
  %2565 = vmatpush1.bf16.msra.mxu0 0
  %2566 = vmatprep.subr.bf16.mxu0 0
  %2567 = vmatpush1.bf16.msra.mxu0 0
  %2568 = vmatprep.subr.bf16.mxu0 0
  %2569 = vmatpush1.bf16.msra.mxu0 0
  %2570 = vmatprep.subr.bf16.mxu0 0
  %2571 = vmatpush1.bf16.msra.mxu0 0
  %2572 = vmatprep.subr.bf16.mxu0 0
  %2573 = vmatpush1.bf16.msra.mxu0 0
  %2574 = vmatprep.subr.bf16.mxu0 0
  %2575 = vmatpush1.bf16.msra.mxu0 0
  %2576 = vmatprep.subr.bf16.mxu0 0
  %2577 = vmatpush1.bf16.msra.mxu0 0
  %2578 = vmatprep.subr.bf16.mxu0 0
  %2579 = vmatpush1.bf16.msra.mxu0 0
  %2580 = vmatprep.mubr.bf16.mxu0 0
  %2581 = vmatmul.mubr.bf16.gmra.mrb[0].mxu0 %v2348
  %v2582 = vpop.f32.mrb[0].mxu0
  %v2583 = vadd.f32 %v2534, %v2582
  %v2584 = vpop.f32.mrb[0].mxu0
  %v2585 = vpop.f32.mrb[0].mxu0
  %v2586 = vadd.f32 %v2534, %v2585
  %v2587 = vpop.f32.mrb[0].mxu0
  %2588 = vdwg.mxu0
  %s2589 = scalar_lea.vmem %s6, 80
  %v2590 = vld [vmem:[%s2589] sm:$0xf]
  %v2591 = vld [vmem:[%s2589 + $0x4] sm:$0xf]
  %v2592 = vld [vmem:[%s2589 + $0x8] sm:$0xf]
  %v2593 = vld [vmem:[%s2589 + $0xc] sm:$0xf]
  %s2594 = scalar_lea.vmem %s7, 5
  %v2595 = vld [vmem:[%s2594] sm:$0x1]
  %v2597 = vlaneseq
  %v2598 = vshrl.u32 %v2597, 7
  %v2599 = vsub.s32 0, %v2598
  %v2600 = vrot.slane %v2595, %v2599
  %v2606 = vunpack.c.l.b16 %v2590
  %v2607 = vunpack.c.l.b16 %v2591
  %v2608 = vunpack.c.l.b16 %v2592
  %v2609 = vunpack.c.l.b16 %v2593
  %v2610 = vpack.c.b16 %v2607, %v2606
  %v2611 = vpack.c.b16 %v2609, %v2608
  %2614 = vmatprep.subr.bf16.mxu0 0
  %2615 = vmatpush1.bf16.msra.mxu0 %v2610
  %2616 = vmatprep.subr.bf16.mxu0 0
  %2617 = vmatpush1.bf16.msra.mxu0 %v2611
  %2618 = vmatprep.subr.bf16.mxu0 0
  %2619 = vmatpush1.bf16.msra.mxu0 0
  %2620 = vmatprep.subr.bf16.mxu0 0
  %2621 = vmatpush1.bf16.msra.mxu0 0
  %2622 = vmatprep.subr.bf16.mxu0 0
  %2623 = vmatpush1.bf16.msra.mxu0 0
  %2624 = vmatprep.subr.bf16.mxu0 0
  %2625 = vmatpush1.bf16.msra.mxu0 0
  %2626 = vmatprep.subr.bf16.mxu0 0
  %2627 = vmatpush1.bf16.msra.mxu0 0
  %2628 = vmatprep.subr.bf16.mxu0 0
  %2629 = vmatpush1.bf16.msra.mxu0 0
  %2630 = vmatprep.subr.bf16.mxu0 0
  %2631 = vmatpush1.bf16.msra.mxu0 0
  %2632 = vmatprep.subr.bf16.mxu0 0
  %2633 = vmatpush1.bf16.msra.mxu0 0
  %2634 = vmatprep.subr.bf16.mxu0 0
  %2635 = vmatpush1.bf16.msra.mxu0 0
  %2636 = vmatprep.subr.bf16.mxu0 0
  %2637 = vmatpush1.bf16.msra.mxu0 0
  %2638 = vmatprep.subr.bf16.mxu0 0
  %2639 = vmatpush1.bf16.msra.mxu0 0
  %2640 = vmatprep.subr.bf16.mxu0 0
  %2641 = vmatpush1.bf16.msra.mxu0 0
  %2642 = vmatprep.subr.bf16.mxu0 0
  %2643 = vmatpush1.bf16.msra.mxu0 0
  %2644 = vmatprep.subr.bf16.mxu0 0
  %2645 = vmatpush1.bf16.msra.mxu0 0
  %2646 = vmatprep.mubr.bf16.mxu0 0
  %2647 = vmatmul.mubr.bf16.gmra.mrb[0].mxu0 %v2348
  %v2648 = vpop.f32.mrb[0].mxu0
  %v2649 = vadd.f32 %v2600, %v2648
  %v2650 = vpop.f32.mrb[0].mxu0
  %v2651 = vpop.f32.mrb[0].mxu0
  %v2652 = vadd.f32 %v2600, %v2651
  %v2653 = vpop.f32.mrb[0].mxu0
  %2654 = vdwg.mxu0
  %s2655 = scalar_lea.vmem %s8, 80
  %v2656 = vld [vmem:[%s2655] sm:$0xf]
  %v2657 = vld [vmem:[%s2655 + $0x4] sm:$0xf]
  %v2658 = vld [vmem:[%s2655 + $0x8] sm:$0xf]
  %v2659 = vld [vmem:[%s2655 + $0xc] sm:$0xf]
  %s2660 = scalar_lea.vmem %s9, 5
  %v2661 = vld [vmem:[%s2660] sm:$0x1]
  %v2663 = vlaneseq
  %v2664 = vshrl.u32 %v2663, 7
  %v2665 = vsub.s32 0, %v2664
  %v2666 = vrot.slane %v2661, %v2665
  %v2672 = vunpack.c.l.b16 %v2656
  %v2673 = vunpack.c.l.b16 %v2657
  %v2674 = vunpack.c.l.b16 %v2658
  %v2675 = vunpack.c.l.b16 %v2659
  %v2676 = vpack.c.b16 %v2673, %v2672
  %v2677 = vpack.c.b16 %v2675, %v2674
  %2680 = vmatprep.subr.bf16.mxu0 0
  %2681 = vmatpush1.bf16.msra.mxu0 %v2676
  %2682 = vmatprep.subr.bf16.mxu0 0
  %2683 = vmatpush1.bf16.msra.mxu0 %v2677
  %2684 = vmatprep.subr.bf16.mxu0 0
  %2685 = vmatpush1.bf16.msra.mxu0 0
  %2686 = vmatprep.subr.bf16.mxu0 0
  %2687 = vmatpush1.bf16.msra.mxu0 0
  %2688 = vmatprep.subr.bf16.mxu0 0
  %2689 = vmatpush1.bf16.msra.mxu0 0
  %2690 = vmatprep.subr.bf16.mxu0 0
  %2691 = vmatpush1.bf16.msra.mxu0 0
  %2692 = vmatprep.subr.bf16.mxu0 0
  %2693 = vmatpush1.bf16.msra.mxu0 0
  %2694 = vmatprep.subr.bf16.mxu0 0
  %2695 = vmatpush1.bf16.msra.mxu0 0
  %2696 = vmatprep.subr.bf16.mxu0 0
  %2697 = vmatpush1.bf16.msra.mxu0 0
  %2698 = vmatprep.subr.bf16.mxu0 0
  %2699 = vmatpush1.bf16.msra.mxu0 0
  %2700 = vmatprep.subr.bf16.mxu0 0
  %2701 = vmatpush1.bf16.msra.mxu0 0
  %2702 = vmatprep.subr.bf16.mxu0 0
  %2703 = vmatpush1.bf16.msra.mxu0 0
  %2704 = vmatprep.subr.bf16.mxu0 0
  %2705 = vmatpush1.bf16.msra.mxu0 0
  %2706 = vmatprep.subr.bf16.mxu0 0
  %2707 = vmatpush1.bf16.msra.mxu0 0
  %2708 = vmatprep.subr.bf16.mxu0 0
  %2709 = vmatpush1.bf16.msra.mxu0 0
  %2710 = vmatprep.subr.bf16.mxu0 0
  %2711 = vmatpush1.bf16.msra.mxu0 0
  %2712 = vmatprep.mubr.bf16.mxu0 0
  %2713 = vmatmul.mubr.bf16.gmra.mrb[0].mxu0 %v2348
  %v2714 = vpop.f32.mrb[0].mxu0
  %v2715 = vadd.f32 %v2666, %v2714
  %v2716 = vpop.f32.mrb[0].mxu0
  %v2717 = vpop.f32.mrb[0].mxu0
  %v2718 = vadd.f32 %v2666, %v2717
  %v2719 = vpop.f32.mrb[0].mxu0
  %2720 = vdwg.mxu0
  %s2721 = scalar_lea.vmem %s4, 96
  %v2722 = vld [vmem:[%s2721] sm:$0xf]
  %v2723 = vld [vmem:[%s2721 + $0x4] sm:$0xf]
  %v2724 = vld [vmem:[%s2721 + $0x8] sm:$0xf]
  %v2725 = vld [vmem:[%s2721 + $0xc] sm:$0xf]
  %s2726 = scalar_lea.vmem %s5, 6
  %v2727 = vld [vmem:[%s2726] sm:$0x1]
  %v2729 = vlaneseq
  %v2730 = vshrl.u32 %v2729, 7
  %v2731 = vsub.s32 0, %v2730
  %v2732 = vrot.slane %v2727, %v2731
  %v2738 = vunpack.c.l.b16 %v2722
  %v2739 = vunpack.c.l.b16 %v2723
  %v2740 = vunpack.c.l.b16 %v2724
  %v2741 = vunpack.c.l.b16 %v2725
  %v2742 = vpack.c.b16 %v2739, %v2738
  %v2743 = vpack.c.b16 %v2741, %v2740
  %2746 = vmatprep.subr.bf16.mxu0 0
  %2747 = vmatpush1.bf16.msra.mxu0 %v2742
  %2748 = vmatprep.subr.bf16.mxu0 0
  %2749 = vmatpush1.bf16.msra.mxu0 %v2743
  %2750 = vmatprep.subr.bf16.mxu0 0
  %2751 = vmatpush1.bf16.msra.mxu0 0
  %2752 = vmatprep.subr.bf16.mxu0 0
  %2753 = vmatpush1.bf16.msra.mxu0 0
  %2754 = vmatprep.subr.bf16.mxu0 0
  %2755 = vmatpush1.bf16.msra.mxu0 0
  %2756 = vmatprep.subr.bf16.mxu0 0
  %2757 = vmatpush1.bf16.msra.mxu0 0
  %2758 = vmatprep.subr.bf16.mxu0 0
  %2759 = vmatpush1.bf16.msra.mxu0 0
  %2760 = vmatprep.subr.bf16.mxu0 0
  %2761 = vmatpush1.bf16.msra.mxu0 0
  %2762 = vmatprep.subr.bf16.mxu0 0
  %2763 = vmatpush1.bf16.msra.mxu0 0
  %2764 = vmatprep.subr.bf16.mxu0 0
  %2765 = vmatpush1.bf16.msra.mxu0 0
  %2766 = vmatprep.subr.bf16.mxu0 0
  %2767 = vmatpush1.bf16.msra.mxu0 0
  %2768 = vmatprep.subr.bf16.mxu0 0
  %2769 = vmatpush1.bf16.msra.mxu0 0
  %2770 = vmatprep.subr.bf16.mxu0 0
  %2771 = vmatpush1.bf16.msra.mxu0 0
  %2772 = vmatprep.subr.bf16.mxu0 0
  %2773 = vmatpush1.bf16.msra.mxu0 0
  %2774 = vmatprep.subr.bf16.mxu0 0
  %2775 = vmatpush1.bf16.msra.mxu0 0
  %2776 = vmatprep.subr.bf16.mxu0 0
  %2777 = vmatpush1.bf16.msra.mxu0 0
  %2778 = vmatprep.mubr.bf16.mxu0 0
  %2779 = vmatmul.mubr.bf16.gmra.mrb[0].mxu0 %v2348
  %v2780 = vpop.f32.mrb[0].mxu0
  %v2781 = vadd.f32 %v2732, %v2780
  %v2782 = vpop.f32.mrb[0].mxu0
  %v2783 = vpop.f32.mrb[0].mxu0
  %v2784 = vadd.f32 %v2732, %v2783
  %v2785 = vpop.f32.mrb[0].mxu0
  %2786 = vdwg.mxu0
  %s2787 = scalar_lea.vmem %s6, 96
  %v2788 = vld [vmem:[%s2787] sm:$0xf]
  %v2789 = vld [vmem:[%s2787 + $0x4] sm:$0xf]
  %v2790 = vld [vmem:[%s2787 + $0x8] sm:$0xf]
  %v2791 = vld [vmem:[%s2787 + $0xc] sm:$0xf]
  %s2792 = scalar_lea.vmem %s7, 6
  %v2793 = vld [vmem:[%s2792] sm:$0x1]
  %v2795 = vlaneseq
  %v2796 = vshrl.u32 %v2795, 7
  %v2797 = vsub.s32 0, %v2796
  %v2798 = vrot.slane %v2793, %v2797
  %v2804 = vunpack.c.l.b16 %v2788
  %v2805 = vunpack.c.l.b16 %v2789
  %v2806 = vunpack.c.l.b16 %v2790
  %v2807 = vunpack.c.l.b16 %v2791
  %v2808 = vpack.c.b16 %v2805, %v2804
  %v2809 = vpack.c.b16 %v2807, %v2806
  %2812 = vmatprep.subr.bf16.mxu0 0
  %2813 = vmatpush1.bf16.msra.mxu0 %v2808
  %2814 = vmatprep.subr.bf16.mxu0 0
  %2815 = vmatpush1.bf16.msra.mxu0 %v2809
  %2816 = vmatprep.subr.bf16.mxu0 0
  %2817 = vmatpush1.bf16.msra.mxu0 0
  %2818 = vmatprep.subr.bf16.mxu0 0
  %2819 = vmatpush1.bf16.msra.mxu0 0
  %2820 = vmatprep.subr.bf16.mxu0 0
  %2821 = vmatpush1.bf16.msra.mxu0 0
  %2822 = vmatprep.subr.bf16.mxu0 0
  %2823 = vmatpush1.bf16.msra.mxu0 0
  %2824 = vmatprep.subr.bf16.mxu0 0
  %2825 = vmatpush1.bf16.msra.mxu0 0
  %2826 = vmatprep.subr.bf16.mxu0 0
  %2827 = vmatpush1.bf16.msra.mxu0 0
  %2828 = vmatprep.subr.bf16.mxu0 0
  %2829 = vmatpush1.bf16.msra.mxu0 0
  %2830 = vmatprep.subr.bf16.mxu0 0
  %2831 = vmatpush1.bf16.msra.mxu0 0
  %2832 = vmatprep.subr.bf16.mxu0 0
  %2833 = vmatpush1.bf16.msra.mxu0 0
  %2834 = vmatprep.subr.bf16.mxu0 0
  %2835 = vmatpush1.bf16.msra.mxu0 0
  %2836 = vmatprep.subr.bf16.mxu0 0
  %2837 = vmatpush1.bf16.msra.mxu0 0
  %2838 = vmatprep.subr.bf16.mxu0 0
  %2839 = vmatpush1.bf16.msra.mxu0 0
  %2840 = vmatprep.subr.bf16.mxu0 0
  %2841 = vmatpush1.bf16.msra.mxu0 0
  %2842 = vmatprep.subr.bf16.mxu0 0
  %2843 = vmatpush1.bf16.msra.mxu0 0
  %2844 = vmatprep.mubr.bf16.mxu0 0
  %2845 = vmatmul.mubr.bf16.gmra.mrb[0].mxu0 %v2348
  %v2846 = vpop.f32.mrb[0].mxu0
  %v2847 = vadd.f32 %v2798, %v2846
  %v2848 = vpop.f32.mrb[0].mxu0
  %v2849 = vpop.f32.mrb[0].mxu0
  %v2850 = vadd.f32 %v2798, %v2849
  %v2851 = vpop.f32.mrb[0].mxu0
  %2852 = vdwg.mxu0
  %s2853 = scalar_lea.vmem %s8, 96
  %v2854 = vld [vmem:[%s2853] sm:$0xf]
  %v2855 = vld [vmem:[%s2853 + $0x4] sm:$0xf]
  %v2856 = vld [vmem:[%s2853 + $0x8] sm:$0xf]
  %v2857 = vld [vmem:[%s2853 + $0xc] sm:$0xf]
  %s2858 = scalar_lea.vmem %s9, 6
  %v2859 = vld [vmem:[%s2858] sm:$0x1]
  %v2861 = vlaneseq
  %v2862 = vshrl.u32 %v2861, 7
  %v2863 = vsub.s32 0, %v2862
  %v2864 = vrot.slane %v2859, %v2863
  %v2870 = vunpack.c.l.b16 %v2854
  %v2871 = vunpack.c.l.b16 %v2855
  %v2872 = vunpack.c.l.b16 %v2856
  %v2873 = vunpack.c.l.b16 %v2857
  %v2874 = vpack.c.b16 %v2871, %v2870
  %v2875 = vpack.c.b16 %v2873, %v2872
  %2878 = vmatprep.subr.bf16.mxu0 0
  %2879 = vmatpush1.bf16.msra.mxu0 %v2874
  %2880 = vmatprep.subr.bf16.mxu0 0
  %2881 = vmatpush1.bf16.msra.mxu0 %v2875
  %2882 = vmatprep.subr.bf16.mxu0 0
  %2883 = vmatpush1.bf16.msra.mxu0 0
  %2884 = vmatprep.subr.bf16.mxu0 0
  %2885 = vmatpush1.bf16.msra.mxu0 0
  %2886 = vmatprep.subr.bf16.mxu0 0
  %2887 = vmatpush1.bf16.msra.mxu0 0
  %2888 = vmatprep.subr.bf16.mxu0 0
  %2889 = vmatpush1.bf16.msra.mxu0 0
  %2890 = vmatprep.subr.bf16.mxu0 0
  %2891 = vmatpush1.bf16.msra.mxu0 0
  %2892 = vmatprep.subr.bf16.mxu0 0
  %2893 = vmatpush1.bf16.msra.mxu0 0
  %2894 = vmatprep.subr.bf16.mxu0 0
  %2895 = vmatpush1.bf16.msra.mxu0 0
  %2896 = vmatprep.subr.bf16.mxu0 0
  %2897 = vmatpush1.bf16.msra.mxu0 0
  %2898 = vmatprep.subr.bf16.mxu0 0
  %2899 = vmatpush1.bf16.msra.mxu0 0
  %2900 = vmatprep.subr.bf16.mxu0 0
  %2901 = vmatpush1.bf16.msra.mxu0 0
  %2902 = vmatprep.subr.bf16.mxu0 0
  %2903 = vmatpush1.bf16.msra.mxu0 0
  %2904 = vmatprep.subr.bf16.mxu0 0
  %2905 = vmatpush1.bf16.msra.mxu0 0
  %2906 = vmatprep.subr.bf16.mxu0 0
  %2907 = vmatpush1.bf16.msra.mxu0 0
  %2908 = vmatprep.subr.bf16.mxu0 0
  %2909 = vmatpush1.bf16.msra.mxu0 0
  %2910 = vmatprep.mubr.bf16.mxu0 0
  %2911 = vmatmul.mubr.bf16.gmra.mrb[0].mxu0 %v2348
  %v2912 = vpop.f32.mrb[0].mxu0
  %v2913 = vadd.f32 %v2864, %v2912
  %v2914 = vpop.f32.mrb[0].mxu0
  %v2915 = vpop.f32.mrb[0].mxu0
  %v2916 = vadd.f32 %v2864, %v2915
  %v2917 = vpop.f32.mrb[0].mxu0
  %2918 = vdwg.mxu0
  %s2919 = scalar_lea.vmem %s4, 112
  %v2920 = vld [vmem:[%s2919] sm:$0xf]
  %v2921 = vld [vmem:[%s2919 + $0x4] sm:$0xf]
  %v2922 = vld [vmem:[%s2919 + $0x8] sm:$0xf]
  %v2923 = vld [vmem:[%s2919 + $0xc] sm:$0xf]
  %s2924 = scalar_lea.vmem %s5, 7
  %v2925 = vld [vmem:[%s2924] sm:$0x1]
  %v2927 = vlaneseq
  %v2928 = vshrl.u32 %v2927, 7
  %v2929 = vsub.s32 0, %v2928
  %v2930 = vrot.slane %v2925, %v2929
  %v2936 = vunpack.c.l.b16 %v2920
  %v2937 = vunpack.c.l.b16 %v2921
  %v2938 = vunpack.c.l.b16 %v2922
  %v2939 = vunpack.c.l.b16 %v2923
  %v2940 = vpack.c.b16 %v2937, %v2936
  %v2941 = vpack.c.b16 %v2939, %v2938
  %2944 = vmatprep.subr.bf16.mxu0 0
  %2945 = vmatpush1.bf16.msra.mxu0 %v2940
  %2946 = vmatprep.subr.bf16.mxu0 0
  %2947 = vmatpush1.bf16.msra.mxu0 %v2941
  %2948 = vmatprep.subr.bf16.mxu0 0
  %2949 = vmatpush1.bf16.msra.mxu0 0
  %2950 = vmatprep.subr.bf16.mxu0 0
  %2951 = vmatpush1.bf16.msra.mxu0 0
  %2952 = vmatprep.subr.bf16.mxu0 0
  %2953 = vmatpush1.bf16.msra.mxu0 0
  %2954 = vmatprep.subr.bf16.mxu0 0
  %2955 = vmatpush1.bf16.msra.mxu0 0
  %2956 = vmatprep.subr.bf16.mxu0 0
  %2957 = vmatpush1.bf16.msra.mxu0 0
  %2958 = vmatprep.subr.bf16.mxu0 0
  %2959 = vmatpush1.bf16.msra.mxu0 0
  %2960 = vmatprep.subr.bf16.mxu0 0
  %2961 = vmatpush1.bf16.msra.mxu0 0
  %2962 = vmatprep.subr.bf16.mxu0 0
  %2963 = vmatpush1.bf16.msra.mxu0 0
  %2964 = vmatprep.subr.bf16.mxu0 0
  %2965 = vmatpush1.bf16.msra.mxu0 0
  %2966 = vmatprep.subr.bf16.mxu0 0
  %2967 = vmatpush1.bf16.msra.mxu0 0
  %2968 = vmatprep.subr.bf16.mxu0 0
  %2969 = vmatpush1.bf16.msra.mxu0 0
  %2970 = vmatprep.subr.bf16.mxu0 0
  %2971 = vmatpush1.bf16.msra.mxu0 0
  %2972 = vmatprep.subr.bf16.mxu0 0
  %2973 = vmatpush1.bf16.msra.mxu0 0
  %2974 = vmatprep.subr.bf16.mxu0 0
  %2975 = vmatpush1.bf16.msra.mxu0 0
  %2976 = vmatprep.mubr.bf16.mxu0 0
  %2977 = vmatmul.mubr.bf16.gmra.mrb[0].mxu0 %v2348
  %v2978 = vpop.f32.mrb[0].mxu0
  %v2979 = vadd.f32 %v2930, %v2978
  %v2980 = vpop.f32.mrb[0].mxu0
  %v2981 = vpop.f32.mrb[0].mxu0
  %v2982 = vadd.f32 %v2930, %v2981
  %v2983 = vpop.f32.mrb[0].mxu0
  %2984 = vdwg.mxu0
  %s2985 = scalar_lea.vmem %s6, 112
  %v2986 = vld [vmem:[%s2985] sm:$0xf]
  %v2987 = vld [vmem:[%s2985 + $0x4] sm:$0xf]
  %v2988 = vld [vmem:[%s2985 + $0x8] sm:$0xf]
  %v2989 = vld [vmem:[%s2985 + $0xc] sm:$0xf]
  %s2990 = scalar_lea.vmem %s7, 7
  %v2991 = vld [vmem:[%s2990] sm:$0x1]
  %v2993 = vlaneseq
  %v2994 = vshrl.u32 %v2993, 7
  %v2995 = vsub.s32 0, %v2994
  %v2996 = vrot.slane %v2991, %v2995
  %v3002 = vunpack.c.l.b16 %v2986
  %v3003 = vunpack.c.l.b16 %v2987
  %v3004 = vunpack.c.l.b16 %v2988
  %v3005 = vunpack.c.l.b16 %v2989
  %v3006 = vpack.c.b16 %v3003, %v3002
  %v3007 = vpack.c.b16 %v3005, %v3004
  %3010 = vmatprep.subr.bf16.mxu0 0
  %3011 = vmatpush1.bf16.msra.mxu0 %v3006
  %3012 = vmatprep.subr.bf16.mxu0 0
  %3013 = vmatpush1.bf16.msra.mxu0 %v3007
  %3014 = vmatprep.subr.bf16.mxu0 0
  %3015 = vmatpush1.bf16.msra.mxu0 0
  %3016 = vmatprep.subr.bf16.mxu0 0
  %3017 = vmatpush1.bf16.msra.mxu0 0
  %3018 = vmatprep.subr.bf16.mxu0 0
  %3019 = vmatpush1.bf16.msra.mxu0 0
  %3020 = vmatprep.subr.bf16.mxu0 0
  %3021 = vmatpush1.bf16.msra.mxu0 0
  %3022 = vmatprep.subr.bf16.mxu0 0
  %3023 = vmatpush1.bf16.msra.mxu0 0
  %3024 = vmatprep.subr.bf16.mxu0 0
  %3025 = vmatpush1.bf16.msra.mxu0 0
  %3026 = vmatprep.subr.bf16.mxu0 0
  %3027 = vmatpush1.bf16.msra.mxu0 0
  %3028 = vmatprep.subr.bf16.mxu0 0
  %3029 = vmatpush1.bf16.msra.mxu0 0
  %3030 = vmatprep.subr.bf16.mxu0 0
  %3031 = vmatpush1.bf16.msra.mxu0 0
  %3032 = vmatprep.subr.bf16.mxu0 0
  %3033 = vmatpush1.bf16.msra.mxu0 0
  %3034 = vmatprep.subr.bf16.mxu0 0
  %3035 = vmatpush1.bf16.msra.mxu0 0
  %3036 = vmatprep.subr.bf16.mxu0 0
  %3037 = vmatpush1.bf16.msra.mxu0 0
  %3038 = vmatprep.subr.bf16.mxu0 0
  %3039 = vmatpush1.bf16.msra.mxu0 0
  %3040 = vmatprep.subr.bf16.mxu0 0
  %3041 = vmatpush1.bf16.msra.mxu0 0
  %3042 = vmatprep.mubr.bf16.mxu0 0
  %3043 = vmatmul.mubr.bf16.gmra.mrb[0].mxu0 %v2348
  %v3044 = vpop.f32.mrb[0].mxu0
  %v3045 = vadd.f32 %v2996, %v3044
  %v3046 = vpop.f32.mrb[0].mxu0
  %v3047 = vpop.f32.mrb[0].mxu0
  %v3048 = vadd.f32 %v2996, %v3047
  %v3049 = vpop.f32.mrb[0].mxu0
  %3050 = vdwg.mxu0
  %s3051 = scalar_lea.vmem %s8, 112
  %v3052 = vld [vmem:[%s3051] sm:$0xf]
  %v3053 = vld [vmem:[%s3051 + $0x4] sm:$0xf]
  %v3054 = vld [vmem:[%s3051 + $0x8] sm:$0xf]
  %v3055 = vld [vmem:[%s3051 + $0xc] sm:$0xf]
  %s3056 = scalar_lea.vmem %s9, 7
  %v3057 = vld [vmem:[%s3056] sm:$0x1]
  %v3059 = vlaneseq
  %v3060 = vshrl.u32 %v3059, 7
  %v3061 = vsub.s32 0, %v3060
  %v3062 = vrot.slane %v3057, %v3061
  %v3068 = vunpack.c.l.b16 %v3052
  %v3069 = vunpack.c.l.b16 %v3053
  %v3070 = vunpack.c.l.b16 %v3054
  %v3071 = vunpack.c.l.b16 %v3055
  %v3072 = vpack.c.b16 %v3069, %v3068
  %v3073 = vpack.c.b16 %v3071, %v3070
  %3076 = vmatprep.subr.bf16.mxu0 0
  %3077 = vmatpush1.bf16.msra.mxu0 %v3072
  %3078 = vmatprep.subr.bf16.mxu0 0
  %3079 = vmatpush1.bf16.msra.mxu0 %v3073
  %3080 = vmatprep.subr.bf16.mxu0 0
  %3081 = vmatpush1.bf16.msra.mxu0 0
  %3082 = vmatprep.subr.bf16.mxu0 0
  %3083 = vmatpush1.bf16.msra.mxu0 0
  %3084 = vmatprep.subr.bf16.mxu0 0
  %3085 = vmatpush1.bf16.msra.mxu0 0
  %3086 = vmatprep.subr.bf16.mxu0 0
  %3087 = vmatpush1.bf16.msra.mxu0 0
  %3088 = vmatprep.subr.bf16.mxu0 0
  %3089 = vmatpush1.bf16.msra.mxu0 0
  %3090 = vmatprep.subr.bf16.mxu0 0
  %3091 = vmatpush1.bf16.msra.mxu0 0
  %3092 = vmatprep.subr.bf16.mxu0 0
  %3093 = vmatpush1.bf16.msra.mxu0 0
  %3094 = vmatprep.subr.bf16.mxu0 0
  %3095 = vmatpush1.bf16.msra.mxu0 0
  %3096 = vmatprep.subr.bf16.mxu0 0
  %3097 = vmatpush1.bf16.msra.mxu0 0
  %3098 = vmatprep.subr.bf16.mxu0 0
  %3099 = vmatpush1.bf16.msra.mxu0 0
  %3100 = vmatprep.subr.bf16.mxu0 0
  %3101 = vmatpush1.bf16.msra.mxu0 0
  %3102 = vmatprep.subr.bf16.mxu0 0
  %3103 = vmatpush1.bf16.msra.mxu0 0
  %3104 = vmatprep.subr.bf16.mxu0 0
  %3105 = vmatpush1.bf16.msra.mxu0 0
  %3106 = vmatprep.subr.bf16.mxu0 0
  %3107 = vmatpush1.bf16.msra.mxu0 0
  %3108 = vmatprep.mubr.bf16.mxu0 0
  %3109 = vmatmul.mubr.bf16.gmra.mrb[0].mxu0 %v2348
  %v3110 = vpop.f32.mrb[0].mxu0
  %v3111 = vadd.f32 %v3062, %v3110
  %v3112 = vpop.f32.mrb[0].mxu0
  %v3113 = vpop.f32.mrb[0].mxu0
  %v3114 = vadd.f32 %v3062, %v3113
  %v3115 = vpop.f32.mrb[0].mxu0
  %3116 = vdwg.mxu0
  %v3117 = vpack.c.bf16 %v2385, %v2385
  %v3118 = vpack.c.bf16 %v2388, %v2388
  %v3119 = vpack.c.bf16 %v2583, %v2583
  %v3120 = vpack.c.bf16 %v2586, %v2586
  %v3121 = vpack.c.bf16 %v2781, %v2781
  %v3122 = vpack.c.bf16 %v2784, %v2784
  %v3123 = vpack.c.bf16 %v2979, %v2979
  %v3124 = vpack.c.bf16 %v2982, %v2982
  %v3125 = vpack.c.bf16 %v2451, %v2451
  %v3126 = vpack.c.bf16 %v2454, %v2454
  %v3127 = vpack.c.bf16 %v2649, %v2649
  %v3128 = vpack.c.bf16 %v2652, %v2652
  %v3129 = vpack.c.bf16 %v2847, %v2847
  %v3130 = vpack.c.bf16 %v2850, %v2850
  %v3131 = vpack.c.bf16 %v3045, %v3045
  %v3132 = vpack.c.bf16 %v3048, %v3048
  %v3134 = vsel %vm940, %v3117, 0
  %v3137 = vsel %vm940, %v3125, 0
  %3139 = vmatprep.subr.bf16.mxu0 0
  %3140 = vmatpush1.bf16.xpose.msra.mxu0 %v3137
  %3141 = vmatprep.subr.bf16.mxu0 0
  %3142 = vmatpush1.bf16.xpose.msra.mxu0 0
  %3143 = vmatprep.subr.bf16.mxu0 0
  %3144 = vmatpush1.bf16.xpose.msra.mxu0 0
  %3145 = vmatprep.subr.bf16.mxu0 0
  %3146 = vmatpush1.bf16.xpose.msra.mxu0 0
  %3147 = vmatprep.subr.bf16.mxu0 0
  %3148 = vmatpush1.bf16.xpose.msra.mxu0 0
  %3149 = vmatprep.subr.bf16.mxu0 0
  %3150 = vmatpush1.bf16.xpose.msra.mxu0 0
  %3151 = vmatprep.subr.bf16.mxu0 0
  %3152 = vmatpush1.bf16.xpose.msra.mxu0 0
  %3153 = vmatprep.subr.bf16.mxu0 0
  %3154 = vmatpush1.bf16.xpose.msra.mxu0 0
  %3155 = vmatprep.subr.bf16.mxu0 0
  %3156 = vmatpush1.bf16.xpose.msra.mxu0 0
  %3157 = vmatprep.subr.bf16.mxu0 0
  %3158 = vmatpush1.bf16.xpose.msra.mxu0 0
  %3159 = vmatprep.subr.bf16.mxu0 0
  %3160 = vmatpush1.bf16.xpose.msra.mxu0 0
  %3161 = vmatprep.subr.bf16.mxu0 0
  %3162 = vmatpush1.bf16.xpose.msra.mxu0 0
  %3163 = vmatprep.subr.bf16.mxu0 0
  %3164 = vmatpush1.bf16.xpose.msra.mxu0 0
  %3165 = vmatprep.subr.bf16.mxu0 0
  %3166 = vmatpush1.bf16.xpose.msra.mxu0 0
  %3167 = vmatprep.subr.bf16.mxu0 0
  %3168 = vmatpush1.bf16.xpose.msra.mxu0 0
  %3169 = vmatprep.subr.bf16.mxu0 0
  %3170 = vmatpush1.bf16.xpose.msra.mxu0 0
  %3171 = vmatprep.mubr.bf16.mxu0 0
  %3172 = vmatmul.mubr.bf16.gmra.mrb[0].mxu0 %v3134
  %v3173 = vpop.f32.mrb[0].mxu0
  %v3174 = vadd.f32 0.0, %v3173
  %v3175 = vpop.f32.mrb[0].mxu0
  %v3176 = vpop.f32.mrb[0].mxu0
  %v3177 = vpop.f32.mrb[0].mxu0
  %3178 = vdwg.mxu0
  %v3180 = vsel %vm940, %v3118, 0
  %v3183 = vsel %vm940, %v3126, 0
  %3185 = vmatprep.subr.bf16.mxu0 0
  %3186 = vmatpush1.bf16.xpose.msra.mxu0 %v3183
  %3187 = vmatprep.subr.bf16.mxu0 0
  %3188 = vmatpush1.bf16.xpose.msra.mxu0 0
  %3189 = vmatprep.subr.bf16.mxu0 0
  %3190 = vmatpush1.bf16.xpose.msra.mxu0 0
  %3191 = vmatprep.subr.bf16.mxu0 0
  %3192 = vmatpush1.bf16.xpose.msra.mxu0 0
  %3193 = vmatprep.subr.bf16.mxu0 0
  %3194 = vmatpush1.bf16.xpose.msra.mxu0 0
  %3195 = vmatprep.subr.bf16.mxu0 0
  %3196 = vmatpush1.bf16.xpose.msra.mxu0 0
  %3197 = vmatprep.subr.bf16.mxu0 0
  %3198 = vmatpush1.bf16.xpose.msra.mxu0 0
  %3199 = vmatprep.subr.bf16.mxu0 0
  %3200 = vmatpush1.bf16.xpose.msra.mxu0 0
  %3201 = vmatprep.subr.bf16.mxu0 0
  %3202 = vmatpush1.bf16.xpose.msra.mxu0 0
  %3203 = vmatprep.subr.bf16.mxu0 0
  %3204 = vmatpush1.bf16.xpose.msra.mxu0 0
  %3205 = vmatprep.subr.bf16.mxu0 0
  %3206 = vmatpush1.bf16.xpose.msra.mxu0 0
  %3207 = vmatprep.subr.bf16.mxu0 0
  %3208 = vmatpush1.bf16.xpose.msra.mxu0 0
  %3209 = vmatprep.subr.bf16.mxu0 0
  %3210 = vmatpush1.bf16.xpose.msra.mxu0 0
  %3211 = vmatprep.subr.bf16.mxu0 0
  %3212 = vmatpush1.bf16.xpose.msra.mxu0 0
  %3213 = vmatprep.subr.bf16.mxu0 0
  %3214 = vmatpush1.bf16.xpose.msra.mxu0 0
  %3215 = vmatprep.subr.bf16.mxu0 0
  %3216 = vmatpush1.bf16.xpose.msra.mxu0 0
  %3217 = vmatprep.mubr.bf16.mxu0 0
  %3218 = vmatmul.mubr.bf16.gmra.mrb[0].mxu0 %v3180
  %v3219 = vpop.f32.mrb[0].mxu0
  %v3220 = vadd.f32 0.0, %v3219
  %v3221 = vpop.f32.mrb[0].mxu0
  %v3222 = vpop.f32.mrb[0].mxu0
  %v3223 = vpop.f32.mrb[0].mxu0
  %3224 = vdwg.mxu0
  %v3226 = vsel %vm940, %v3119, 0
  %v3229 = vsel %vm940, %v3127, 0
  %3231 = vmatprep.subr.bf16.mxu0 0
  %3232 = vmatpush1.bf16.xpose.msra.mxu0 %v3229
  %3233 = vmatprep.subr.bf16.mxu0 0
  %3234 = vmatpush1.bf16.xpose.msra.mxu0 0
  %3235 = vmatprep.subr.bf16.mxu0 0
  %3236 = vmatpush1.bf16.xpose.msra.mxu0 0
  %3237 = vmatprep.subr.bf16.mxu0 0
  %3238 = vmatpush1.bf16.xpose.msra.mxu0 0
  %3239 = vmatprep.subr.bf16.mxu0 0
  %3240 = vmatpush1.bf16.xpose.msra.mxu0 0
  %3241 = vmatprep.subr.bf16.mxu0 0
  %3242 = vmatpush1.bf16.xpose.msra.mxu0 0
  %3243 = vmatprep.subr.bf16.mxu0 0
  %3244 = vmatpush1.bf16.xpose.msra.mxu0 0
  %3245 = vmatprep.subr.bf16.mxu0 0
  %3246 = vmatpush1.bf16.xpose.msra.mxu0 0
  %3247 = vmatprep.subr.bf16.mxu0 0
  %3248 = vmatpush1.bf16.xpose.msra.mxu0 0
  %3249 = vmatprep.subr.bf16.mxu0 0
  %3250 = vmatpush1.bf16.xpose.msra.mxu0 0
  %3251 = vmatprep.subr.bf16.mxu0 0
  %3252 = vmatpush1.bf16.xpose.msra.mxu0 0
  %3253 = vmatprep.subr.bf16.mxu0 0
  %3254 = vmatpush1.bf16.xpose.msra.mxu0 0
  %3255 = vmatprep.subr.bf16.mxu0 0
  %3256 = vmatpush1.bf16.xpose.msra.mxu0 0
  %3257 = vmatprep.subr.bf16.mxu0 0
  %3258 = vmatpush1.bf16.xpose.msra.mxu0 0
  %3259 = vmatprep.subr.bf16.mxu0 0
  %3260 = vmatpush1.bf16.xpose.msra.mxu0 0
  %3261 = vmatprep.subr.bf16.mxu0 0
  %3262 = vmatpush1.bf16.xpose.msra.mxu0 0
  %3263 = vmatprep.mubr.bf16.mxu0 0
  %3264 = vmatmul.mubr.bf16.gmra.mrb[0].mxu0 %v3226
  %v3265 = vpop.f32.mrb[0].mxu0
  %v3266 = vadd.f32 0.0, %v3265
  %v3267 = vpop.f32.mrb[0].mxu0
  %v3268 = vpop.f32.mrb[0].mxu0
  %v3269 = vpop.f32.mrb[0].mxu0
  %3270 = vdwg.mxu0
  %v3272 = vsel %vm940, %v3120, 0
  %v3275 = vsel %vm940, %v3128, 0
  %3277 = vmatprep.subr.bf16.mxu0 0
  %3278 = vmatpush1.bf16.xpose.msra.mxu0 %v3275
  %3279 = vmatprep.subr.bf16.mxu0 0
  %3280 = vmatpush1.bf16.xpose.msra.mxu0 0
  %3281 = vmatprep.subr.bf16.mxu0 0
  %3282 = vmatpush1.bf16.xpose.msra.mxu0 0
  %3283 = vmatprep.subr.bf16.mxu0 0
  %3284 = vmatpush1.bf16.xpose.msra.mxu0 0
  %3285 = vmatprep.subr.bf16.mxu0 0
  %3286 = vmatpush1.bf16.xpose.msra.mxu0 0
  %3287 = vmatprep.subr.bf16.mxu0 0
  %3288 = vmatpush1.bf16.xpose.msra.mxu0 0
  %3289 = vmatprep.subr.bf16.mxu0 0
  %3290 = vmatpush1.bf16.xpose.msra.mxu0 0
  %3291 = vmatprep.subr.bf16.mxu0 0
  %3292 = vmatpush1.bf16.xpose.msra.mxu0 0
  %3293 = vmatprep.subr.bf16.mxu0 0
  %3294 = vmatpush1.bf16.xpose.msra.mxu0 0
  %3295 = vmatprep.subr.bf16.mxu0 0
  %3296 = vmatpush1.bf16.xpose.msra.mxu0 0
  %3297 = vmatprep.subr.bf16.mxu0 0
  %3298 = vmatpush1.bf16.xpose.msra.mxu0 0
  %3299 = vmatprep.subr.bf16.mxu0 0
  %3300 = vmatpush1.bf16.xpose.msra.mxu0 0
  %3301 = vmatprep.subr.bf16.mxu0 0
  %3302 = vmatpush1.bf16.xpose.msra.mxu0 0
  %3303 = vmatprep.subr.bf16.mxu0 0
  %3304 = vmatpush1.bf16.xpose.msra.mxu0 0
  %3305 = vmatprep.subr.bf16.mxu0 0
  %3306 = vmatpush1.bf16.xpose.msra.mxu0 0
  %3307 = vmatprep.subr.bf16.mxu0 0
  %3308 = vmatpush1.bf16.xpose.msra.mxu0 0
  %3309 = vmatprep.mubr.bf16.mxu0 0
  %3310 = vmatmul.mubr.bf16.gmra.mrb[0].mxu0 %v3272
  %v3311 = vpop.f32.mrb[0].mxu0
  %v3312 = vadd.f32 0.0, %v3311
  %v3313 = vpop.f32.mrb[0].mxu0
  %v3314 = vpop.f32.mrb[0].mxu0
  %v3315 = vpop.f32.mrb[0].mxu0
  %3316 = vdwg.mxu0
  %v3318 = vsel %vm940, %v3121, 0
  %v3321 = vsel %vm940, %v3129, 0
  %3323 = vmatprep.subr.bf16.mxu0 0
  %3324 = vmatpush1.bf16.xpose.msra.mxu0 %v3321
  %3325 = vmatprep.subr.bf16.mxu0 0
  %3326 = vmatpush1.bf16.xpose.msra.mxu0 0
  %3327 = vmatprep.subr.bf16.mxu0 0
  %3328 = vmatpush1.bf16.xpose.msra.mxu0 0
  %3329 = vmatprep.subr.bf16.mxu0 0
  %3330 = vmatpush1.bf16.xpose.msra.mxu0 0
  %3331 = vmatprep.subr.bf16.mxu0 0
  %3332 = vmatpush1.bf16.xpose.msra.mxu0 0
  %3333 = vmatprep.subr.bf16.mxu0 0
  %3334 = vmatpush1.bf16.xpose.msra.mxu0 0
  %3335 = vmatprep.subr.bf16.mxu0 0
  %3336 = vmatpush1.bf16.xpose.msra.mxu0 0
  %3337 = vmatprep.subr.bf16.mxu0 0
  %3338 = vmatpush1.bf16.xpose.msra.mxu0 0
  %3339 = vmatprep.subr.bf16.mxu0 0
  %3340 = vmatpush1.bf16.xpose.msra.mxu0 0
  %3341 = vmatprep.subr.bf16.mxu0 0
  %3342 = vmatpush1.bf16.xpose.msra.mxu0 0
  %3343 = vmatprep.subr.bf16.mxu0 0
  %3344 = vmatpush1.bf16.xpose.msra.mxu0 0
  %3345 = vmatprep.subr.bf16.mxu0 0
  %3346 = vmatpush1.bf16.xpose.msra.mxu0 0
  %3347 = vmatprep.subr.bf16.mxu0 0
  %3348 = vmatpush1.bf16.xpose.msra.mxu0 0
  %3349 = vmatprep.subr.bf16.mxu0 0
  %3350 = vmatpush1.bf16.xpose.msra.mxu0 0
  %3351 = vmatprep.subr.bf16.mxu0 0
  %3352 = vmatpush1.bf16.xpose.msra.mxu0 0
  %3353 = vmatprep.subr.bf16.mxu0 0
  %3354 = vmatpush1.bf16.xpose.msra.mxu0 0
  %3355 = vmatprep.mubr.bf16.mxu0 0
  %3356 = vmatmul.mubr.bf16.gmra.mrb[0].mxu0 %v3318
  %v3357 = vpop.f32.mrb[0].mxu0
  %v3358 = vadd.f32 0.0, %v3357
  %v3359 = vpop.f32.mrb[0].mxu0
  %v3360 = vpop.f32.mrb[0].mxu0
  %v3361 = vpop.f32.mrb[0].mxu0
  %3362 = vdwg.mxu0
  %v3364 = vsel %vm940, %v3122, 0
  %v3367 = vsel %vm940, %v3130, 0
  %3369 = vmatprep.subr.bf16.mxu0 0
  %3370 = vmatpush1.bf16.xpose.msra.mxu0 %v3367
  %3371 = vmatprep.subr.bf16.mxu0 0
  %3372 = vmatpush1.bf16.xpose.msra.mxu0 0
  %3373 = vmatprep.subr.bf16.mxu0 0
  %3374 = vmatpush1.bf16.xpose.msra.mxu0 0
  %3375 = vmatprep.subr.bf16.mxu0 0
  %3376 = vmatpush1.bf16.xpose.msra.mxu0 0
  %3377 = vmatprep.subr.bf16.mxu0 0
  %3378 = vmatpush1.bf16.xpose.msra.mxu0 0
  %3379 = vmatprep.subr.bf16.mxu0 0
  %3380 = vmatpush1.bf16.xpose.msra.mxu0 0
  %3381 = vmatprep.subr.bf16.mxu0 0
  %3382 = vmatpush1.bf16.xpose.msra.mxu0 0
  %3383 = vmatprep.subr.bf16.mxu0 0
  %3384 = vmatpush1.bf16.xpose.msra.mxu0 0
  %3385 = vmatprep.subr.bf16.mxu0 0
  %3386 = vmatpush1.bf16.xpose.msra.mxu0 0
  %3387 = vmatprep.subr.bf16.mxu0 0
  %3388 = vmatpush1.bf16.xpose.msra.mxu0 0
  %3389 = vmatprep.subr.bf16.mxu0 0
  %3390 = vmatpush1.bf16.xpose.msra.mxu0 0
  %3391 = vmatprep.subr.bf16.mxu0 0
  %3392 = vmatpush1.bf16.xpose.msra.mxu0 0
  %3393 = vmatprep.subr.bf16.mxu0 0
  %3394 = vmatpush1.bf16.xpose.msra.mxu0 0
  %3395 = vmatprep.subr.bf16.mxu0 0
  %3396 = vmatpush1.bf16.xpose.msra.mxu0 0
  %3397 = vmatprep.subr.bf16.mxu0 0
  %3398 = vmatpush1.bf16.xpose.msra.mxu0 0
  %3399 = vmatprep.subr.bf16.mxu0 0
  %3400 = vmatpush1.bf16.xpose.msra.mxu0 0
  %3401 = vmatprep.mubr.bf16.mxu0 0
  %3402 = vmatmul.mubr.bf16.gmra.mrb[0].mxu0 %v3364
  %v3403 = vpop.f32.mrb[0].mxu0
  %v3404 = vadd.f32 0.0, %v3403
  %v3405 = vpop.f32.mrb[0].mxu0
  %v3406 = vpop.f32.mrb[0].mxu0
  %v3407 = vpop.f32.mrb[0].mxu0
  %3408 = vdwg.mxu0
  %v3410 = vsel %vm940, %v3123, 0
  %v3413 = vsel %vm940, %v3131, 0
  %3415 = vmatprep.subr.bf16.mxu0 0
  %3416 = vmatpush1.bf16.xpose.msra.mxu0 %v3413
  %3417 = vmatprep.subr.bf16.mxu0 0
  %3418 = vmatpush1.bf16.xpose.msra.mxu0 0
  %3419 = vmatprep.subr.bf16.mxu0 0
  %3420 = vmatpush1.bf16.xpose.msra.mxu0 0
  %3421 = vmatprep.subr.bf16.mxu0 0
  %3422 = vmatpush1.bf16.xpose.msra.mxu0 0
  %3423 = vmatprep.subr.bf16.mxu0 0
  %3424 = vmatpush1.bf16.xpose.msra.mxu0 0
  %3425 = vmatprep.subr.bf16.mxu0 0
  %3426 = vmatpush1.bf16.xpose.msra.mxu0 0
  %3427 = vmatprep.subr.bf16.mxu0 0
  %3428 = vmatpush1.bf16.xpose.msra.mxu0 0
  %3429 = vmatprep.subr.bf16.mxu0 0
  %3430 = vmatpush1.bf16.xpose.msra.mxu0 0
  %3431 = vmatprep.subr.bf16.mxu0 0
  %3432 = vmatpush1.bf16.xpose.msra.mxu0 0
  %3433 = vmatprep.subr.bf16.mxu0 0
  %3434 = vmatpush1.bf16.xpose.msra.mxu0 0
  %3435 = vmatprep.subr.bf16.mxu0 0
  %3436 = vmatpush1.bf16.xpose.msra.mxu0 0
  %3437 = vmatprep.subr.bf16.mxu0 0
  %3438 = vmatpush1.bf16.xpose.msra.mxu0 0
  %3439 = vmatprep.subr.bf16.mxu0 0
  %3440 = vmatpush1.bf16.xpose.msra.mxu0 0
  %3441 = vmatprep.subr.bf16.mxu0 0
  %3442 = vmatpush1.bf16.xpose.msra.mxu0 0
  %3443 = vmatprep.subr.bf16.mxu0 0
  %3444 = vmatpush1.bf16.xpose.msra.mxu0 0
  %3445 = vmatprep.subr.bf16.mxu0 0
  %3446 = vmatpush1.bf16.xpose.msra.mxu0 0
  %3447 = vmatprep.mubr.bf16.mxu0 0
  %3448 = vmatmul.mubr.bf16.gmra.mrb[0].mxu0 %v3410
  %v3449 = vpop.f32.mrb[0].mxu0
  %v3450 = vadd.f32 0.0, %v3449
  %v3451 = vpop.f32.mrb[0].mxu0
  %v3452 = vpop.f32.mrb[0].mxu0
  %v3453 = vpop.f32.mrb[0].mxu0
  %3454 = vdwg.mxu0
  %v3456 = vsel %vm940, %v3124, 0
  %v3459 = vsel %vm940, %v3132, 0
  %3461 = vmatprep.subr.bf16.mxu0 0
  %3462 = vmatpush1.bf16.xpose.msra.mxu0 %v3459
  %3463 = vmatprep.subr.bf16.mxu0 0
  %3464 = vmatpush1.bf16.xpose.msra.mxu0 0
  %3465 = vmatprep.subr.bf16.mxu0 0
  %3466 = vmatpush1.bf16.xpose.msra.mxu0 0
  %3467 = vmatprep.subr.bf16.mxu0 0
  %3468 = vmatpush1.bf16.xpose.msra.mxu0 0
  %3469 = vmatprep.subr.bf16.mxu0 0
  %3470 = vmatpush1.bf16.xpose.msra.mxu0 0
  %3471 = vmatprep.subr.bf16.mxu0 0
  %3472 = vmatpush1.bf16.xpose.msra.mxu0 0
  %3473 = vmatprep.subr.bf16.mxu0 0
  %3474 = vmatpush1.bf16.xpose.msra.mxu0 0
  %3475 = vmatprep.subr.bf16.mxu0 0
  %3476 = vmatpush1.bf16.xpose.msra.mxu0 0
  %3477 = vmatprep.subr.bf16.mxu0 0
  %3478 = vmatpush1.bf16.xpose.msra.mxu0 0
  %3479 = vmatprep.subr.bf16.mxu0 0
  %3480 = vmatpush1.bf16.xpose.msra.mxu0 0
  %3481 = vmatprep.subr.bf16.mxu0 0
  %3482 = vmatpush1.bf16.xpose.msra.mxu0 0
  %3483 = vmatprep.subr.bf16.mxu0 0
  %3484 = vmatpush1.bf16.xpose.msra.mxu0 0
  %3485 = vmatprep.subr.bf16.mxu0 0
  %3486 = vmatpush1.bf16.xpose.msra.mxu0 0
  %3487 = vmatprep.subr.bf16.mxu0 0
  %3488 = vmatpush1.bf16.xpose.msra.mxu0 0
  %3489 = vmatprep.subr.bf16.mxu0 0
  %3490 = vmatpush1.bf16.xpose.msra.mxu0 0
  %3491 = vmatprep.subr.bf16.mxu0 0
  %3492 = vmatpush1.bf16.xpose.msra.mxu0 0
  %3493 = vmatprep.mubr.bf16.mxu0 0
  %3494 = vmatmul.mubr.bf16.gmra.mrb[0].mxu0 %v3456
  %v3495 = vpop.f32.mrb[0].mxu0
  %v3496 = vadd.f32 0.0, %v3495
  %v3497 = vpop.f32.mrb[0].mxu0
  %v3498 = vpop.f32.mrb[0].mxu0
  %v3499 = vpop.f32.mrb[0].mxu0
  %3500 = vdwg.mxu0
  %v3501 = vmul.f32 %v3174, 0.35355338
  %v3502 = vmul.f32 %v3220, 0.35355338
  %v3503 = vmul.f32 %v3266, 0.35355338
  %v3504 = vmul.f32 %v3312, 0.35355338
  %v3505 = vmul.f32 %v3358, 0.35355338
  %v3506 = vmul.f32 %v3404, 0.35355338
  %v3507 = vmul.f32 %v3450, 0.35355338
  %v3508 = vmul.f32 %v3496, 0.35355338
  %v3509 = vadd.f32 %v3501, %v1328
  %v3510 = vadd.f32 %v3502, %v1332
  %v3511 = vadd.f32 %v3503, %v1336
  %v3512 = vadd.f32 %v3504, %v1340
  %v3513 = vadd.f32 %v3505, %v1344
  %v3514 = vadd.f32 %v3506, %v1348
  %v3515 = vadd.f32 %v3507, %v1352
  %v3516 = vadd.f32 %v3508, %v1356
  %v3517 = vsel %vm940, %v3509, -inf
  %3518 = vmax.xlane.f32.xlu0 %v3517
  %v3519 = vpop.xlane.xlu0 %3518
  %v3520 = vsel %vm940, %v3510, -inf
  %3521 = vmax.xlane.f32.xlu0 %v3520
  %v3522 = vpop.xlane.xlu0 %3521
  %v3523 = vsel %vm940, %v3511, -inf
  %3524 = vmax.xlane.f32.xlu0 %v3523
  %v3525 = vpop.xlane.xlu0 %3524
  %v3526 = vsel %vm940, %v3512, -inf
  %3527 = vmax.xlane.f32.xlu0 %v3526
  %v3528 = vpop.xlane.xlu0 %3527
  %v3529 = vsel %vm940, %v3513, -inf
  %3530 = vmax.xlane.f32.xlu0 %v3529
  %v3531 = vpop.xlane.xlu0 %3530
  %v3532 = vsel %vm940, %v3514, -inf
  %3533 = vmax.xlane.f32.xlu0 %v3532
  %v3534 = vpop.xlane.xlu0 %3533
  %v3535 = vsel %vm940, %v3515, -inf
  %3536 = vmax.xlane.f32.xlu0 %v3535
  %v3537 = vpop.xlane.xlu0 %3536
  %v3538 = vsel %vm940, %v3516, -inf
  %3539 = vmax.xlane.f32.xlu0 %v3538
  %v3540 = vpop.xlane.xlu0 %3539
  %v3541 = vsub.f32 %v3509, %v3519
  %v3542 = vsub.f32 %v3510, %v3522
  %v3543 = vsub.f32 %v3511, %v3525
  %v3544 = vsub.f32 %v3512, %v3528
  %v3545 = vsub.f32 %v3513, %v3531
  %v3546 = vsub.f32 %v3514, %v3534
  %v3547 = vsub.f32 %v3515, %v3537
  %v3548 = vsub.f32 %v3516, %v3540
  %v3549 = vmul.f32 %v3541, 1.442695
  %v3550 = vpow.pop %v3549
  %v3551 = vmul.f32 %v3542, 1.442695
  %v3552 = vpow.pop %v3551
  %v3553 = vmul.f32 %v3543, 1.442695
  %v3554 = vpow.pop %v3553
  %v3555 = vmul.f32 %v3544, 1.442695
  %v3556 = vpow.pop %v3555
  %v3557 = vmul.f32 %v3545, 1.442695
  %v3558 = vpow.pop %v3557
  %v3559 = vmul.f32 %v3546, 1.442695
  %v3560 = vpow.pop %v3559
  %v3561 = vmul.f32 %v3547, 1.442695
  %v3562 = vpow.pop %v3561
  %v3563 = vmul.f32 %v3548, 1.442695
  %v3564 = vpow.pop %v3563
  %v3565 = vsel %vm940, %v3550, 0.0
  %3566 = vadd.xlane.f32.xlu0 %v3565
  %v3567 = vpop.xlane.xlu0 %3566
  %v3568 = vsel %vm940, %v3552, 0.0
  %3569 = vadd.xlane.f32.xlu0 %v3568
  %v3570 = vpop.xlane.xlu0 %3569
  %v3571 = vsel %vm940, %v3554, 0.0
  %3572 = vadd.xlane.f32.xlu0 %v3571
  %v3573 = vpop.xlane.xlu0 %3572
  %v3574 = vsel %vm940, %v3556, 0.0
  %3575 = vadd.xlane.f32.xlu0 %v3574
  %v3576 = vpop.xlane.xlu0 %3575
  %v3577 = vsel %vm940, %v3558, 0.0
  %3578 = vadd.xlane.f32.xlu0 %v3577
  %v3579 = vpop.xlane.xlu0 %3578
  %v3580 = vsel %vm940, %v3560, 0.0
  %3581 = vadd.xlane.f32.xlu0 %v3580
  %v3582 = vpop.xlane.xlu0 %3581
  %v3583 = vsel %vm940, %v3562, 0.0
  %3584 = vadd.xlane.f32.xlu0 %v3583
  %v3585 = vpop.xlane.xlu0 %3584
  %v3586 = vsel %vm940, %v3564, 0.0
  %3587 = vadd.xlane.f32.xlu0 %v3586
  %v3588 = vpop.xlane.xlu0 %3587
  %v3589 = vrcp.pop %v3567
  %v3590 = vmul.f32 %v3550, %v3589
  %v3591 = vrcp.pop %v3570
  %v3592 = vmul.f32 %v3552, %v3591
  %v3593 = vrcp.pop %v3573
  %v3594 = vmul.f32 %v3554, %v3593
  %v3595 = vrcp.pop %v3576
  %v3596 = vmul.f32 %v3556, %v3595
  %v3597 = vrcp.pop %v3579
  %v3598 = vmul.f32 %v3558, %v3597
  %v3599 = vrcp.pop %v3582
  %v3600 = vmul.f32 %v3560, %v3599
  %v3601 = vrcp.pop %v3585
  %v3602 = vmul.f32 %v3562, %v3601
  %v3603 = vrcp.pop %v3588
  %v3604 = vmul.f32 %v3564, %v3603
  %v3605 = vpack.c.bf16 %v3590, %v3590
  %v3606 = vpack.c.bf16 %v3592, %v3592
  %v3607 = vpack.c.bf16 %v3594, %v3594
  %v3608 = vpack.c.bf16 %v3596, %v3596
  %v3609 = vpack.c.bf16 %v3598, %v3598
  %v3610 = vpack.c.bf16 %v3600, %v3600
  %v3611 = vpack.c.bf16 %v3602, %v3602
  %v3612 = vpack.c.bf16 %v3604, %v3604
  %v3613 = vpack.c.bf16 %v2517, %v2517
  %v3614 = vpack.c.bf16 %v2520, %v2520
  %v3615 = vpack.c.bf16 %v2715, %v2715
  %v3616 = vpack.c.bf16 %v2718, %v2718
  %v3617 = vpack.c.bf16 %v2913, %v2913
  %v3618 = vpack.c.bf16 %v2916, %v2916
  %v3619 = vpack.c.bf16 %v3111, %v3111
  %v3620 = vpack.c.bf16 %v3114, %v3114
  %v3622 = vsel %vm940, %v3605, 0
  %v3625 = vsel %vm1480, %v3613, 0
  %3627 = vmatprep.subr.bf16.mxu0 0
  %3628 = vmatpush1.bf16.msra.mxu0 %v3625
  %3629 = vmatprep.subr.bf16.mxu0 0
  %3630 = vmatpush1.bf16.msra.mxu0 0
  %3631 = vmatprep.subr.bf16.mxu0 0
  %3632 = vmatpush1.bf16.msra.mxu0 0
  %3633 = vmatprep.subr.bf16.mxu0 0
  %3634 = vmatpush1.bf16.msra.mxu0 0
  %3635 = vmatprep.subr.bf16.mxu0 0
  %3636 = vmatpush1.bf16.msra.mxu0 0
  %3637 = vmatprep.subr.bf16.mxu0 0
  %3638 = vmatpush1.bf16.msra.mxu0 0
  %3639 = vmatprep.subr.bf16.mxu0 0
  %3640 = vmatpush1.bf16.msra.mxu0 0
  %3641 = vmatprep.subr.bf16.mxu0 0
  %3642 = vmatpush1.bf16.msra.mxu0 0
  %3643 = vmatprep.subr.bf16.mxu0 0
  %3644 = vmatpush1.bf16.msra.mxu0 0
  %3645 = vmatprep.subr.bf16.mxu0 0
  %3646 = vmatpush1.bf16.msra.mxu0 0
  %3647 = vmatprep.subr.bf16.mxu0 0
  %3648 = vmatpush1.bf16.msra.mxu0 0
  %3649 = vmatprep.subr.bf16.mxu0 0
  %3650 = vmatpush1.bf16.msra.mxu0 0
  %3651 = vmatprep.subr.bf16.mxu0 0
  %3652 = vmatpush1.bf16.msra.mxu0 0
  %3653 = vmatprep.subr.bf16.mxu0 0
  %3654 = vmatpush1.bf16.msra.mxu0 0
  %3655 = vmatprep.subr.bf16.mxu0 0
  %3656 = vmatpush1.bf16.msra.mxu0 0
  %3657 = vmatprep.subr.bf16.mxu0 0
  %3658 = vmatpush1.bf16.msra.mxu0 0
  %3659 = vmatprep.mubr.bf16.mxu0 0
  %3660 = vmatmul.mubr.bf16.gmra.mrb[0].mxu0 %v3622
  %v3661 = vpop.f32.mrb[0].mxu0
  %v3662 = vadd.f32 0.0, %v3661
  %v3663 = vpop.f32.mrb[0].mxu0
  %v3664 = vpop.f32.mrb[0].mxu0
  %v3665 = vpop.f32.mrb[0].mxu0
  %3666 = vdwg.mxu0
  %v3668 = vsel %vm940, %v3606, 0
  %v3671 = vsel %vm1480, %v3614, 0
  %3673 = vmatprep.subr.bf16.mxu0 0
  %3674 = vmatpush1.bf16.msra.mxu0 %v3671
  %3675 = vmatprep.subr.bf16.mxu0 0
  %3676 = vmatpush1.bf16.msra.mxu0 0
  %3677 = vmatprep.subr.bf16.mxu0 0
  %3678 = vmatpush1.bf16.msra.mxu0 0
  %3679 = vmatprep.subr.bf16.mxu0 0
  %3680 = vmatpush1.bf16.msra.mxu0 0
  %3681 = vmatprep.subr.bf16.mxu0 0
  %3682 = vmatpush1.bf16.msra.mxu0 0
  %3683 = vmatprep.subr.bf16.mxu0 0
  %3684 = vmatpush1.bf16.msra.mxu0 0
  %3685 = vmatprep.subr.bf16.mxu0 0
  %3686 = vmatpush1.bf16.msra.mxu0 0
  %3687 = vmatprep.subr.bf16.mxu0 0
  %3688 = vmatpush1.bf16.msra.mxu0 0
  %3689 = vmatprep.subr.bf16.mxu0 0
  %3690 = vmatpush1.bf16.msra.mxu0 0
  %3691 = vmatprep.subr.bf16.mxu0 0
  %3692 = vmatpush1.bf16.msra.mxu0 0
  %3693 = vmatprep.subr.bf16.mxu0 0
  %3694 = vmatpush1.bf16.msra.mxu0 0
  %3695 = vmatprep.subr.bf16.mxu0 0
  %3696 = vmatpush1.bf16.msra.mxu0 0
  %3697 = vmatprep.subr.bf16.mxu0 0
  %3698 = vmatpush1.bf16.msra.mxu0 0
  %3699 = vmatprep.subr.bf16.mxu0 0
  %3700 = vmatpush1.bf16.msra.mxu0 0
  %3701 = vmatprep.subr.bf16.mxu0 0
  %3702 = vmatpush1.bf16.msra.mxu0 0
  %3703 = vmatprep.subr.bf16.mxu0 0
  %3704 = vmatpush1.bf16.msra.mxu0 0
  %3705 = vmatprep.mubr.bf16.mxu0 0
  %3706 = vmatmul.mubr.bf16.gmra.mrb[0].mxu0 %v3668
  %v3707 = vpop.f32.mrb[0].mxu0
  %v3708 = vadd.f32 0.0, %v3707
  %v3709 = vpop.f32.mrb[0].mxu0
  %v3710 = vpop.f32.mrb[0].mxu0
  %v3711 = vpop.f32.mrb[0].mxu0
  %3712 = vdwg.mxu0
  %v3714 = vsel %vm940, %v3607, 0
  %v3717 = vsel %vm1480, %v3615, 0
  %3719 = vmatprep.subr.bf16.mxu0 0
  %3720 = vmatpush1.bf16.msra.mxu0 %v3717
  %3721 = vmatprep.subr.bf16.mxu0 0
  %3722 = vmatpush1.bf16.msra.mxu0 0
  %3723 = vmatprep.subr.bf16.mxu0 0
  %3724 = vmatpush1.bf16.msra.mxu0 0
  %3725 = vmatprep.subr.bf16.mxu0 0
  %3726 = vmatpush1.bf16.msra.mxu0 0
  %3727 = vmatprep.subr.bf16.mxu0 0
  %3728 = vmatpush1.bf16.msra.mxu0 0
  %3729 = vmatprep.subr.bf16.mxu0 0
  %3730 = vmatpush1.bf16.msra.mxu0 0
  %3731 = vmatprep.subr.bf16.mxu0 0
  %3732 = vmatpush1.bf16.msra.mxu0 0
  %3733 = vmatprep.subr.bf16.mxu0 0
  %3734 = vmatpush1.bf16.msra.mxu0 0
  %3735 = vmatprep.subr.bf16.mxu0 0
  %3736 = vmatpush1.bf16.msra.mxu0 0
  %3737 = vmatprep.subr.bf16.mxu0 0
  %3738 = vmatpush1.bf16.msra.mxu0 0
  %3739 = vmatprep.subr.bf16.mxu0 0
  %3740 = vmatpush1.bf16.msra.mxu0 0
  %3741 = vmatprep.subr.bf16.mxu0 0
  %3742 = vmatpush1.bf16.msra.mxu0 0
  %3743 = vmatprep.subr.bf16.mxu0 0
  %3744 = vmatpush1.bf16.msra.mxu0 0
  %3745 = vmatprep.subr.bf16.mxu0 0
  %3746 = vmatpush1.bf16.msra.mxu0 0
  %3747 = vmatprep.subr.bf16.mxu0 0
  %3748 = vmatpush1.bf16.msra.mxu0 0
  %3749 = vmatprep.subr.bf16.mxu0 0
  %3750 = vmatpush1.bf16.msra.mxu0 0
  %3751 = vmatprep.mubr.bf16.mxu0 0
  %3752 = vmatmul.mubr.bf16.gmra.mrb[0].mxu0 %v3714
  %v3753 = vpop.f32.mrb[0].mxu0
  %v3754 = vadd.f32 0.0, %v3753
  %v3755 = vpop.f32.mrb[0].mxu0
  %v3756 = vpop.f32.mrb[0].mxu0
  %v3757 = vpop.f32.mrb[0].mxu0
  %3758 = vdwg.mxu0
  %v3760 = vsel %vm940, %v3608, 0
  %v3763 = vsel %vm1480, %v3616, 0
  %3765 = vmatprep.subr.bf16.mxu0 0
  %3766 = vmatpush1.bf16.msra.mxu0 %v3763
  %3767 = vmatprep.subr.bf16.mxu0 0
  %3768 = vmatpush1.bf16.msra.mxu0 0
  %3769 = vmatprep.subr.bf16.mxu0 0
  %3770 = vmatpush1.bf16.msra.mxu0 0
  %3771 = vmatprep.subr.bf16.mxu0 0
  %3772 = vmatpush1.bf16.msra.mxu0 0
  %3773 = vmatprep.subr.bf16.mxu0 0
  %3774 = vmatpush1.bf16.msra.mxu0 0
  %3775 = vmatprep.subr.bf16.mxu0 0
  %3776 = vmatpush1.bf16.msra.mxu0 0
  %3777 = vmatprep.subr.bf16.mxu0 0
  %3778 = vmatpush1.bf16.msra.mxu0 0
  %3779 = vmatprep.subr.bf16.mxu0 0
  %3780 = vmatpush1.bf16.msra.mxu0 0
  %3781 = vmatprep.subr.bf16.mxu0 0
  %3782 = vmatpush1.bf16.msra.mxu0 0
  %3783 = vmatprep.subr.bf16.mxu0 0
  %3784 = vmatpush1.bf16.msra.mxu0 0
  %3785 = vmatprep.subr.bf16.mxu0 0
  %3786 = vmatpush1.bf16.msra.mxu0 0
  %3787 = vmatprep.subr.bf16.mxu0 0
  %3788 = vmatpush1.bf16.msra.mxu0 0
  %3789 = vmatprep.subr.bf16.mxu0 0
  %3790 = vmatpush1.bf16.msra.mxu0 0
  %3791 = vmatprep.subr.bf16.mxu0 0
  %3792 = vmatpush1.bf16.msra.mxu0 0
  %3793 = vmatprep.subr.bf16.mxu0 0
  %3794 = vmatpush1.bf16.msra.mxu0 0
  %3795 = vmatprep.subr.bf16.mxu0 0
  %3796 = vmatpush1.bf16.msra.mxu0 0
  %3797 = vmatprep.mubr.bf16.mxu0 0
  %3798 = vmatmul.mubr.bf16.gmra.mrb[0].mxu0 %v3760
  %v3799 = vpop.f32.mrb[0].mxu0
  %v3800 = vadd.f32 0.0, %v3799
  %v3801 = vpop.f32.mrb[0].mxu0
  %v3802 = vpop.f32.mrb[0].mxu0
  %v3803 = vpop.f32.mrb[0].mxu0
  %3804 = vdwg.mxu0
  %v3806 = vsel %vm940, %v3609, 0
  %v3809 = vsel %vm1480, %v3617, 0
  %3811 = vmatprep.subr.bf16.mxu0 0
  %3812 = vmatpush1.bf16.msra.mxu0 %v3809
  %3813 = vmatprep.subr.bf16.mxu0 0
  %3814 = vmatpush1.bf16.msra.mxu0 0
  %3815 = vmatprep.subr.bf16.mxu0 0
  %3816 = vmatpush1.bf16.msra.mxu0 0
  %3817 = vmatprep.subr.bf16.mxu0 0
  %3818 = vmatpush1.bf16.msra.mxu0 0
  %3819 = vmatprep.subr.bf16.mxu0 0
  %3820 = vmatpush1.bf16.msra.mxu0 0
  %3821 = vmatprep.subr.bf16.mxu0 0
  %3822 = vmatpush1.bf16.msra.mxu0 0
  %3823 = vmatprep.subr.bf16.mxu0 0
  %3824 = vmatpush1.bf16.msra.mxu0 0
  %3825 = vmatprep.subr.bf16.mxu0 0
  %3826 = vmatpush1.bf16.msra.mxu0 0
  %3827 = vmatprep.subr.bf16.mxu0 0
  %3828 = vmatpush1.bf16.msra.mxu0 0
  %3829 = vmatprep.subr.bf16.mxu0 0
  %3830 = vmatpush1.bf16.msra.mxu0 0
  %3831 = vmatprep.subr.bf16.mxu0 0
  %3832 = vmatpush1.bf16.msra.mxu0 0
  %3833 = vmatprep.subr.bf16.mxu0 0
  %3834 = vmatpush1.bf16.msra.mxu0 0
  %3835 = vmatprep.subr.bf16.mxu0 0
  %3836 = vmatpush1.bf16.msra.mxu0 0
  %3837 = vmatprep.subr.bf16.mxu0 0
  %3838 = vmatpush1.bf16.msra.mxu0 0
  %3839 = vmatprep.subr.bf16.mxu0 0
  %3840 = vmatpush1.bf16.msra.mxu0 0
  %3841 = vmatprep.subr.bf16.mxu0 0
  %3842 = vmatpush1.bf16.msra.mxu0 0
  %3843 = vmatprep.mubr.bf16.mxu0 0
  %3844 = vmatmul.mubr.bf16.gmra.mrb[0].mxu0 %v3806
  %v3845 = vpop.f32.mrb[0].mxu0
  %v3846 = vadd.f32 0.0, %v3845
  %v3847 = vpop.f32.mrb[0].mxu0
  %v3848 = vpop.f32.mrb[0].mxu0
  %v3849 = vpop.f32.mrb[0].mxu0
  %3850 = vdwg.mxu0
  %v3852 = vsel %vm940, %v3610, 0
  %v3855 = vsel %vm1480, %v3618, 0
  %3857 = vmatprep.subr.bf16.mxu0 0
  %3858 = vmatpush1.bf16.msra.mxu0 %v3855
  %3859 = vmatprep.subr.bf16.mxu0 0
  %3860 = vmatpush1.bf16.msra.mxu0 0
  %3861 = vmatprep.subr.bf16.mxu0 0
  %3862 = vmatpush1.bf16.msra.mxu0 0
  %3863 = vmatprep.subr.bf16.mxu0 0
  %3864 = vmatpush1.bf16.msra.mxu0 0
  %3865 = vmatprep.subr.bf16.mxu0 0
  %3866 = vmatpush1.bf16.msra.mxu0 0
  %3867 = vmatprep.subr.bf16.mxu0 0
  %3868 = vmatpush1.bf16.msra.mxu0 0
  %3869 = vmatprep.subr.bf16.mxu0 0
  %3870 = vmatpush1.bf16.msra.mxu0 0
  %3871 = vmatprep.subr.bf16.mxu0 0
  %3872 = vmatpush1.bf16.msra.mxu0 0
  %3873 = vmatprep.subr.bf16.mxu0 0
  %3874 = vmatpush1.bf16.msra.mxu0 0
  %3875 = vmatprep.subr.bf16.mxu0 0
  %3876 = vmatpush1.bf16.msra.mxu0 0
  %3877 = vmatprep.subr.bf16.mxu0 0
  %3878 = vmatpush1.bf16.msra.mxu0 0
  %3879 = vmatprep.subr.bf16.mxu0 0
  %3880 = vmatpush1.bf16.msra.mxu0 0
  %3881 = vmatprep.subr.bf16.mxu0 0
  %3882 = vmatpush1.bf16.msra.mxu0 0
  %3883 = vmatprep.subr.bf16.mxu0 0
  %3884 = vmatpush1.bf16.msra.mxu0 0
  %3885 = vmatprep.subr.bf16.mxu0 0
  %3886 = vmatpush1.bf16.msra.mxu0 0
  %3887 = vmatprep.subr.bf16.mxu0 0
  %3888 = vmatpush1.bf16.msra.mxu0 0
  %3889 = vmatprep.mubr.bf16.mxu0 0
  %3890 = vmatmul.mubr.bf16.gmra.mrb[0].mxu0 %v3852
  %v3891 = vpop.f32.mrb[0].mxu0
  %v3892 = vadd.f32 0.0, %v3891
  %v3893 = vpop.f32.mrb[0].mxu0
  %v3894 = vpop.f32.mrb[0].mxu0
  %v3895 = vpop.f32.mrb[0].mxu0
  %3896 = vdwg.mxu0
  %v3898 = vsel %vm940, %v3611, 0
  %v3901 = vsel %vm1480, %v3619, 0
  %3903 = vmatprep.subr.bf16.mxu0 0
  %3904 = vmatpush1.bf16.msra.mxu0 %v3901
  %3905 = vmatprep.subr.bf16.mxu0 0
  %3906 = vmatpush1.bf16.msra.mxu0 0
  %3907 = vmatprep.subr.bf16.mxu0 0
  %3908 = vmatpush1.bf16.msra.mxu0 0
  %3909 = vmatprep.subr.bf16.mxu0 0
  %3910 = vmatpush1.bf16.msra.mxu0 0
  %3911 = vmatprep.subr.bf16.mxu0 0
  %3912 = vmatpush1.bf16.msra.mxu0 0
  %3913 = vmatprep.subr.bf16.mxu0 0
  %3914 = vmatpush1.bf16.msra.mxu0 0
  %3915 = vmatprep.subr.bf16.mxu0 0
  %3916 = vmatpush1.bf16.msra.mxu0 0
  %3917 = vmatprep.subr.bf16.mxu0 0
  %3918 = vmatpush1.bf16.msra.mxu0 0
  %3919 = vmatprep.subr.bf16.mxu0 0
  %3920 = vmatpush1.bf16.msra.mxu0 0
  %3921 = vmatprep.subr.bf16.mxu0 0
  %3922 = vmatpush1.bf16.msra.mxu0 0
  %3923 = vmatprep.subr.bf16.mxu0 0
  %3924 = vmatpush1.bf16.msra.mxu0 0
  %3925 = vmatprep.subr.bf16.mxu0 0
  %3926 = vmatpush1.bf16.msra.mxu0 0
  %3927 = vmatprep.subr.bf16.mxu0 0
  %3928 = vmatpush1.bf16.msra.mxu0 0
  %3929 = vmatprep.subr.bf16.mxu0 0
  %3930 = vmatpush1.bf16.msra.mxu0 0
  %3931 = vmatprep.subr.bf16.mxu0 0
  %3932 = vmatpush1.bf16.msra.mxu0 0
  %3933 = vmatprep.subr.bf16.mxu0 0
  %3934 = vmatpush1.bf16.msra.mxu0 0
  %3935 = vmatprep.mubr.bf16.mxu0 0
  %3936 = vmatmul.mubr.bf16.gmra.mrb[0].mxu0 %v3898
  %v3937 = vpop.f32.mrb[0].mxu0
  %v3938 = vadd.f32 0.0, %v3937
  %v3939 = vpop.f32.mrb[0].mxu0
  %v3940 = vpop.f32.mrb[0].mxu0
  %v3941 = vpop.f32.mrb[0].mxu0
  %3942 = vdwg.mxu0
  %v3944 = vsel %vm940, %v3612, 0
  %v3947 = vsel %vm1480, %v3620, 0
  %3949 = vmatprep.subr.bf16.mxu0 0
  %3950 = vmatpush1.bf16.msra.mxu0 %v3947
  %3951 = vmatprep.subr.bf16.mxu0 0
  %3952 = vmatpush1.bf16.msra.mxu0 0
  %3953 = vmatprep.subr.bf16.mxu0 0
  %3954 = vmatpush1.bf16.msra.mxu0 0
  %3955 = vmatprep.subr.bf16.mxu0 0
  %3956 = vmatpush1.bf16.msra.mxu0 0
  %3957 = vmatprep.subr.bf16.mxu0 0
  %3958 = vmatpush1.bf16.msra.mxu0 0
  %3959 = vmatprep.subr.bf16.mxu0 0
  %3960 = vmatpush1.bf16.msra.mxu0 0
  %3961 = vmatprep.subr.bf16.mxu0 0
  %3962 = vmatpush1.bf16.msra.mxu0 0
  %3963 = vmatprep.subr.bf16.mxu0 0
  %3964 = vmatpush1.bf16.msra.mxu0 0
  %3965 = vmatprep.subr.bf16.mxu0 0
  %3966 = vmatpush1.bf16.msra.mxu0 0
  %3967 = vmatprep.subr.bf16.mxu0 0
  %3968 = vmatpush1.bf16.msra.mxu0 0
  %3969 = vmatprep.subr.bf16.mxu0 0
  %3970 = vmatpush1.bf16.msra.mxu0 0
  %3971 = vmatprep.subr.bf16.mxu0 0
  %3972 = vmatpush1.bf16.msra.mxu0 0
  %3973 = vmatprep.subr.bf16.mxu0 0
  %3974 = vmatpush1.bf16.msra.mxu0 0
  %3975 = vmatprep.subr.bf16.mxu0 0
  %3976 = vmatpush1.bf16.msra.mxu0 0
  %3977 = vmatprep.subr.bf16.mxu0 0
  %3978 = vmatpush1.bf16.msra.mxu0 0
  %3979 = vmatprep.subr.bf16.mxu0 0
  %3980 = vmatpush1.bf16.msra.mxu0 0
  %3981 = vmatprep.mubr.bf16.mxu0 0
  %3982 = vmatmul.mubr.bf16.gmra.mrb[0].mxu0 %v3944
  %v3983 = vpop.f32.mrb[0].mxu0
  %v3984 = vadd.f32 0.0, %v3983
  %v3985 = vpop.f32.mrb[0].mxu0
  %v3986 = vpop.f32.mrb[0].mxu0
  %v3987 = vpop.f32.mrb[0].mxu0
  %3988 = vdwg.mxu0
  %v3989 = vpack.c.bf16 %v3708, %v3662
  %s3990 = scalar_lea.vmem %s10, 16
  %v3991 = vld [vmem:[%s3990] sm:$0xf]
  %v3992 = vpack.c.bf16 %v3800, %v3754
  %s3993 = scalar_lea.vmem %s10, 20
  %v3994 = vld [vmem:[%s3993] sm:$0xf]
  %v3996 = vsel %vm940, %v3992, 0
  %v3999 = vsel %vm1480, %v3994, 0
  %4001 = vmatprep.subr.bf16.mxu0 0
  %4002 = vmatpush1.bf16.msra.mxu0 %v3999
  %4003 = vmatprep.subr.bf16.mxu0 0
  %4004 = vmatpush1.bf16.msra.mxu0 0
  %4005 = vmatprep.subr.bf16.mxu0 0
  %4006 = vmatpush1.bf16.msra.mxu0 0
  %4007 = vmatprep.subr.bf16.mxu0 0
  %4008 = vmatpush1.bf16.msra.mxu0 0
  %4009 = vmatprep.subr.bf16.mxu0 0
  %4010 = vmatpush1.bf16.msra.mxu0 0
  %4011 = vmatprep.subr.bf16.mxu0 0
  %4012 = vmatpush1.bf16.msra.mxu0 0
  %4013 = vmatprep.subr.bf16.mxu0 0
  %4014 = vmatpush1.bf16.msra.mxu0 0
  %4015 = vmatprep.subr.bf16.mxu0 0
  %4016 = vmatpush1.bf16.msra.mxu0 0
  %4017 = vmatprep.subr.bf16.mxu0 0
  %4018 = vmatpush1.bf16.msra.mxu0 0
  %4019 = vmatprep.subr.bf16.mxu0 0
  %4020 = vmatpush1.bf16.msra.mxu0 0
  %4021 = vmatprep.subr.bf16.mxu0 0
  %4022 = vmatpush1.bf16.msra.mxu0 0
  %4023 = vmatprep.subr.bf16.mxu0 0
  %4024 = vmatpush1.bf16.msra.mxu0 0
  %4025 = vmatprep.subr.bf16.mxu0 0
  %4026 = vmatpush1.bf16.msra.mxu0 0
  %4027 = vmatprep.subr.bf16.mxu0 0
  %4028 = vmatpush1.bf16.msra.mxu0 0
  %4029 = vmatprep.subr.bf16.mxu0 0
  %4030 = vmatpush1.bf16.msra.mxu0 0
  %4031 = vmatprep.subr.bf16.mxu0 0
  %4032 = vmatpush1.bf16.msra.mxu0 0
  %4033 = vmatprep.mubr.bf16.mxu0 0
  %4034 = vmatmul.mubr.bf16.gmra.mrb[0].mxu0 %v3996
  %v4035 = vpop.f32.mrb[0].mxu0
  %v4036 = vadd.f32 0.0, %v4035
  %v4037 = vpop.f32.mrb[0].mxu0
  %v4038 = vpop.f32.mrb[0].mxu0
  %v4039 = vadd.f32 0.0, %v4038
  %v4040 = vpop.f32.mrb[0].mxu0
  %4041 = vdwg.mxu0
  %v4043 = vsel %vm940, %v3989, 0
  %v4046 = vsel %vm1480, %v3991, 0
  %4048 = vmatprep.subr.bf16.mxu0 0
  %4049 = vmatpush1.bf16.msra.mxu0 %v4046
  %4050 = vmatprep.subr.bf16.mxu0 0
  %4051 = vmatpush1.bf16.msra.mxu0 0
  %4052 = vmatprep.subr.bf16.mxu0 0
  %4053 = vmatpush1.bf16.msra.mxu0 0
  %4054 = vmatprep.subr.bf16.mxu0 0
  %4055 = vmatpush1.bf16.msra.mxu0 0
  %4056 = vmatprep.subr.bf16.mxu0 0
  %4057 = vmatpush1.bf16.msra.mxu0 0
  %4058 = vmatprep.subr.bf16.mxu0 0
  %4059 = vmatpush1.bf16.msra.mxu0 0
  %4060 = vmatprep.subr.bf16.mxu0 0
  %4061 = vmatpush1.bf16.msra.mxu0 0
  %4062 = vmatprep.subr.bf16.mxu0 0
  %4063 = vmatpush1.bf16.msra.mxu0 0
  %4064 = vmatprep.subr.bf16.mxu0 0
  %4065 = vmatpush1.bf16.msra.mxu0 0
  %4066 = vmatprep.subr.bf16.mxu0 0
  %4067 = vmatpush1.bf16.msra.mxu0 0
  %4068 = vmatprep.subr.bf16.mxu0 0
  %4069 = vmatpush1.bf16.msra.mxu0 0
  %4070 = vmatprep.subr.bf16.mxu0 0
  %4071 = vmatpush1.bf16.msra.mxu0 0
  %4072 = vmatprep.subr.bf16.mxu0 0
  %4073 = vmatpush1.bf16.msra.mxu0 0
  %4074 = vmatprep.subr.bf16.mxu0 0
  %4075 = vmatpush1.bf16.msra.mxu0 0
  %4076 = vmatprep.subr.bf16.mxu0 0
  %4077 = vmatpush1.bf16.msra.mxu0 0
  %4078 = vmatprep.subr.bf16.mxu0 0
  %4079 = vmatpush1.bf16.msra.mxu0 0
  %4080 = vmatprep.mubr.bf16.mxu0 0
  %4081 = vmatmul.mubr.bf16.gmra.mrb[0].mxu0 %v4043
  %v4082 = vpop.f32.mrb[0].mxu0
  %v4083 = vadd.f32 %v4036, %v4082
  %v4084 = vpop.f32.mrb[0].mxu0
  %v4085 = vpop.f32.mrb[0].mxu0
  %v4086 = vadd.f32 %v4039, %v4085
  %v4087 = vpop.f32.mrb[0].mxu0
  %4088 = vdwg.mxu0
  %v4089 = vpack.c.bf16 %v3892, %v3846
  %s4090 = scalar_lea.vmem %s10, 24
  %v4091 = vld [vmem:[%s4090] sm:$0xf]
  %v4093 = vsel %vm940, %v4089, 0
  %v4096 = vsel %vm1480, %v4091, 0
  %4098 = vmatprep.subr.bf16.mxu0 0
  %4099 = vmatpush1.bf16.msra.mxu0 %v4096
  %4100 = vmatprep.subr.bf16.mxu0 0
  %4101 = vmatpush1.bf16.msra.mxu0 0
  %4102 = vmatprep.subr.bf16.mxu0 0
  %4103 = vmatpush1.bf16.msra.mxu0 0
  %4104 = vmatprep.subr.bf16.mxu0 0
  %4105 = vmatpush1.bf16.msra.mxu0 0
  %4106 = vmatprep.subr.bf16.mxu0 0
  %4107 = vmatpush1.bf16.msra.mxu0 0
  %4108 = vmatprep.subr.bf16.mxu0 0
  %4109 = vmatpush1.bf16.msra.mxu0 0
  %4110 = vmatprep.subr.bf16.mxu0 0
  %4111 = vmatpush1.bf16.msra.mxu0 0
  %4112 = vmatprep.subr.bf16.mxu0 0
  %4113 = vmatpush1.bf16.msra.mxu0 0
  %4114 = vmatprep.subr.bf16.mxu0 0
  %4115 = vmatpush1.bf16.msra.mxu0 0
  %4116 = vmatprep.subr.bf16.mxu0 0
  %4117 = vmatpush1.bf16.msra.mxu0 0
  %4118 = vmatprep.subr.bf16.mxu0 0
  %4119 = vmatpush1.bf16.msra.mxu0 0
  %4120 = vmatprep.subr.bf16.mxu0 0
  %4121 = vmatpush1.bf16.msra.mxu0 0
  %4122 = vmatprep.subr.bf16.mxu0 0
  %4123 = vmatpush1.bf16.msra.mxu0 0
  %4124 = vmatprep.subr.bf16.mxu0 0
  %4125 = vmatpush1.bf16.msra.mxu0 0
  %4126 = vmatprep.subr.bf16.mxu0 0
  %4127 = vmatpush1.bf16.msra.mxu0 0
  %4128 = vmatprep.subr.bf16.mxu0 0
  %4129 = vmatpush1.bf16.msra.mxu0 0
  %4130 = vmatprep.mubr.bf16.mxu0 0
  %4131 = vmatmul.mubr.bf16.gmra.mrb[0].mxu0 %v4093
  %v4132 = vpop.f32.mrb[0].mxu0
  %v4133 = vadd.f32 0.0, %v4132
  %v4134 = vpop.f32.mrb[0].mxu0
  %v4135 = vpop.f32.mrb[0].mxu0
  %v4136 = vadd.f32 0.0, %v4135
  %v4137 = vpop.f32.mrb[0].mxu0
  %4138 = vdwg.mxu0
  %v4139 = vadd.f32 %v4083, %v4133
  %v4140 = vadd.f32 %v4086, %v4136
  %v4141 = vpack.c.bf16 %v3984, %v3938
  %s4142 = scalar_lea.vmem %s10, 28
  %v4143 = vld [vmem:[%s4142] sm:$0xf]
  %v4145 = vsel %vm940, %v4141, 0
  %v4148 = vsel %vm1480, %v4143, 0
  %4150 = vmatprep.subr.bf16.mxu0 0
  %4151 = vmatpush1.bf16.msra.mxu0 %v4148
  %4152 = vmatprep.subr.bf16.mxu0 0
  %4153 = vmatpush1.bf16.msra.mxu0 0
  %4154 = vmatprep.subr.bf16.mxu0 0
  %4155 = vmatpush1.bf16.msra.mxu0 0
  %4156 = vmatprep.subr.bf16.mxu0 0
  %4157 = vmatpush1.bf16.msra.mxu0 0
  %4158 = vmatprep.subr.bf16.mxu0 0
  %4159 = vmatpush1.bf16.msra.mxu0 0
  %4160 = vmatprep.subr.bf16.mxu0 0
  %4161 = vmatpush1.bf16.msra.mxu0 0
  %4162 = vmatprep.subr.bf16.mxu0 0
  %4163 = vmatpush1.bf16.msra.mxu0 0
  %4164 = vmatprep.subr.bf16.mxu0 0
  %4165 = vmatpush1.bf16.msra.mxu0 0
  %4166 = vmatprep.subr.bf16.mxu0 0
  %4167 = vmatpush1.bf16.msra.mxu0 0
  %4168 = vmatprep.subr.bf16.mxu0 0
  %4169 = vmatpush1.bf16.msra.mxu0 0
  %4170 = vmatprep.subr.bf16.mxu0 0
  %4171 = vmatpush1.bf16.msra.mxu0 0
  %4172 = vmatprep.subr.bf16.mxu0 0
  %4173 = vmatpush1.bf16.msra.mxu0 0
  %4174 = vmatprep.subr.bf16.mxu0 0
  %4175 = vmatpush1.bf16.msra.mxu0 0
  %4176 = vmatprep.subr.bf16.mxu0 0
  %4177 = vmatpush1.bf16.msra.mxu0 0
  %4178 = vmatprep.subr.bf16.mxu0 0
  %4179 = vmatpush1.bf16.msra.mxu0 0
  %4180 = vmatprep.subr.bf16.mxu0 0
  %4181 = vmatpush1.bf16.msra.mxu0 0
  %4182 = vmatprep.mubr.bf16.mxu0 0
  %4183 = vmatmul.mubr.bf16.gmra.mrb[0].mxu0 %v4145
  %v4184 = vpop.f32.mrb[0].mxu0
  %v4185 = vadd.f32 0.0, %v4184
  %v4186 = vpop.f32.mrb[0].mxu0
  %v4187 = vpop.f32.mrb[0].mxu0
  %v4188 = vadd.f32 0.0, %v4187
  %v4189 = vpop.f32.mrb[0].mxu0
  %4190 = vdwg.mxu0
  %v4191 = vadd.f32 %v4139, %v4185
  %v4192 = vadd.f32 %v4140, %v4188
  %s4193 = scalar_lea.vmem %s11, 1
  %v4194 = vld [vmem:[%s4193] sm:$0x1]
  %v4196 = vlaneseq
  %v4197 = vshrl.u32 %v4196, 7
  %v4198 = vsub.s32 0, %v4197
  %v4199 = vrot.slane %v4194, %v4198
  %v4201 = vadd.f32 %v4191, %v4199
  %v4202 = vadd.f32 %v4192, %v4199
  %v4203 = vadd.f32 %v4201, %v2319
  %v4204 = vadd.f32 %v4202, %v2320
  %s4205 = scalar_lea.vmem %s16, 1
  %v4206 = vld [vmem:[%s4205] sm:$0x1]
  %s4207 = scalar_lea.vmem %s17, 1
  %v4208 = vld [vmem:[%s4207] sm:$0x1]
  %v4209 = vsel %vm82, %v4203, 0.0
  %4210 = vadd.xlane.f32.xlu0 %v4209
  %v4211 = vpop.xlane.xlu0 %4210
  %v4212 = vsel %vm82, %v4204, 0.0
  %4213 = vadd.xlane.f32.xlu0 %v4212
  %v4214 = vpop.xlane.xlu0 %4213
  %v4215 = vmul.f32 %v4211, %v89
  %v4216 = vmul.f32 %v4214, %v89
  %v4217 = vsub.f32 %v4203, %v4215
  %v4218 = vsub.f32 %v4204, %v4216
  %v4219 = vmul.f32 %v4217, %v4217
  %v4220 = vmul.f32 %v4218, %v4218
  %v4221 = vsel %vm82, %v4219, 0.0
  %4222 = vadd.xlane.f32.xlu0 %v4221
  %v4223 = vpop.xlane.xlu0 %4222
  %v4224 = vsel %vm82, %v4220, 0.0
  %4225 = vadd.xlane.f32.xlu0 %v4224
  %v4226 = vpop.xlane.xlu0 %4225
  %v4227 = vmul.f32 %v4223, %v89
  %v4228 = vmul.f32 %v4226, %v89
  %v4229 = vadd.f32 %v4227, 1e-12
  %v4230 = vadd.f32 %v4228, 1e-12
  %v4231 = vrsqrt.pop %v4229
  %v4232 = vrsqrt.pop %v4230
  %v4233 = vmul.f32 %v4217, %v4231
  %v4234 = vmul.f32 %v4218, %v4232
  %v4236 = vlaneseq
  %v4237 = vshrl.u32 %v4236, 7
  %v4238 = vsub.s32 0, %v4237
  %v4239 = vrot.slane %v4206, %v4238
  %v4241 = vmul.f32 %v4233, %v4239
  %v4242 = vmul.f32 %v4234, %v4239
  %v4244 = vlaneseq
  %v4245 = vshrl.u32 %v4244, 7
  %v4246 = vsub.s32 0, %v4245
  %v4247 = vrot.slane %v4208, %v4246
  %v4249 = vadd.f32 %v4241, %v4247
  %v4250 = vadd.f32 %v4242, %v4247
  %v4251 = vpack.c.bf16 %v4250, %v4249
  %s4252 = scalar_lea.vmem %s12, 16
  %v4253 = vld [vmem:[%s4252] sm:$0xf]
  %v4254 = vld [vmem:[%s4252 + $0x4] sm:$0xf]
  %v4255 = vld [vmem:[%s4252 + $0x8] sm:$0xf]
  %v4256 = vld [vmem:[%s4252 + $0xc] sm:$0xf]
  %s4257 = scalar_lea.vmem %s13, 1
  %v4258 = vld [vmem:[%s4257] sm:$0x1]
  %v4260 = vlaneseq
  %v4261 = vshrl.u32 %v4260, 7
  %v4262 = vsub.s32 0, %v4261
  %v4263 = vrot.slane %v4258, %v4262
  %v4269 = vunpack.c.l.b16 %v4253
  %v4270 = vunpack.c.l.b16 %v4254
  %v4271 = vunpack.c.l.b16 %v4255
  %v4272 = vunpack.c.l.b16 %v4256
  %v4273 = vpack.c.b16 %v4270, %v4269
  %v4274 = vpack.c.b16 %v4272, %v4271
  %v4278 = vsel %vm82, %v4251, 0
  %4280 = vmatprep.subr.bf16.mxu0 0
  %4281 = vmatpush1.bf16.msra.mxu0 %v4273
  %4282 = vmatprep.subr.bf16.mxu0 0
  %4283 = vmatpush1.bf16.msra.mxu0 %v4274
  %4284 = vmatprep.subr.bf16.mxu0 0
  %4285 = vmatpush1.bf16.msra.mxu0 0
  %4286 = vmatprep.subr.bf16.mxu0 0
  %4287 = vmatpush1.bf16.msra.mxu0 0
  %4288 = vmatprep.subr.bf16.mxu0 0
  %4289 = vmatpush1.bf16.msra.mxu0 0
  %4290 = vmatprep.subr.bf16.mxu0 0
  %4291 = vmatpush1.bf16.msra.mxu0 0
  %4292 = vmatprep.subr.bf16.mxu0 0
  %4293 = vmatpush1.bf16.msra.mxu0 0
  %4294 = vmatprep.subr.bf16.mxu0 0
  %4295 = vmatpush1.bf16.msra.mxu0 0
  %4296 = vmatprep.subr.bf16.mxu0 0
  %4297 = vmatpush1.bf16.msra.mxu0 0
  %4298 = vmatprep.subr.bf16.mxu0 0
  %4299 = vmatpush1.bf16.msra.mxu0 0
  %4300 = vmatprep.subr.bf16.mxu0 0
  %4301 = vmatpush1.bf16.msra.mxu0 0
  %4302 = vmatprep.subr.bf16.mxu0 0
  %4303 = vmatpush1.bf16.msra.mxu0 0
  %4304 = vmatprep.subr.bf16.mxu0 0
  %4305 = vmatpush1.bf16.msra.mxu0 0
  %4306 = vmatprep.subr.bf16.mxu0 0
  %4307 = vmatpush1.bf16.msra.mxu0 0
  %4308 = vmatprep.subr.bf16.mxu0 0
  %4309 = vmatpush1.bf16.msra.mxu0 0
  %4310 = vmatprep.subr.bf16.mxu0 0
  %4311 = vmatpush1.bf16.msra.mxu0 0
  %4312 = vmatprep.mubr.bf16.mxu0 0
  %4313 = vmatmul.mubr.bf16.gmra.mrb[0].mxu0 %v4278
  %v4314 = vpop.f32.mrb[0].mxu0
  %v4315 = vadd.f32 %v4263, %v4314
  %v4316 = vpop.f32.mrb[0].mxu0
  %v4317 = vpop.f32.mrb[0].mxu0
  %v4318 = vadd.f32 %v4263, %v4317
  %v4319 = vpop.f32.mrb[0].mxu0
  %4320 = vdwg.mxu0
  %v4321 = vmul.f32 %v4315, 0.5
  %v4322 = vmul.f32 %v4318, 0.5
  %v4323 = vmul.f32 %v4315, 0.044715
  %v4324 = vmul.f32 %v4318, 0.044715
  %v4325 = vmul.f32 %v4323, %v4315
  %v4326 = vmul.f32 %v4324, %v4318
  %v4327 = vmul.f32 %v4325, %v4315
  %v4328 = vmul.f32 %v4326, %v4318
  %v4329 = vadd.f32 %v4315, %v4327
  %v4330 = vadd.f32 %v4318, %v4328
  %v4331 = vmul.f32 %v4329, 0.7978846
  %v4332 = vmul.f32 %v4330, 0.7978846
  %v4333 = vtanh.pop %v4331
  %v4334 = vtanh.pop %v4332
  %v4335 = vadd.f32 %v4333, 1.0
  %v4336 = vadd.f32 %v4334, 1.0
  %v4337 = vmul.f32 %v4321, %v4335
  %v4338 = vmul.f32 %v4322, %v4336
  %v4339 = vpack.c.bf16 %v4338, %v4337
  %s4340 = scalar_lea.vmem %s14, 32
  %v4341 = vld [vmem:[%s4340] sm:$0xf]
  %v4342 = vld [vmem:[%s4340 + $0x4] sm:$0xf]
  %v4343 = vld [vmem:[%s4340 + $0x8] sm:$0xf]
  %v4344 = vld [vmem:[%s4340 + $0xc] sm:$0xf]
  %v4345 = vld [vmem:[%s4340 + $0x10] sm:$0xf]
  %v4346 = vld [vmem:[%s4340 + $0x14] sm:$0xf]
  %v4347 = vld [vmem:[%s4340 + $0x18] sm:$0xf]
  %v4348 = vld [vmem:[%s4340 + $0x1c] sm:$0xf]
  %s4349 = scalar_lea.vmem %s15, 1
  %v4350 = vld [vmem:[%s4349] sm:$0x1]
  %v4352 = vlaneseq
  %v4353 = vshrl.u32 %v4352, 7
  %v4354 = vsub.s32 0, %v4353
  %v4355 = vrot.slane %v4350, %v4354
  %v4365 = vunpack.c.l.b16 %v4341
  %v4366 = vunpack.c.l.b16 %v4342
  %v4367 = vunpack.c.l.b16 %v4343
  %v4368 = vunpack.c.l.b16 %v4344
  %v4369 = vunpack.c.l.b16 %v4345
  %v4370 = vunpack.c.l.b16 %v4346
  %v4371 = vunpack.c.l.b16 %v4347
  %v4372 = vunpack.c.l.b16 %v4348
  %v4373 = vpack.c.b16 %v4366, %v4365
  %v4374 = vpack.c.b16 %v4368, %v4367
  %v4375 = vpack.c.b16 %v4370, %v4369
  %v4376 = vpack.c.b16 %v4372, %v4371
  %v4382 = vsel %vm2230, %v4339, 0
  %4384 = vmatprep.subr.bf16.mxu0 0
  %4385 = vmatpush1.bf16.msra.mxu0 %v4373
  %4386 = vmatprep.subr.bf16.mxu0 0
  %4387 = vmatpush1.bf16.msra.mxu0 %v4374
  %4388 = vmatprep.subr.bf16.mxu0 0
  %4389 = vmatpush1.bf16.msra.mxu0 %v4375
  %4390 = vmatprep.subr.bf16.mxu0 0
  %4391 = vmatpush1.bf16.msra.mxu0 %v4376
  %4392 = vmatprep.subr.bf16.mxu0 0
  %4393 = vmatpush1.bf16.msra.mxu0 0
  %4394 = vmatprep.subr.bf16.mxu0 0
  %4395 = vmatpush1.bf16.msra.mxu0 0
  %4396 = vmatprep.subr.bf16.mxu0 0
  %4397 = vmatpush1.bf16.msra.mxu0 0
  %4398 = vmatprep.subr.bf16.mxu0 0
  %4399 = vmatpush1.bf16.msra.mxu0 0
  %4400 = vmatprep.subr.bf16.mxu0 0
  %4401 = vmatpush1.bf16.msra.mxu0 0
  %4402 = vmatprep.subr.bf16.mxu0 0
  %4403 = vmatpush1.bf16.msra.mxu0 0
  %4404 = vmatprep.subr.bf16.mxu0 0
  %4405 = vmatpush1.bf16.msra.mxu0 0
  %4406 = vmatprep.subr.bf16.mxu0 0
  %4407 = vmatpush1.bf16.msra.mxu0 0
  %4408 = vmatprep.subr.bf16.mxu0 0
  %4409 = vmatpush1.bf16.msra.mxu0 0
  %4410 = vmatprep.subr.bf16.mxu0 0
  %4411 = vmatpush1.bf16.msra.mxu0 0
  %4412 = vmatprep.subr.bf16.mxu0 0
  %4413 = vmatpush1.bf16.msra.mxu0 0
  %4414 = vmatprep.subr.bf16.mxu0 0
  %4415 = vmatpush1.bf16.msra.mxu0 0
  %4416 = vmatprep.mubr.bf16.mxu0 0
  %4417 = vmatmul.mubr.bf16.gmra.mrb[0].mxu0 %v4382
  %v4418 = vpop.f32.mrb[0].mxu0
  %v4419 = vadd.f32 %v4355, %v4418
  %v4420 = vpop.f32.mrb[0].mxu0
  %v4421 = vpop.f32.mrb[0].mxu0
  %v4422 = vadd.f32 %v4355, %v4421
  %v4423 = vpop.f32.mrb[0].mxu0
  %4424 = vdwg.mxu0
  %v4425 = vadd.f32 %v4419, %v4249
  %v4426 = vadd.f32 %v4422, %v4250
  %s4427 = scalar_lea.vmem %s18, 1
  %v4428 = vld [vmem:[%s4427] sm:$0x1]
  %s4429 = scalar_lea.vmem %s19, 1
  %v4430 = vld [vmem:[%s4429] sm:$0x1]
  %v4431 = vsel %vm82, %v4425, 0.0
  %4432 = vadd.xlane.f32.xlu0 %v4431
  %v4433 = vpop.xlane.xlu0 %4432
  %v4434 = vsel %vm82, %v4426, 0.0
  %4435 = vadd.xlane.f32.xlu0 %v4434
  %v4436 = vpop.xlane.xlu0 %4435
  %v4437 = vmul.f32 %v4433, %v89
  %v4438 = vmul.f32 %v4436, %v89
  %v4439 = vsub.f32 %v4425, %v4437
  %v4440 = vsub.f32 %v4426, %v4438
  %v4441 = vmul.f32 %v4439, %v4439
  %v4442 = vmul.f32 %v4440, %v4440
  %v4443 = vsel %vm82, %v4441, 0.0
  %4444 = vadd.xlane.f32.xlu0 %v4443
  %v4445 = vpop.xlane.xlu0 %4444
  %v4446 = vsel %vm82, %v4442, 0.0
  %4447 = vadd.xlane.f32.xlu0 %v4446
  %v4448 = vpop.xlane.xlu0 %4447
  %v4449 = vmul.f32 %v4445, %v89
  %v4450 = vmul.f32 %v4448, %v89
  %v4451 = vadd.f32 %v4449, 1e-12
  %v4452 = vadd.f32 %v4450, 1e-12
  %v4453 = vrsqrt.pop %v4451
  %v4454 = vrsqrt.pop %v4452
  %v4455 = vmul.f32 %v4439, %v4453
  %v4456 = vmul.f32 %v4440, %v4454
  %v4458 = vlaneseq
  %v4459 = vshrl.u32 %v4458, 7
  %v4460 = vsub.s32 0, %v4459
  %v4461 = vrot.slane %v4428, %v4460
  %v4463 = vmul.f32 %v4455, %v4461
  %v4464 = vmul.f32 %v4456, %v4461
  %v4466 = vlaneseq
  %v4467 = vshrl.u32 %v4466, 7
  %v4468 = vsub.s32 0, %v4467
  %v4469 = vrot.slane %v4430, %v4468
  %v4471 = vadd.f32 %v4463, %v4469
  %v4472 = vadd.f32 %v4464, %v4469
  %v4473 = vpack.c.bf16 %v4472, %v4471
  %v4474 = vld [vmem:[%s20] sm:$0xf]
  %v4475 = vld [vmem:[%s20 + $0x4] sm:$0xf]
  %v4476 = vld [vmem:[%s20 + $0x8] sm:$0xf]
  %v4477 = vld [vmem:[%s20 + $0xc] sm:$0xf]
  %v4478 = vld [vmem:[%s21] sm:$0x1]
  %v4480 = vlaneseq
  %v4481 = vshrl.u32 %v4480, 7
  %v4482 = vsub.s32 0, %v4481
  %v4483 = vrot.slane %v4478, %v4482
  %v4489 = vunpack.c.l.b16 %v4474
  %v4490 = vunpack.c.l.b16 %v4475
  %v4491 = vunpack.c.l.b16 %v4476
  %v4492 = vunpack.c.l.b16 %v4477
  %v4493 = vpack.c.b16 %v4490, %v4489
  %v4494 = vpack.c.b16 %v4492, %v4491
  %v4498 = vsel %vm82, %v4473, 0
  %4500 = vmatprep.subr.bf16.mxu0 0
  %4501 = vmatpush1.bf16.msra.mxu0 %v4493
  %4502 = vmatprep.subr.bf16.mxu0 0
  %4503 = vmatpush1.bf16.msra.mxu0 %v4494
  %4504 = vmatprep.subr.bf16.mxu0 0
  %4505 = vmatpush1.bf16.msra.mxu0 0
  %4506 = vmatprep.subr.bf16.mxu0 0
  %4507 = vmatpush1.bf16.msra.mxu0 0
  %4508 = vmatprep.subr.bf16.mxu0 0
  %4509 = vmatpush1.bf16.msra.mxu0 0
  %4510 = vmatprep.subr.bf16.mxu0 0
  %4511 = vmatpush1.bf16.msra.mxu0 0
  %4512 = vmatprep.subr.bf16.mxu0 0
  %4513 = vmatpush1.bf16.msra.mxu0 0
  %4514 = vmatprep.subr.bf16.mxu0 0
  %4515 = vmatpush1.bf16.msra.mxu0 0
  %4516 = vmatprep.subr.bf16.mxu0 0
  %4517 = vmatpush1.bf16.msra.mxu0 0
  %4518 = vmatprep.subr.bf16.mxu0 0
  %4519 = vmatpush1.bf16.msra.mxu0 0
  %4520 = vmatprep.subr.bf16.mxu0 0
  %4521 = vmatpush1.bf16.msra.mxu0 0
  %4522 = vmatprep.subr.bf16.mxu0 0
  %4523 = vmatpush1.bf16.msra.mxu0 0
  %4524 = vmatprep.subr.bf16.mxu0 0
  %4525 = vmatpush1.bf16.msra.mxu0 0
  %4526 = vmatprep.subr.bf16.mxu0 0
  %4527 = vmatpush1.bf16.msra.mxu0 0
  %4528 = vmatprep.subr.bf16.mxu0 0
  %4529 = vmatpush1.bf16.msra.mxu0 0
  %4530 = vmatprep.subr.bf16.mxu0 0
  %4531 = vmatpush1.bf16.msra.mxu0 0
  %4532 = vmatprep.mubr.bf16.mxu0 0
  %4533 = vmatmul.mubr.bf16.gmra.mrb[0].mxu0 %v4498
  %v4534 = vpop.f32.mrb[0].mxu0
  %v4535 = vadd.f32 %v4483, %v4534
  %v4536 = vpop.f32.mrb[0].mxu0
  %v4537 = vpop.f32.mrb[0].mxu0
  %v4538 = vadd.f32 %v4483, %v4537
  %v4539 = vpop.f32.mrb[0].mxu0
  %4540 = vdwg.mxu0
  %v4541 = vtanh.pop %v4535
  %v4542 = vtanh.pop %v4538
  %v4543 = vpack.c.bf16 %v4542, %v4541
  %v4544 = vld [vmem:[%s22] sm:$0xf]
  %v4545 = vld [vmem:[%s22 + $0x4] sm:$0xf]
  %v4546 = vld [vmem:[%s22 + $0x8] sm:$0xf]
  %v4547 = vld [vmem:[%s22 + $0xc] sm:$0xf]
  %v4548 = vld [vmem:[%s23] sm:$0x1]
  %v4550 = vlaneseq
  %v4551 = vshrl.u32 %v4550, 7
  %v4552 = vsub.s32 0, %v4551
  %v4553 = vrot.slane %v4548, %v4552
  %v4559 = vunpack.c.l.b16 %v4544
  %v4560 = vunpack.c.l.b16 %v4545
  %v4561 = vunpack.c.l.b16 %v4546
  %v4562 = vunpack.c.l.b16 %v4547
  %v4563 = vpack.c.b16 %v4560, %v4559
  %v4564 = vpack.c.b16 %v4562, %v4561
  %v4568 = vsel %vm82, %v4543, 0
  %4570 = vmatprep.subr.bf16.mxu0 0
  %4571 = vmatpush1.bf16.msra.mxu0 %v4563
  %4572 = vmatprep.subr.bf16.mxu0 0
  %4573 = vmatpush1.bf16.msra.mxu0 %v4564
  %4574 = vmatprep.subr.bf16.mxu0 0
  %4575 = vmatpush1.bf16.msra.mxu0 0
  %4576 = vmatprep.subr.bf16.mxu0 0
  %4577 = vmatpush1.bf16.msra.mxu0 0
  %4578 = vmatprep.subr.bf16.mxu0 0
  %4579 = vmatpush1.bf16.msra.mxu0 0
  %4580 = vmatprep.subr.bf16.mxu0 0
  %4581 = vmatpush1.bf16.msra.mxu0 0
  %4582 = vmatprep.subr.bf16.mxu0 0
  %4583 = vmatpush1.bf16.msra.mxu0 0
  %4584 = vmatprep.subr.bf16.mxu0 0
  %4585 = vmatpush1.bf16.msra.mxu0 0
  %4586 = vmatprep.subr.bf16.mxu0 0
  %4587 = vmatpush1.bf16.msra.mxu0 0
  %4588 = vmatprep.subr.bf16.mxu0 0
  %4589 = vmatpush1.bf16.msra.mxu0 0
  %4590 = vmatprep.subr.bf16.mxu0 0
  %4591 = vmatpush1.bf16.msra.mxu0 0
  %4592 = vmatprep.subr.bf16.mxu0 0
  %4593 = vmatpush1.bf16.msra.mxu0 0
  %4594 = vmatprep.subr.bf16.mxu0 0
  %4595 = vmatpush1.bf16.msra.mxu0 0
  %4596 = vmatprep.subr.bf16.mxu0 0
  %4597 = vmatpush1.bf16.msra.mxu0 0
  %4598 = vmatprep.subr.bf16.mxu0 0
  %4599 = vmatpush1.bf16.msra.mxu0 0
  %4600 = vmatprep.subr.bf16.mxu0 0
  %4601 = vmatpush1.bf16.msra.mxu0 0
  %4602 = vmatprep.mubr.bf16.mxu0 0
  %4603 = vmatmul.mubr.bf16.gmra.mrb[0].mxu0 %v4568
  %v4604 = vpop.f32.mrb[0].mxu0
  %v4605 = vadd.f32 %v4553, %v4604
  %v4606 = vpop.f32.mrb[0].mxu0
  %v4607 = vpop.f32.mrb[0].mxu0
  %v4608 = vadd.f32 %v4553, %v4607
  %v4609 = vpop.f32.mrb[0].mxu0
  %4610 = vdwg.mxu0
  %4611 = vst [vmem:[%s24] sm:$0xff] %v4605
  %4612 = vst [vmem:[%s24 + $0x8] sm:$0xff] %v4608
  // Predicated region
  $region98: #{bert_classifier_forward.1} parent=0 // pred_check
    _
  $region99: #{bert_classifier_forward.1} parent=0 // pred_check_branch
    %4614 = sbr.rel (0) target = $region101
  $region100: #{bert_classifier_forward.1} parent=0 // pred_region
    _
  $region101: #{bert_classifier_forward.1} parent=0 // pred_fallthru
    _
  // Predicated region
  $region102: #{bert_classifier_forward.1} parent=0 // pred_check
    _
  $region103: #{bert_classifier_forward.1} parent=0 // pred_check_branch
    %4616 = sbr.rel (0) target = $region105
  $region104: #{bert_classifier_forward.1} parent=0 // pred_region
    _
  $region105: #{bert_classifier_forward.1} parent=0 // pred_fallthru
    _

</llo_original>
